<compile_context>
chip_gen: v5e
topology: v5e:2x2
jax: 0.10.0
libtpu: 0.0.40
codegen_flags: <defaults>
</compile_context>

<pallas_src>
import functools

import jax
import jax.numpy as jnp
from jax import lax
from jax.experimental import pallas as pl
from jax.experimental.pallas import tpu as pltpu


def _tblock_kernel(
    xq_ref,            # (tq, D)   query-row tile of X (f32; also the residual input)
    k_ref,             # (tk, HD)  pre-projected K rows
    vp_ref,            # (H, tk)   per-key folded V scalars (X @ (W_v w_o))^T
    wq_ref, bq_ref,    # (D, HD), (1, HD)
    beff_ref,          # (1, 1)    folded output bias: b_o + b_v . w_o
    w1_ref, b1_ref,    # (D, dF), (1, dF)
    w2_ref, b2_ref,    # (dF, D), (1, D)
    g1_ref, be1_ref,   # (1, D)
    g2_ref, be2_ref,   # (1, D)
    out_ref,           # (tq, D)
    q_sc, m_sc, l_sc, y_sc,
    *, num_heads: int, d_input: int, use_bf16: bool,
):
    H, D = num_heads, d_input
    compute_dtype = jnp.bfloat16 if use_bf16 else jnp.float32
    exp_dtype = jnp.bfloat16 if use_bf16 else jnp.float32   # bf16 EUP path on v6e/v7x
    ki = pl.program_id(1)
    eps = 1e-5
    inv_sqrt_d = 1.0 / (float(D) ** 0.5)

    def mxu(a, b):
        # MXU matmul with (optionally bf16) operands and f32 accumulation.
        return jnp.dot(a.astype(compute_dtype), b.astype(compute_dtype),
                       preferred_element_type=jnp.float32)

    # ---- init per-query-tile state; project Q once per query tile -------------
    @pl.when(ki == 0)
    def _init():
        q = mxu(xq_ref[...], wq_ref[...]) + bq_ref[...]            # (tq, HD)
        q_sc[...] = q.astype(q_sc.dtype)
        m_sc[...] = jnp.full_like(m_sc, -jnp.inf)
        l_sc[...] = jnp.zeros_like(l_sc)
        y_sc[...] = jnp.zeros_like(y_sc)

    k_tile = k_ref[...].astype(compute_dtype)                      # (tk, HD)
    vp_tile = vp_ref[...].astype(jnp.float32)                      # (H, tk)

    # ---- per-head online softmax (static loop; H == 1 for this module) --------
    for h in range(H):
        qh = q_sc[:, h * D:(h + 1) * D]                            # (tq, D)
        kh = k_tile[:, h * D:(h + 1) * D]                          # (tk, D)
        # contract on the last (lane) dim of both operands -> no explicit K^T.
        s = lax.dot_general(qh, kh,
                            dimension_numbers=(((1,), (1,)), ((), ())),
                            preferred_element_type=jnp.float32) * inv_sqrt_d
        m_prev = m_sc[:, h:h + 1]
        m_new = jnp.maximum(m_prev, jnp.max(s, axis=-1, keepdims=True))
        alpha = jnp.exp((m_prev - m_new).astype(exp_dtype)).astype(jnp.float32)
        p = jnp.exp((s - m_new).astype(exp_dtype)).astype(jnp.float32)
        l_sc[:, h:h + 1] = (alpha * l_sc[:, h:h + 1]
                            + jnp.sum(p, axis=-1, keepdims=True))
        # P @ vproj is a (tq,1) result -> do it on VPU (mul) + XLU (lane reduce)
        # instead of wasting an MXU pass on a 1-column matmul.
        y_sc[:, h:h + 1] = (alpha * y_sc[:, h:h + 1]
                            + jnp.sum(p * vp_tile[h:h + 1, :],
                                      axis=-1, keepdims=True))
        m_sc[:, h:h + 1] = m_new

    # ---- epilogue on the last key tile -----------------------------------------
    @pl.when(ki == pl.num_programs(1) - 1)
    def _finalize():
        xq = xq_ref[...]                                           # (tq, D) f32
        y = beff_ref[...]                                          # (1,1) broadcasts
        for h in range(H):
            inv_l = pl.reciprocal(l_sc[:, h:h + 1], approx=True)   # EUP, ~free
            y = y + y_sc[:, h:h + 1] * inv_l                       # (tq, 1)

        # residual (PyTorch broadcasts the (N,1) attention output over D) + LN1
        h1 = xq + y
        mu1 = jnp.mean(h1, axis=-1, keepdims=True)
        var1 = jnp.mean((h1 - mu1) * (h1 - mu1), axis=-1, keepdims=True)
        x1 = (h1 - mu1) * lax.rsqrt(var1 + eps) * g1_ref[...] + be1_ref[...]

        # FeedForward (dropout == identity in eval mode)
        hid = jnp.maximum(mxu(x1, w1_ref[...]) + b1_ref[...], 0.0)
        ff = mxu(hid, w2_ref[...]) + b2_ref[...]

        # residual + LN2
        h2 = x1 + ff
        mu2 = jnp.mean(h2, axis=-1, keepdims=True)
        var2 = jnp.mean((h2 - mu2) * (h2 - mu2), axis=-1, keepdims=True)
        out_ref[...] = ((h2 - mu2) * lax.rsqrt(var2 + eps) * g2_ref[...]
                        + be2_ref[...]).astype(out_ref.dtype)


def transformer_block(X, params, num_heads, *, tq=None, tk=None, use_bf16=True):
    """Fused TransformerBlock forward: XLA prologue (K projection + W_o fold) + one
    flash-style Pallas kernel tiled over samples N."""
    N, D = X.shape
    H = num_heads
    HD = H * D
    dF = params["w1"].shape[1]

    # Tile defaults: 256-wide tiles fill the v6e/v7x 256x256 MXU and amortize per-step
    # overhead; keep >= 2 query tiles so v7x's two TensorCores both get work.
    if tq is None:
        tq = 256 if (N % 256 == 0 and N // 256 >= 2) else 128
    if tk is None:
        tk = 256 if N % 256 == 0 else 128
    assert N % tq == 0 and N % tk == 0, "N must be divisible by the row tiles"
    assert D % 128 == 0 and dF % 128 == 0, "feature dims should be lane-dense (x128)"

    compute_dtype = jnp.bfloat16 if use_bf16 else jnp.float32

    # --- One-time prologue (plain XLA): hoist K projection out of the inner loop and
    # fold the HD->1 output projection into the V path (softmax rows sum to 1):
    #   attn @ V @ w_o + b_o == attn @ (X @ (W_v w_o)) + (b_v . w_o + b_o)
    k_all = (X @ params["wk"] + params["bk"]).astype(compute_dtype)          # (N, HD)
    wo = params["wo"].reshape(HD)                                            # (HD,)
    wvo = jnp.stack([params["wv"][:, h * D:(h + 1) * D] @ wo[h * D:(h + 1) * D]
                     for h in range(H)], axis=1)                             # (D, H)
    vproj_t = (X @ wvo).T.astype(jnp.float32)                                # (H, N)
    b_eff = (jnp.sum(params["bv"].reshape(HD) * wo)
             + params["bo"].reshape(())).reshape(1, 1).astype(jnp.float32)   # (1, 1)

    grid = (N // tq, N // tk)
    const = lambda qi, ki: (0, 0)   # weights: VMEM-resident, never re-DMA'd
    # NOTE: if D/dF grow, mark the const specs pipeline_mode=pl.Buffered(1) (v7x VMEM
    # headroom) and the K spec pl.Buffered(3) on v5e if profiling shows exposed DMA.

    kernel = functools.partial(_tblock_kernel, num_heads=H, d_input=D,
                               use_bf16=use_bf16)

    flops = int(2 * N * D * HD            # Q projection (once per row)
                + 2 * N * N * HD          # Q @ K^T
                + 2 * N * N * H           # p . vproj (VPU/XLU)
                + 4 * N * D * dF)         # FFN fc1 + fc2
    bytes_accessed = int(4 * (2 * N * D + N * H + 1)
                         + k_all.dtype.itemsize * N * HD * (N // tq)
                         + 4 * (D * HD + D * dF + dF * D + HD + dF + 7 * D))
    cost = pl.CostEstimate(flops=flops, transcendentals=int(N) * int(N) * H,
                           bytes_accessed=bytes_accessed)

    return pl.pallas_call(
        kernel,
        out_shape=jax.ShapeDtypeStruct((N, D), jnp.float32),
        grid_spec=pltpu.PrefetchScalarGridSpec(
            num_scalar_prefetch=0,
            grid=grid,
            in_specs=[
                pl.BlockSpec((tq, D), lambda qi, ki: (qi, 0)),    # X (query rows)
                pl.BlockSpec((tk, HD), lambda qi, ki: (ki, 0)),   # projected K rows
                pl.BlockSpec((H, tk), lambda qi, ki: (0, ki)),    # folded V scalars
                pl.BlockSpec((D, HD), const),                     # W_q
                pl.BlockSpec((1, HD), const),                     # b_q
                pl.BlockSpec((1, 1), const),                      # folded output bias
                pl.BlockSpec((D, dF), const),                     # W1
                pl.BlockSpec((1, dF), const),                     # b1
                pl.BlockSpec((dF, D), const),                     # W2
                pl.BlockSpec((1, D), const),                      # b2
                pl.BlockSpec((1, D), const),                      # gamma1
                pl.BlockSpec((1, D), const),                      # beta1
                pl.BlockSpec((1, D), const),                      # gamma2
                pl.BlockSpec((1, D), const),                      # beta2
            ],
            out_specs=pl.BlockSpec((tq, D), lambda qi, ki: (qi, 0)),
            scratch_shapes=[
                pltpu.VMEM((tq, HD), compute_dtype),              # cached Q tile
                pltpu.VMEM((tq, H), jnp.float32),                 # running max m
                pltpu.VMEM((tq, H), jnp.float32),                 # running denom l
                pltpu.VMEM((tq, H), jnp.float32),                 # running unnorm. y
            ],
        ),
        compiler_params=pltpu.CompilerParams(
            dimension_semantics=("parallel", "arbitrary"),
            # No VMEM-resident KV cache is used (K streamed from HBM), so 32 MiB is
            # plenty and fits every generation including v7x's 64 MiB physical VMEM.
            vmem_limit_bytes=32 * 1024 * 1024,
        ),
        cost_estimate=cost,
    )(
        X, k_all, vproj_t,
        params["wq"], params["bq"], b_eff,
        params["w1"], params["b1"],
        params["w2"], params["b2"],
        params["g1"], params["be1"],
        params["g2"], params["be2"],
    )


def _xavier_uniform(key, fan_in, fan_out, shape=None):
    # matches nn.init.xavier_uniform_ bound; stored as (in, out) = PyTorch weight^T
    bound = (6.0 / (fan_in + fan_out)) ** 0.5
    shape = (fan_in, fan_out) if shape is None else shape
    return jax.random.uniform(key, shape, jnp.float32, -bound, bound)


def _linear_default_w(key, fan_in, fan_out):
    # PyTorch default Linear init bound: 1/sqrt(fan_in); stored as (in, out)
    bound = 1.0 / (fan_in ** 0.5)
    return jax.random.uniform(key, (fan_in, fan_out), jnp.float32, -bound, bound)


def init_params(key, D, H, dF):
    ks = jax.random.split(key, 8)
    HD = D * H
    return {
        # attention: Xavier-init weights, zero biases (per reset_parameters)
        "wq": _xavier_uniform(ks[0], D, HD),
        "bq": jnp.zeros((1, HD), jnp.float32),
        "wk": _xavier_uniform(ks[1], D, HD),
        "bk": jnp.zeros((1, HD), jnp.float32),
        "wv": _xavier_uniform(ks[2], D, HD),
        "bv": jnp.zeros((1, HD), jnp.float32),
        "wo": _xavier_uniform(ks[3], HD, 1, shape=(HD, 1)),
        "bo": jnp.zeros((1, 1), jnp.float32),
        # feed-forward: PyTorch default Linear init
        "w1": _linear_default_w(ks[4], D, dF),
        "b1": jax.random.uniform(ks[5], (1, dF), jnp.float32,
                                 -1.0 / D ** 0.5, 1.0 / D ** 0.5),
        "w2": _linear_default_w(ks[6], dF, D),
        "b2": jax.random.uniform(ks[7], (1, D), jnp.float32,
                                 -1.0 / dF ** 0.5, 1.0 / dF ** 0.5),
        # layer norms: gamma=1, beta=0 (PyTorch default)
        "g1": jnp.ones((1, D), jnp.float32), "be1": jnp.zeros((1, D), jnp.float32),
        "g2": jnp.ones((1, D), jnp.float32), "be2": jnp.zeros((1, D), jnp.float32),
    }


def _reference_forward(X, p, H):
    """Plain-JAX reference (mirrors the PyTorch module) for sanity checking."""
    N, D = X.shape
    HD = H * D
    Q = X @ p["wq"] + p["bq"]
    K = X @ p["wk"] + p["bk"]
    V = X @ p["wv"] + p["bv"]
    Qh = Q.reshape(N, H, D).transpose(1, 0, 2)
    Kh = K.reshape(N, H, D).transpose(1, 0, 2)
    Vh = V.reshape(N, H, D).transpose(1, 0, 2)
    s = jnp.einsum("hnd,hmd->hnm", Qh, Kh) / (D ** 0.5)
    w = jax.nn.softmax(s, axis=-1)
    ao = jnp.einsum("hnm,hmd->hnd", w, Vh).transpose(1, 0, 2).reshape(N, HD)
    y = ao @ p["wo"] + p["bo"]

    def ln(x, g, b):
        mu = x.mean(-1, keepdims=True)
        var = ((x - mu) ** 2).mean(-1, keepdims=True)
        return (x - mu) / jnp.sqrt(var + 1e-5) * g + b

    x1 = ln(X + y, p["g1"], p["be1"])
    ff = jnp.maximum(x1 @ p["w1"] + p["b1"], 0.0) @ p["w2"] + p["b2"]
    return ln(x1 + ff, p["g2"], p["be2"])


if __name__ == "__main__":
    # Small but lane-dense shapes consistent with the module spec (H=1, dF=256):
    # N=512 samples of D=128 features -> grid (2,2) with 256x256 tiles.
    N, D, H, dF = 512, 128, 1, 256

    key = jax.random.PRNGKey(0)
    k_x, k_p = jax.random.split(key)
    X = jax.random.normal(k_x, (N, D), dtype=jnp.float32)
    params = init_params(k_p, D, H, dF)

    ref = _reference_forward(X, params, H)

    # reference-precision mode: f32 MXU operands (approx EUP reciprocal is the only
    # intentional approximation) -> tight-ish check vs the plain-JAX reference
    out = jax.block_until_ready(transformer_block(X, params, H, use_bf16=False))
    assert out.shape == (N, D)
    assert jnp.allclose(out, ref, atol=1e-2, rtol=1e-2), "f32 kernel mismatch"

    # production default: bf16 MXU operands / bf16 EUP exp, f32 accumulation
    out_fast = jax.block_until_ready(transformer_block(X, params, H))
    assert jnp.allclose(out_fast, ref, atol=6e-2, rtol=6e-2), "bf16 kernel mismatch"

    print("KERNEL_OK")
</pallas_src>

<mosaic_0001>
module attributes {stable_mosaic.version = 11 : i64} {
  func.func @_tblock_kernel(%arg0: i32, %arg1: i32, %arg2: memref<256x128xf32, #tpu.memory_space<vmem>>, %arg3: memref<256x128xf32, #tpu.memory_space<vmem>>, %arg4: memref<1x256xf32, #tpu.memory_space<vmem>>, %arg5: memref<128x128xf32, #tpu.memory_space<vmem>>, %arg6: memref<1x128xf32, #tpu.memory_space<vmem>>, %arg7: memref<1x1xf32, #tpu.memory_space<vmem>>, %arg8: memref<128x256xf32, #tpu.memory_space<vmem>>, %arg9: memref<1x256xf32, #tpu.memory_space<vmem>>, %arg10: memref<256x128xf32, #tpu.memory_space<vmem>>, %arg11: memref<1x128xf32, #tpu.memory_space<vmem>>, %arg12: memref<1x128xf32, #tpu.memory_space<vmem>>, %arg13: memref<1x128xf32, #tpu.memory_space<vmem>>, %arg14: memref<1x128xf32, #tpu.memory_space<vmem>>, %arg15: memref<1x128xf32, #tpu.memory_space<vmem>>, %arg16: memref<256x128xf32, #tpu.memory_space<vmem>>, %arg17: memref<256x128xf32, #tpu.memory_space<vmem>>, %arg18: memref<256x1xf32, #tpu.memory_space<vmem>>, %arg19: memref<256x1xf32, #tpu.memory_space<vmem>>, %arg20: memref<256x1xf32, #tpu.memory_space<vmem>>) attributes {dimension_semantics = [#tpu.dimension_semantics<parallel>, #tpu.dimension_semantics<arbitrary>], iteration_bounds = array<i64: 2, 2>, scalar_prefetch = 0 : i64, scratch_operands = 4 : i64, tpu.core_type = #tpu.core_type<tc>, window_params = [{transform_indices = @transform_0, window_bounds = array<i64: 256, 128>}, {transform_indices = @transform_1, window_bounds = array<i64: 256, 128>}, {transform_indices = @transform_2, window_bounds = array<i64: 1, 256>}, {pipeline_mode = #tpu.pipeline_mode<synchronous>, transform_indices = @transform_3, window_bounds = array<i64: 128, 128>}, {pipeline_mode = #tpu.pipeline_mode<synchronous>, transform_indices = @transform_4, window_bounds = array<i64: 1, 128>}, {pipeline_mode = #tpu.pipeline_mode<synchronous>, transform_indices = @transform_5, window_bounds = array<i64: 1, 1>}, {pipeline_mode = #tpu.pipeline_mode<synchronous>, transform_indices = @transform_6, window_bounds = array<i64: 128, 256>}, {pipeline_mode = #tpu.pipeline_mode<synchronous>, transform_indices = @transform_7, window_bounds = array<i64: 1, 256>}, {pipeline_mode = #tpu.pipeline_mode<synchronous>, transform_indices = @transform_8, window_bounds = array<i64: 256, 128>}, {pipeline_mode = #tpu.pipeline_mode<synchronous>, transform_indices = @transform_9, window_bounds = array<i64: 1, 128>}, {pipeline_mode = #tpu.pipeline_mode<synchronous>, transform_indices = @transform_10, window_bounds = array<i64: 1, 128>}, {pipeline_mode = #tpu.pipeline_mode<synchronous>, transform_indices = @transform_11, window_bounds = array<i64: 1, 128>}, {pipeline_mode = #tpu.pipeline_mode<synchronous>, transform_indices = @transform_12, window_bounds = array<i64: 1, 128>}, {pipeline_mode = #tpu.pipeline_mode<synchronous>, transform_indices = @transform_13, window_bounds = array<i64: 1, 128>}, {transform_indices = @transform_14, window_bounds = array<i64: 256, 128>}]} {
    %c0_i32 = arith.constant 0 : i32
    %0 = arith.cmpi eq, %arg1, %c0_i32 : i32
    %1 = arith.extui %0 : i1 to i32
    %c0_i32_0 = arith.constant 0 : i32
    %2 = arith.cmpi ne, %1, %c0_i32_0 : i32
    scf.if %2 {
      %c0_23 = arith.constant 0 : index
      %c0_24 = arith.constant 0 : index
      %36 = vector.load %arg2[%c0_23, %c0_24] : memref<256x128xf32, #tpu.memory_space<vmem>>, vector<256x128xf32>
      %c0_25 = arith.constant 0 : index
      %c0_26 = arith.constant 0 : index
      %37 = vector.load %arg5[%c0_25, %c0_26] : memref<128x128xf32, #tpu.memory_space<vmem>>, vector<128x128xf32>
      %cst_27 = arith.constant dense<0.000000e+00> : vector<256x128xf32>
      %38 = tpu.matmul %36, %37, %cst_27 {dimension_numbers = #tpu.dot_dimension_numbers<[1], [0], [0], [1], [0, 0, 1, 1], [], []>} : vector<256x128xf32>, vector<128x128xf32>, vector<256x128xf32> -> vector<256x128xf32>
      %c0_28 = arith.constant 0 : index
      %c0_29 = arith.constant 0 : index
      %39 = vector.load %arg6[%c0_28, %c0_29] : memref<1x128xf32, #tpu.memory_space<vmem>>, vector<1x128xf32>
      %40 = vector.broadcast %39 : vector<1x128xf32> to vector<256x128xf32>
      %41 = arith.addf %38, %40 : vector<256x128xf32>
      %c0_30 = arith.constant 0 : index
      %c0_31 = arith.constant 0 : index
      %42 = vector.load %arg17[%c0_30, %c0_31] : memref<256x128xf32, #tpu.memory_space<vmem>>, vector<256x128xf32>
      tpu.vector_store %arg17[%c0_30, %c0_31], %41 {strides = array<i32>} : memref<256x128xf32, #tpu.memory_space<vmem>>, vector<256x128xf32>,
      %cst_32 = arith.constant 0xFF800000 : f32
      %43 = vector.broadcast %cst_32 : f32 to vector<256x1xf32>
      %c0_33 = arith.constant 0 : index
      %c0_34 = arith.constant 0 : index
      %44 = vector.load %arg18[%c0_33, %c0_34] : memref<256x1xf32, #tpu.memory_space<vmem>>, vector<256x1xf32>
      tpu.vector_store %arg18[%c0_33, %c0_34], %43 {strides = array<i32>} : memref<256x1xf32, #tpu.memory_space<vmem>>, vector<256x1xf32>,
      %cst_35 = arith.constant 0.000000e+00 : f32
      %45 = vector.broadcast %cst_35 : f32 to vector<256x1xf32>
      %c0_36 = arith.constant 0 : index
      %c0_37 = arith.constant 0 : index
      %46 = vector.load %arg19[%c0_36, %c0_37] : memref<256x1xf32, #tpu.memory_space<vmem>>, vector<256x1xf32>
      tpu.vector_store %arg19[%c0_36, %c0_37], %45 {strides = array<i32>} : memref<256x1xf32, #tpu.memory_space<vmem>>, vector<256x1xf32>,
      %cst_38 = arith.constant 0.000000e+00 : f32
      %47 = vector.broadcast %cst_38 : f32 to vector<256x1xf32>
      %c0_39 = arith.constant 0 : index
      %c0_40 = arith.constant 0 : index
      %48 = vector.load %arg20[%c0_39, %c0_40] : memref<256x1xf32, #tpu.memory_space<vmem>>, vector<256x1xf32>
      tpu.vector_store %arg20[%c0_39, %c0_40], %47 {strides = array<i32>} : memref<256x1xf32, #tpu.memory_space<vmem>>, vector<256x1xf32>,
    } else {
    }
    %c0 = arith.constant 0 : index
    %c0_1 = arith.constant 0 : index
    %3 = vector.load %arg3[%c0, %c0_1] : memref<256x128xf32, #tpu.memory_space<vmem>>, vector<256x128xf32>
    %c0_2 = arith.constant 0 : index
    %c0_3 = arith.constant 0 : index
    %4 = vector.load %arg4[%c0_2, %c0_3] : memref<1x256xf32, #tpu.memory_space<vmem>>, vector<1x256xf32>
    %c0_4 = arith.constant 0 : index
    %c0_5 = arith.constant 0 : index
    %5 = vector.load %arg17[%c0_4, %c0_5] : memref<256x128xf32, #tpu.memory_space<vmem>>, vector<256x128xf32>
    %cst = arith.constant dense<0.000000e+00> : vector<256x256xf32>
    %6 = tpu.matmul %5, %3, %cst {dimension_numbers = #tpu.dot_dimension_numbers<[1], [1], [0], [0], [0, 0, 1, 0], [], []>} : vector<256x128xf32>, vector<256x128xf32>, vector<256x256xf32> -> vector<256x256xf32>
    %cst_6 = arith.constant 0.0883883461 : f32
    %7 = vector.broadcast %cst_6 : f32 to vector<256x256xf32>
    %8 = arith.mulf %6, %7 : vector<256x256xf32>
    %c0_7 = arith.constant 0 : index
    %c0_8 = arith.constant 0 : index
    %9 = vector.load %arg18[%c0_7, %c0_8] : memref<256x1xf32, #tpu.memory_space<vmem>>, vector<256x1xf32>
    %cst_9 = arith.constant dense<0xFF800000> : vector<256xf32>
    %10 = vector.multi_reduction <maximumf>, %8, %cst_9 [1] : vector<256x256xf32> to vector<256xf32>
    %11 = vector.shape_cast %10 : vector<256xf32> to vector<256x1xf32>
    %12 = arith.maximumf %9, %11 : vector<256x1xf32>
    %13 = arith.subf %9, %12 : vector<256x1xf32>
    %14 = math.exp %13 : vector<256x1xf32>
    %15 = vector.broadcast %12 : vector<256x1xf32> to vector<256x256xf32>
    %16 = arith.subf %8, %15 : vector<256x256xf32>
    %17 = math.exp %16 : vector<256x256xf32>
    %c0_10 = arith.constant 0 : index
    %c0_11 = arith.constant 0 : index
    %18 = vector.load %arg19[%c0_10, %c0_11] : memref<256x1xf32, #tpu.memory_space<vmem>>, vector<256x1xf32>
    %19 = arith.mulf %14, %18 : vector<256x1xf32>
    %cst_12 = arith.constant dense<0.000000e+00> : vector<256xf32>
    %20 = vector.multi_reduction <add>, %17, %cst_12 [1] : vector<256x256xf32> to vector<256xf32>
    %21 = vector.shape_cast %20 : vector<256xf32> to vector<256x1xf32>
    %22 = arith.addf %19, %21 : vector<256x1xf32>
    %c0_13 = arith.constant 0 : index
    %c0_14 = arith.constant 0 : index
    %23 = vector.load %arg19[%c0_13, %c0_14] : memref<256x1xf32, #tpu.memory_space<vmem>>, vector<256x1xf32>
    tpu.vector_store %arg19[%c0_13, %c0_14], %22 {strides = array<i32>} : memref<256x1xf32, #tpu.memory_space<vmem>>, vector<256x1xf32>,
    %c0_15 = arith.constant 0 : index
    %c0_16 = arith.constant 0 : index
    %24 = vector.load %arg20[%c0_15, %c0_16] : memref<256x1xf32, #tpu.memory_space<vmem>>, vector<256x1xf32>
    %25 = arith.mulf %14, %24 : vector<256x1xf32>
    %26 = vector.broadcast %4 : vector<1x256xf32> to vector<256x256xf32>
    %27 = arith.mulf %17, %26 : vector<256x256xf32>
    %cst_17 = arith.constant dense<0.000000e+00> : vector<256xf32>
    %28 = vector.multi_reduction <add>, %27, %cst_17 [1] : vector<256x256xf32> to vector<256xf32>
    %29 = vector.shape_cast %28 : vector<256xf32> to vector<256x1xf32>
    %30 = arith.addf %25, %29 : vector<256x1xf32>
    %c0_18 = arith.constant 0 : index
    %c0_19 = arith.constant 0 : index
    %31 = vector.load %arg20[%c0_18, %c0_19] : memref<256x1xf32, #tpu.memory_space<vmem>>, vector<256x1xf32>
    tpu.vector_store %arg20[%c0_18, %c0_19], %30 {strides = array<i32>} : memref<256x1xf32, #tpu.memory_space<vmem>>, vector<256x1xf32>,
    %c0_20 = arith.constant 0 : index
    %c0_21 = arith.constant 0 : index
    %32 = vector.load %arg18[%c0_20, %c0_21] : memref<256x1xf32, #tpu.memory_space<vmem>>, vector<256x1xf32>
    tpu.vector_store %arg18[%c0_20, %c0_21], %12 {strides = array<i32>} : memref<256x1xf32, #tpu.memory_space<vmem>>, vector<256x1xf32>,
    %c1_i32 = arith.constant 1 : i32
    %33 = arith.cmpi eq, %arg1, %c1_i32 : i32
    %34 = arith.extui %33 : i1 to i32
    %c0_i32_22 = arith.constant 0 : i32
    %35 = arith.cmpi ne, %34, %c0_i32_22 : i32
    scf.if %35 {
      %c0_23 = arith.constant 0 : index
      %c0_24 = arith.constant 0 : index
      %36 = vector.load %arg2[%c0_23, %c0_24] : memref<256x128xf32, #tpu.memory_space<vmem>>, vector<256x128xf32>
      %c0_25 = arith.constant 0 : index
      %c0_26 = arith.constant 0 : index
      %37 = vector.load %arg7[%c0_25, %c0_26] : memref<1x1xf32, #tpu.memory_space<vmem>>, vector<1x1xf32>
      %c0_27 = arith.constant 0 : index
      %c0_28 = arith.constant 0 : index
      %38 = vector.load %arg19[%c0_27, %c0_28] : memref<256x1xf32, #tpu.memory_space<vmem>>, vector<256x1xf32>
      %39 = tpu.reciprocal %38 {approx = true} : vector<256x1xf32> -> vector<256x1xf32>
      %c0_29 = arith.constant 0 : index
      %c0_30 = arith.constant 0 : index
      %40 = vector.load %arg20[%c0_29, %c0_30] : memref<256x1xf32, #tpu.memory_space<vmem>>, vector<256x1xf32>
      %41 = arith.mulf %40, %39 : vector<256x1xf32>
      %42 = vector.broadcast %37 : vector<1x1xf32> to vector<256x1xf32>
      %43 = arith.addf %42, %41 : vector<256x1xf32>
      %44 = vector.broadcast %43 : vector<256x1xf32> to vector<256x128xf32>
      %45 = arith.addf %36, %44 : vector<256x128xf32>
      %cst_31 = arith.constant dense<0.000000e+00> : vector<256xf32>
      %46 = vector.multi_reduction <add>, %45, %cst_31 [1] : vector<256x128xf32> to vector<256xf32>
      %47 = vector.shape_cast %46 : vector<256xf32> to vector<256x1xf32>
      %cst_32 = arith.constant 1.280000e+02 : f32
      %48 = vector.broadcast %cst_32 : f32 to vector<256x1xf32>
      %49 = arith.divf %47, %48 : vector<256x1xf32>
      %50 = vector.broadcast %49 : vector<256x1xf32> to vector<256x128xf32>
      %51 = arith.subf %45, %50 : vector<256x128xf32>
      %52 = vector.broadcast %49 : vector<256x1xf32> to vector<256x128xf32>
      %53 = arith.subf %45, %52 : vector<256x128xf32>
      %54 = arith.mulf %51, %53 : vector<256x128xf32>
      %cst_33 = arith.constant dense<0.000000e+00> : vector<256xf32>
      %55 = vector.multi_reduction <add>, %54, %cst_33 [1] : vector<256x128xf32> to vector<256xf32>
      %56 = vector.shape_cast %55 : vector<256xf32> to vector<256x1xf32>
      %cst_34 = arith.constant 1.280000e+02 : f32
      %57 = vector.broadcast %cst_34 : f32 to vector<256x1xf32>
      %58 = arith.divf %56, %57 : vector<256x1xf32>
      %59 = vector.broadcast %49 : vector<256x1xf32> to vector<256x128xf32>
      %60 = arith.subf %45, %59 : vector<256x128xf32>
      %cst_35 = arith.constant 9.99999974E-6 : f32
      %61 = vector.broadcast %cst_35 : f32 to vector<256x1xf32>
      %62 = arith.addf %58, %61 : vector<256x1xf32>
      %63 = math.rsqrt %62 : vector<256x1xf32>
      %64 = vector.broadcast %63 : vector<256x1xf32> to vector<256x128xf32>
      %65 = arith.mulf %60, %64 : vector<256x128xf32>
      %c0_36 = arith.constant 0 : index
      %c0_37 = arith.constant 0 : index
      %66 = vector.load %arg12[%c0_36, %c0_37] : memref<1x128xf32, #tpu.memory_space<vmem>>, vector<1x128xf32>
      %67 = vector.broadcast %66 : vector<1x128xf32> to vector<256x128xf32>
      %68 = arith.mulf %65, %67 : vector<256x128xf32>
      %c0_38 = arith.constant 0 : index
      %c0_39 = arith.constant 0 : index
      %69 = vector.load %arg13[%c0_38, %c0_39] : memref<1x128xf32, #tpu.memory_space<vmem>>, vector<1x128xf32>
      %70 = vector.broadcast %69 : vector<1x128xf32> to vector<256x128xf32>
      %71 = arith.addf %68, %70 : vector<256x128xf32>
      %c0_40 = arith.constant 0 : index
      %c0_41 = arith.constant 0 : index
      %72 = vector.load %arg8[%c0_40, %c0_41] : memref<128x256xf32, #tpu.memory_space<vmem>>, vector<128x256xf32>
      %cst_42 = arith.constant dense<0.000000e+00> : vector<256x256xf32>
      %73 = tpu.matmul %71, %72, %cst_42 {dimension_numbers = #tpu.dot_dimension_numbers<[1], [0], [0], [1], [0, 0, 1, 1], [], []>} : vector<256x128xf32>, vector<128x256xf32>, vector<256x256xf32> -> vector<256x256xf32>
      %c0_43 = arith.constant 0 : index
      %c0_44 = arith.constant 0 : index
      %74 = vector.load %arg9[%c0_43, %c0_44] : memref<1x256xf32, #tpu.memory_space<vmem>>, vector<1x256xf32>
      %75 = vector.broadcast %74 : vector<1x256xf32> to vector<256x256xf32>
      %76 = arith.addf %73, %75 : vector<256x256xf32>
      %cst_45 = arith.constant 0.000000e+00 : f32
      %77 = vector.broadcast %cst_45 : f32 to vector<256x256xf32>
      %78 = arith.maximumf %76, %77 : vector<256x256xf32>
      %c0_46 = arith.constant 0 : index
      %c0_47 = arith.constant 0 : index
      %79 = vector.load %arg10[%c0_46, %c0_47] : memref<256x128xf32, #tpu.memory_space<vmem>>, vector<256x128xf32>
      %cst_48 = arith.constant dense<0.000000e+00> : vector<256x128xf32>
      %80 = tpu.matmul %78, %79, %cst_48 {dimension_numbers = #tpu.dot_dimension_numbers<[1], [0], [0], [1], [0, 0, 1, 1], [], []>} : vector<256x256xf32>, vector<256x128xf32>, vector<256x128xf32> -> vector<256x128xf32>
      %c0_49 = arith.constant 0 : index
      %c0_50 = arith.constant 0 : index
      %81 = vector.load %arg11[%c0_49, %c0_50] : memref<1x128xf32, #tpu.memory_space<vmem>>, vector<1x128xf32>
      %82 = vector.broadcast %81 : vector<1x128xf32> to vector<256x128xf32>
      %83 = arith.addf %80, %82 : vector<256x128xf32>
      %84 = arith.addf %71, %83 : vector<256x128xf32>
      %cst_51 = arith.constant dense<0.000000e+00> : vector<256xf32>
      %85 = vector.multi_reduction <add>, %84, %cst_51 [1] : vector<256x128xf32> to vector<256xf32>
      %86 = vector.shape_cast %85 : vector<256xf32> to vector<256x1xf32>
      %cst_52 = arith.constant 1.280000e+02 : f32
      %87 = vector.broadcast %cst_52 : f32 to vector<256x1xf32>
      %88 = arith.divf %86, %87 : vector<256x1xf32>
      %89 = vector.broadcast %88 : vector<256x1xf32> to vector<256x128xf32>
      %90 = arith.subf %84, %89 : vector<256x128xf32>
      %91 = vector.broadcast %88 : vector<256x1xf32> to vector<256x128xf32>
      %92 = arith.subf %84, %91 : vector<256x128xf32>
      %93 = arith.mulf %90, %92 : vector<256x128xf32>
      %cst_53 = arith.constant dense<0.000000e+00> : vector<256xf32>
      %94 = vector.multi_reduction <add>, %93, %cst_53 [1] : vector<256x128xf32> to vector<256xf32>
      %95 = vector.shape_cast %94 : vector<256xf32> to vector<256x1xf32>
      %cst_54 = arith.constant 1.280000e+02 : f32
      %96 = vector.broadcast %cst_54 : f32 to vector<256x1xf32>
      %97 = arith.divf %95, %96 : vector<256x1xf32>
      %98 = vector.broadcast %88 : vector<256x1xf32> to vector<256x128xf32>
      %99 = arith.subf %84, %98 : vector<256x128xf32>
      %cst_55 = arith.constant 9.99999974E-6 : f32
      %100 = vector.broadcast %cst_55 : f32 to vector<256x1xf32>
      %101 = arith.addf %97, %100 : vector<256x1xf32>
      %102 = math.rsqrt %101 : vector<256x1xf32>
      %103 = vector.broadcast %102 : vector<256x1xf32> to vector<256x128xf32>
      %104 = arith.mulf %99, %103 : vector<256x128xf32>
      %c0_56 = arith.constant 0 : index
      %c0_57 = arith.constant 0 : index
      %105 = vector.load %arg14[%c0_56, %c0_57] : memref<1x128xf32, #tpu.memory_space<vmem>>, vector<1x128xf32>
      %106 = vector.broadcast %105 : vector<1x128xf32> to vector<256x128xf32>
      %107 = arith.mulf %104, %106 : vector<256x128xf32>
      %c0_58 = arith.constant 0 : index
      %c0_59 = arith.constant 0 : index
      %108 = vector.load %arg15[%c0_58, %c0_59] : memref<1x128xf32, #tpu.memory_space<vmem>>, vector<1x128xf32>
      %109 = vector.broadcast %108 : vector<1x128xf32> to vector<256x128xf32>
      %110 = arith.addf %107, %109 : vector<256x128xf32>
      %c0_60 = arith.constant 0 : index
      %c0_61 = arith.constant 0 : index
      %111 = vector.load %arg16[%c0_60, %c0_61] : memref<256x128xf32, #tpu.memory_space<vmem>>, vector<256x128xf32>
      tpu.vector_store %arg16[%c0_60, %c0_61], %110 {strides = array<i32>} : memref<256x128xf32, #tpu.memory_space<vmem>>, vector<256x128xf32>,
    } else {
    }
    return
  }
  func.func @transform_0(%arg0: i32, %arg1: i32) -> (i32, i32) {
    %c0_i32 = arith.constant 0 : i32
    %c0_i32_0 = arith.constant 0 : i32
    return %arg0, %c0_i32 : i32, i32
  }
  func.func @transform_1(%arg0: i32, %arg1: i32) -> (i32, i32) {
    %c0_i32 = arith.constant 0 : i32
    %c0_i32_0 = arith.constant 0 : i32
    return %arg1, %c0_i32 : i32, i32
  }
  func.func @transform_2(%arg0: i32, %arg1: i32) -> (i32, i32) {
    %c0_i32 = arith.constant 0 : i32
    %c0_i32_0 = arith.constant 0 : i32
    return %c0_i32, %arg1 : i32, i32
  }
  func.func @transform_3(%arg0: i32, %arg1: i32) -> (i32, i32) {
    %c0_i32 = arith.constant 0 : i32
    %c0_i32_0 = arith.constant 0 : i32
    %c0_i32_1 = arith.constant 0 : i32
    return %c0_i32, %c0_i32_0 : i32, i32
  }
  func.func @transform_4(%arg0: i32, %arg1: i32) -> (i32, i32) {
    %c0_i32 = arith.constant 0 : i32
    %c0_i32_0 = arith.constant 0 : i32
    %c0_i32_1 = arith.constant 0 : i32
    return %c0_i32, %c0_i32_0 : i32, i32
  }
  func.func @transform_5(%arg0: i32, %arg1: i32) -> (i32, i32) {
    %c0_i32 = arith.constant 0 : i32
    %c0_i32_0 = arith.constant 0 : i32
    %c0_i32_1 = arith.constant 0 : i32
    return %c0_i32, %c0_i32_0 : i32, i32
  }
  func.func @transform_6(%arg0: i32, %arg1: i32) -> (i32, i32) {
    %c0_i32 = arith.constant 0 : i32
    %c0_i32_0 = arith.constant 0 : i32
    %c0_i32_1 = arith.constant 0 : i32
    return %c0_i32, %c0_i32_0 : i32, i32
  }
  func.func @transform_7(%arg0: i32, %arg1: i32) -> (i32, i32) {
    %c0_i32 = arith.constant 0 : i32
    %c0_i32_0 = arith.constant 0 : i32
    %c0_i32_1 = arith.constant 0 : i32
    return %c0_i32, %c0_i32_0 : i32, i32
  }
  func.func @transform_8(%arg0: i32, %arg1: i32) -> (i32, i32) {
    %c0_i32 = arith.constant 0 : i32
    %c0_i32_0 = arith.constant 0 : i32
    %c0_i32_1 = arith.constant 0 : i32
    return %c0_i32, %c0_i32_0 : i32, i32
  }
  func.func @transform_9(%arg0: i32, %arg1: i32) -> (i32, i32) {
    %c0_i32 = arith.constant 0 : i32
    %c0_i32_0 = arith.constant 0 : i32
    %c0_i32_1 = arith.constant 0 : i32
    return %c0_i32, %c0_i32_0 : i32, i32
  }
  func.func @transform_10(%arg0: i32, %arg1: i32) -> (i32, i32) {
    %c0_i32 = arith.constant 0 : i32
    %c0_i32_0 = arith.constant 0 : i32
    %c0_i32_1 = arith.constant 0 : i32
    return %c0_i32, %c0_i32_0 : i32, i32
  }
  func.func @transform_11(%arg0: i32, %arg1: i32) -> (i32, i32) {
    %c0_i32 = arith.constant 0 : i32
    %c0_i32_0 = arith.constant 0 : i32
    %c0_i32_1 = arith.constant 0 : i32
    return %c0_i32, %c0_i32_0 : i32, i32
  }
  func.func @transform_12(%arg0: i32, %arg1: i32) -> (i32, i32) {
    %c0_i32 = arith.constant 0 : i32
    %c0_i32_0 = arith.constant 0 : i32
    %c0_i32_1 = arith.constant 0 : i32
    return %c0_i32, %c0_i32_0 : i32, i32
  }
  func.func @transform_13(%arg0: i32, %arg1: i32) -> (i32, i32) {
    %c0_i32 = arith.constant 0 : i32
    %c0_i32_0 = arith.constant 0 : i32
    %c0_i32_1 = arith.constant 0 : i32
    return %c0_i32, %c0_i32_0 : i32, i32
  }
  func.func @transform_14(%arg0: i32, %arg1: i32) -> (i32, i32) {
    %c0_i32 = arith.constant 0 : i32
    %c0_i32_0 = arith.constant 0 : i32
    return %arg0, %c0_i32 : i32, i32
  }
}

</mosaic_0001>

<llo_original>
// kernel: tpu_custom_call.1
$region0: #{tpu_custom_call.1}
  #allocation0 [shape = 'u32[]', space=smem, size = 0x4, offset = 0x4, fixed_abs, tag = 'smem constant byte address 0x4 - core index']
  #allocation1 [shape = 'u32[72,128]{1,0:T(1,128)}', space=vmem, size = 0x9000, scoped, tag = 'internal scratch']
  #allocation2 [shape = 'f32[256,128]{1,0:T(8,128)}', space=vmem, size = 0x20000, scoped, tag = 'scratch operand']
  #allocation3 [shape = 'f32[256,1]{1,0:T(8,128)}', space=vmem, size = 0x20000, scoped, tag = 'scratch operand']
  #allocation4 [shape = 'f32[256,1]{1,0:T(8,128)}', space=vmem, size = 0x20000, scoped, tag = 'scratch operand']
  #allocation5 [shape = 'f32[256,1]{1,0:T(8,128)}', space=vmem, size = 0x20000, scoped, tag = 'scratch operand']
  #allocation6 [shape = 'f32[1,1]{1,0:T(1,128)S(1)}', space=vmem, size = 0x200, scoped, tag = 'scoped memory for tpu_custom_call.1']
  %s0 = inlined_call_operand.hbm [shape: f32[512,128], index: 0, kind: input, shape index: {}]
  %s1 = inlined_call_operand.hbm [shape: f32[512,128], index: 1, kind: input, shape index: {}]
  %s2 = inlined_call_operand.hbm [shape: f32[1,512], index: 2, kind: input, shape index: {}]
  %s3 = inlined_call_operand.hbm [shape: f32[128,128], index: 3, kind: input, shape index: {}]
  %s4 = inlined_call_operand.vmem [shape: f32[1,128], index: 4, kind: input, shape index: {}]
  %s5 = inlined_call_operand.<no memory space> [shape: f32[1,1], index: 5, kind: input, shape index: {}]
  %s6 = inlined_call_operand.hbm [shape: f32[128,256], index: 6, kind: input, shape index: {}]
  %s7 = inlined_call_operand.vmem [shape: f32[1,256], index: 7, kind: input, shape index: {}]
  %s8 = inlined_call_operand.hbm [shape: f32[256,128], index: 8, kind: input, shape index: {}]
  %s9 = inlined_call_operand.vmem [shape: f32[1,128], index: 9, kind: input, shape index: {}]
  %s10 = inlined_call_operand.vmem [shape: f32[1,128], index: 10, kind: input, shape index: {}]
  %s11 = inlined_call_operand.vmem [shape: f32[1,128], index: 11, kind: input, shape index: {}]
  %s12 = inlined_call_operand.vmem [shape: f32[1,128], index: 12, kind: input, shape index: {}]
  %s13 = inlined_call_operand.vmem [shape: f32[1,128], index: 13, kind: input, shape index: {}]
  %s14 = inlined_call_operand.hbm [shape: f32[512,128], index: 14, kind: output, shape index: {}]
  %s15 = sld [smem:[#allocation0]]
  $region121: #{tpu_custom_call.1} parent=0
    _
  %s17 = ssub.s32 1, %s15
  %s18 = scalar_select 0, %s17, %s15
  %v19 = vstv %s5
  %20 = vst [vmem:[#allocation6] sm:$0x1] %v19
  $region1: #{tpu_custom_call.1} parent=0
    #allocation7 [shape = 'u8[262144]{0}', space=vmem, size = 0x40000, scoped, tag = 'input window, operand 0']
    #allocation8 [shape = 's32[2]{0}', space=sflag, size = 0x8, scoped, tag = 'scoped memory for tpu_custom_call.1']
    #allocation9 [shape = 's32[2]{0}', space=sflag, size = 0x8, scoped, tag = 'scoped memory for tpu_custom_call.1']
    #allocation10 [shape = 'u8[262144]{0}', space=vmem, size = 0x40000, scoped, tag = 'input window, operand 1']
    #allocation11 [shape = 's32[2]{0}', space=sflag, size = 0x8, scoped, tag = 'scoped memory for tpu_custom_call.1']
    #allocation12 [shape = 'u8[2048]{0}', space=vmem, size = 0x800, scoped, tag = 'input window, operand 2']
    #allocation13 [shape = 'u8[65536]{0}', space=vmem, size = 0x10000, scoped, tag = 'input window, operand 3, single buffered']
    #allocation14 [shape = 's32[1]{0}', space=sflag, size = 0x4, scoped, tag = 'scoped memory for tpu_custom_call.1']
    #allocation15 [shape = 'u8[131072]{0}', space=vmem, size = 0x20000, scoped, tag = 'input window, operand 6, single buffered']
    #allocation16 [shape = 'u8[131072]{0}', space=vmem, size = 0x20000, scoped, tag = 'input window, operand 8, single buffered']
    #allocation17 [shape = 's32[1]{0}', space=sflag, size = 0x4, scoped, tag = 'scoped memory for tpu_custom_call.1']
    #allocation18 [shape = 'u8[262144]{0}', space=vmem, size = 0x40000, scoped, tag = 'output window, operand 0']
    %21 = vsyncpa [#allocation8], 0
    %s22 = scalar_lea.sflag [#allocation8], 1
    %23 = vsyncpa %s22, 0
    %24 = vsyncpa [#allocation11], 0
    %s25 = scalar_lea.sflag [#allocation11], 1
    %26 = vsyncpa %s25, 0
    %27 = vsyncpa [#allocation14], 0
    %28 = vsyncpa [#allocation17], 0
    %29 = vsyncpa [#allocation9], 0
    %s30 = scalar_lea.sflag [#allocation9], 1
    %31 = vsyncpa %s30, 0
    loop: start=0, step=1, limit=6
    $region2: #{tpu_custom_call.1} parent=1 // loop_pre_header
      _
    $region3: #{tpu_custom_call.1} parent=1 // loop_header
      %s33 = sphi 0, %s37
      %p34 = scmp.ge.s32.totalorder %s33, 6
      %s40 = sphi 0, %s52
      %s41 = sphi 0, %s48
      %s42 = sphi 0, %s40
      %s43 = sphi 0, %s41
      %s44 = sphi 0, %s42
      %s45 = sphi 0, %s43
      %s55 = sphi 0, %s57
      %s58 = sphi 0, %s55
      %s59 = sphi 0, %s58
      %s75 = sphi 0, %s59
      %s81 = sphi 0, %s83
      %s84 = sphi 0, %s81
      %s85 = sphi 0, %s84
      %s101 = sphi 0, %s85
      %s107 = sphi 0, %s109
      %s110 = sphi 0, %s107
      %s111 = sphi 0, %s110
      %s127 = sphi 0, %s111
      %s131 = sphi 0, %s131
      %s133 = sphi 0, %s131
      %s134 = sphi 0, %s133
      %s148 = sphi 0, %s134
      %s152 = sphi 0, %s152
      %s154 = sphi 0, %s152
      %s155 = sphi 0, %s154
      %s169 = sphi 0, %s155
      %s173 = sphi 0, %s173
      %s175 = sphi 0, %s173
      %s176 = sphi 0, %s175
      %s190 = sphi 0, %s176
      %s194 = sphi 0, %s194
      %s196 = sphi 0, %s194
      %s197 = sphi 0, %s196
      %s211 = sphi 0, %s197
      %s215 = sphi 0, %s215
      %s217 = sphi 0, %s215
      %s218 = sphi 0, %s217
      %s232 = sphi 0, %s218
      %s236 = sphi 0, %s236
      %s238 = sphi 0, %s236
      %s239 = sphi 0, %s238
      %s253 = sphi 0, %s239
      %s257 = sphi 0, %s257
      %s259 = sphi 0, %s257
      %s260 = sphi 0, %s259
      %s274 = sphi 0, %s260
      %s278 = sphi 0, %s278
      %s280 = sphi 0, %s278
      %s281 = sphi 0, %s280
      %s295 = sphi 0, %s281
      %s299 = sphi 0, %s299
      %s301 = sphi 0, %s299
      %s302 = sphi 0, %s301
      %s316 = sphi 0, %s302
      %s320 = sphi 0, %s320
      %s322 = sphi 0, %s320
      %s323 = sphi 0, %s322
      %s337 = sphi 0, %s323
      %s341 = sphi 0, %s341
      %s343 = sphi 0, %s341
      %s344 = sphi 0, %s343
      %s358 = sphi 0, %s344
      %s364 = sphi 0, %s366
      %s367 = sphi 0, %s364
      %s368 = sphi 0, %s367
      %s384 = sphi 0, %s368
    $region4: #{tpu_custom_call.1} parent=1 // loop_header_branch
      %36 = sbr.rel (%p34) target = $region8
    $region5: #{tpu_custom_call.1} parent=1 // loop_body
      %s38 = ssub.s32 %s33, 1
      %s39 = ssub.s32 %s33, 2
      %s46 = sadd.s32 1, %s41
      %p47 = scmp.ge.s32.totalorder %s46, 2
      %s48 = scalar_select %p47, 0, %s46
      %s49 = sadd.s32 1, %s40
      %s50 = scalar_select %p47, %s49, %s40
      %p51 = scmp.ge.s32.totalorder %s50, 2
      %s52 = scalar_select %p51, 0, %s50
      %s53 = ssub.s32 %s40, %s52
      %p54 = scmp.eq.s32.totalorder %s53, 0
      %s56 = sadd.s32 %s55, 1
      %s57 = scalar_select %p54, %s55, %s56
      %p60 = pneg %p54
      %p61 = scmp.eq.s32.totalorder %s33, 3
      %p62 = por %p60, %p61
      %p63 = scmp.ne.s32.totalorder %s55, %s58
      %p64 = scmp.eq.s32.totalorder %s33, 0
      %p65 = por %p63, %p64
      %p66 = scmp.ne.s32.totalorder %s55, %s58
      %p67 = scmp.eq.s32.totalorder %s38, 3
      %p68 = por %p66, %p67
      %p69 = scmp.ne.s32.totalorder %s58, %s59
      %p70 = scmp.eq.s32.totalorder %s38, 0
      %p71 = por %p69, %p70
      %p72 = scmp.ne.s32.totalorder %s58, %s59
      %p73 = scmp.eq.s32.totalorder %s39, 3
      %p74 = por %p72, %p73
      %p76 = scmp.ne.s32.totalorder %s59, %s75
      %p77 = scmp.eq.s32.totalorder %s39, 0
      %p78 = por %p76, %p77
      %s79 = ssub.s32 %s41, %s48
      %p80 = scmp.eq.s32.totalorder %s79, 0
      %s82 = sadd.s32 %s81, 1
      %s83 = scalar_select %p80, %s81, %s82
      %p86 = pneg %p80
      %p87 = scmp.eq.s32.totalorder %s33, 3
      %p88 = por %p86, %p87
      %p89 = scmp.ne.s32.totalorder %s81, %s84
      %p90 = scmp.eq.s32.totalorder %s33, 0
      %p91 = por %p89, %p90
      %p92 = scmp.ne.s32.totalorder %s81, %s84
      %p93 = scmp.eq.s32.totalorder %s38, 3
      %p94 = por %p92, %p93
      %p95 = scmp.ne.s32.totalorder %s84, %s85
      %p96 = scmp.eq.s32.totalorder %s38, 0
      %p97 = por %p95, %p96
      %p98 = scmp.ne.s32.totalorder %s84, %s85
      %p99 = scmp.eq.s32.totalorder %s39, 3
      %p100 = por %p98, %p99
      %p102 = scmp.ne.s32.totalorder %s85, %s101
      %p103 = scmp.eq.s32.totalorder %s39, 0
      %p104 = por %p102, %p103
      %s105 = ssub.s32 %s41, %s48
      %p106 = scmp.eq.s32.totalorder %s105, 0
      %s108 = sadd.s32 %s107, 1
      %s109 = scalar_select %p106, %s107, %s108
      %p112 = pneg %p106
      %p113 = scmp.eq.s32.totalorder %s33, 3
      %p114 = por %p112, %p113
      %p115 = scmp.ne.s32.totalorder %s107, %s110
      %p116 = scmp.eq.s32.totalorder %s33, 0
      %p117 = por %p115, %p116
      %p118 = scmp.ne.s32.totalorder %s107, %s110
      %p119 = scmp.eq.s32.totalorder %s38, 3
      %p120 = por %p118, %p119
      %p121 = scmp.ne.s32.totalorder %s110, %s111
      %p122 = scmp.eq.s32.totalorder %s38, 0
      %p123 = por %p121, %p122
      %p124 = scmp.ne.s32.totalorder %s110, %s111
      %p125 = scmp.eq.s32.totalorder %s39, 3
      %p126 = por %p124, %p125
      %p128 = scmp.ne.s32.totalorder %s111, %s127
      %p129 = scmp.eq.s32.totalorder %s39, 0
      %p130 = por %p128, %p129
      %s132 = sadd.s32 %s131, 1
      %p135 = scmp.eq.s32.totalorder %s33, 3
      %p136 = scmp.ne.s32.totalorder %s131, %s133
      %p137 = scmp.eq.s32.totalorder %s33, 0
      %p138 = por %p136, %p137
      %p139 = scmp.ne.s32.totalorder %s131, %s133
      %p140 = scmp.eq.s32.totalorder %s38, 3
      %p141 = por %p139, %p140
      %p142 = scmp.ne.s32.totalorder %s133, %s134
      %p143 = scmp.eq.s32.totalorder %s38, 0
      %p144 = por %p142, %p143
      %p145 = scmp.ne.s32.totalorder %s133, %s134
      %p146 = scmp.eq.s32.totalorder %s39, 3
      %p147 = por %p145, %p146
      %p149 = scmp.ne.s32.totalorder %s134, %s148
      %p150 = scmp.eq.s32.totalorder %s39, 0
      %p151 = por %p149, %p150
      %s153 = sadd.s32 %s152, 1
      %p156 = scmp.eq.s32.totalorder %s33, 3
      %p157 = scmp.ne.s32.totalorder %s152, %s154
      %p158 = scmp.eq.s32.totalorder %s33, 0
      %p159 = por %p157, %p158
      %p160 = scmp.ne.s32.totalorder %s152, %s154
      %p161 = scmp.eq.s32.totalorder %s38, 3
      %p162 = por %p160, %p161
      %p163 = scmp.ne.s32.totalorder %s154, %s155
      %p164 = scmp.eq.s32.totalorder %s38, 0
      %p165 = por %p163, %p164
      %p166 = scmp.ne.s32.totalorder %s154, %s155
      %p167 = scmp.eq.s32.totalorder %s39, 3
      %p168 = por %p166, %p167
      %p170 = scmp.ne.s32.totalorder %s155, %s169
      %p171 = scmp.eq.s32.totalorder %s39, 0
      %p172 = por %p170, %p171
      %s174 = sadd.s32 %s173, 1
      %p177 = scmp.eq.s32.totalorder %s33, 3
      %p178 = scmp.ne.s32.totalorder %s173, %s175
      %p179 = scmp.eq.s32.totalorder %s33, 0
      %p180 = por %p178, %p179
      %p181 = scmp.ne.s32.totalorder %s173, %s175
      %p182 = scmp.eq.s32.totalorder %s38, 3
      %p183 = por %p181, %p182
      %p184 = scmp.ne.s32.totalorder %s175, %s176
      %p185 = scmp.eq.s32.totalorder %s38, 0
      %p186 = por %p184, %p185
      %p187 = scmp.ne.s32.totalorder %s175, %s176
      %p188 = scmp.eq.s32.totalorder %s39, 3
      %p189 = por %p187, %p188
      %p191 = scmp.ne.s32.totalorder %s176, %s190
      %p192 = scmp.eq.s32.totalorder %s39, 0
      %p193 = por %p191, %p192
      %s195 = sadd.s32 %s194, 1
      %p198 = scmp.eq.s32.totalorder %s33, 3
      %p199 = scmp.ne.s32.totalorder %s194, %s196
      %p200 = scmp.eq.s32.totalorder %s33, 0
      %p201 = por %p199, %p200
      %p202 = scmp.ne.s32.totalorder %s194, %s196
      %p203 = scmp.eq.s32.totalorder %s38, 3
      %p204 = por %p202, %p203
      %p205 = scmp.ne.s32.totalorder %s196, %s197
      %p206 = scmp.eq.s32.totalorder %s38, 0
      %p207 = por %p205, %p206
      %p208 = scmp.ne.s32.totalorder %s196, %s197
      %p209 = scmp.eq.s32.totalorder %s39, 3
      %p210 = por %p208, %p209
      %p212 = scmp.ne.s32.totalorder %s197, %s211
      %p213 = scmp.eq.s32.totalorder %s39, 0
      %p214 = por %p212, %p213
      %s216 = sadd.s32 %s215, 1
      %p219 = scmp.eq.s32.totalorder %s33, 3
      %p220 = scmp.ne.s32.totalorder %s215, %s217
      %p221 = scmp.eq.s32.totalorder %s33, 0
      %p222 = por %p220, %p221
      %p223 = scmp.ne.s32.totalorder %s215, %s217
      %p224 = scmp.eq.s32.totalorder %s38, 3
      %p225 = por %p223, %p224
      %p226 = scmp.ne.s32.totalorder %s217, %s218
      %p227 = scmp.eq.s32.totalorder %s38, 0
      %p228 = por %p226, %p227
      %p229 = scmp.ne.s32.totalorder %s217, %s218
      %p230 = scmp.eq.s32.totalorder %s39, 3
      %p231 = por %p229, %p230
      %p233 = scmp.ne.s32.totalorder %s218, %s232
      %p234 = scmp.eq.s32.totalorder %s39, 0
      %p235 = por %p233, %p234
      %s237 = sadd.s32 %s236, 1
      %p240 = scmp.eq.s32.totalorder %s33, 3
      %p241 = scmp.ne.s32.totalorder %s236, %s238
      %p242 = scmp.eq.s32.totalorder %s33, 0
      %p243 = por %p241, %p242
      %p244 = scmp.ne.s32.totalorder %s236, %s238
      %p245 = scmp.eq.s32.totalorder %s38, 3
      %p246 = por %p244, %p245
      %p247 = scmp.ne.s32.totalorder %s238, %s239
      %p248 = scmp.eq.s32.totalorder %s38, 0
      %p249 = por %p247, %p248
      %p250 = scmp.ne.s32.totalorder %s238, %s239
      %p251 = scmp.eq.s32.totalorder %s39, 3
      %p252 = por %p250, %p251
      %p254 = scmp.ne.s32.totalorder %s239, %s253
      %p255 = scmp.eq.s32.totalorder %s39, 0
      %p256 = por %p254, %p255
      %s258 = sadd.s32 %s257, 1
      %p261 = scmp.eq.s32.totalorder %s33, 3
      %p262 = scmp.ne.s32.totalorder %s257, %s259
      %p263 = scmp.eq.s32.totalorder %s33, 0
      %p264 = por %p262, %p263
      %p265 = scmp.ne.s32.totalorder %s257, %s259
      %p266 = scmp.eq.s32.totalorder %s38, 3
      %p267 = por %p265, %p266
      %p268 = scmp.ne.s32.totalorder %s259, %s260
      %p269 = scmp.eq.s32.totalorder %s38, 0
      %p270 = por %p268, %p269
      %p271 = scmp.ne.s32.totalorder %s259, %s260
      %p272 = scmp.eq.s32.totalorder %s39, 3
      %p273 = por %p271, %p272
      %p275 = scmp.ne.s32.totalorder %s260, %s274
      %p276 = scmp.eq.s32.totalorder %s39, 0
      %p277 = por %p275, %p276
      %s279 = sadd.s32 %s278, 1
      %p282 = scmp.eq.s32.totalorder %s33, 3
      %p283 = scmp.ne.s32.totalorder %s278, %s280
      %p284 = scmp.eq.s32.totalorder %s33, 0
      %p285 = por %p283, %p284
      %p286 = scmp.ne.s32.totalorder %s278, %s280
      %p287 = scmp.eq.s32.totalorder %s38, 3
      %p288 = por %p286, %p287
      %p289 = scmp.ne.s32.totalorder %s280, %s281
      %p290 = scmp.eq.s32.totalorder %s38, 0
      %p291 = por %p289, %p290
      %p292 = scmp.ne.s32.totalorder %s280, %s281
      %p293 = scmp.eq.s32.totalorder %s39, 3
      %p294 = por %p292, %p293
      %p296 = scmp.ne.s32.totalorder %s281, %s295
      %p297 = scmp.eq.s32.totalorder %s39, 0
      %p298 = por %p296, %p297
      %s300 = sadd.s32 %s299, 1
      %p303 = scmp.eq.s32.totalorder %s33, 3
      %p304 = scmp.ne.s32.totalorder %s299, %s301
      %p305 = scmp.eq.s32.totalorder %s33, 0
      %p306 = por %p304, %p305
      %p307 = scmp.ne.s32.totalorder %s299, %s301
      %p308 = scmp.eq.s32.totalorder %s38, 3
      %p309 = por %p307, %p308
      %p310 = scmp.ne.s32.totalorder %s301, %s302
      %p311 = scmp.eq.s32.totalorder %s38, 0
      %p312 = por %p310, %p311
      %p313 = scmp.ne.s32.totalorder %s301, %s302
      %p314 = scmp.eq.s32.totalorder %s39, 3
      %p315 = por %p313, %p314
      %p317 = scmp.ne.s32.totalorder %s302, %s316
      %p318 = scmp.eq.s32.totalorder %s39, 0
      %p319 = por %p317, %p318
      %s321 = sadd.s32 %s320, 1
      %p324 = scmp.eq.s32.totalorder %s33, 3
      %p325 = scmp.ne.s32.totalorder %s320, %s322
      %p326 = scmp.eq.s32.totalorder %s33, 0
      %p327 = por %p325, %p326
      %p328 = scmp.ne.s32.totalorder %s320, %s322
      %p329 = scmp.eq.s32.totalorder %s38, 3
      %p330 = por %p328, %p329
      %p331 = scmp.ne.s32.totalorder %s322, %s323
      %p332 = scmp.eq.s32.totalorder %s38, 0
      %p333 = por %p331, %p332
      %p334 = scmp.ne.s32.totalorder %s322, %s323
      %p335 = scmp.eq.s32.totalorder %s39, 3
      %p336 = por %p334, %p335
      %p338 = scmp.ne.s32.totalorder %s323, %s337
      %p339 = scmp.eq.s32.totalorder %s39, 0
      %p340 = por %p338, %p339
      %s342 = sadd.s32 %s341, 1
      %p345 = scmp.eq.s32.totalorder %s33, 3
      %p346 = scmp.ne.s32.totalorder %s341, %s343
      %p347 = scmp.eq.s32.totalorder %s33, 0
      %p348 = por %p346, %p347
      %p349 = scmp.ne.s32.totalorder %s341, %s343
      %p350 = scmp.eq.s32.totalorder %s38, 3
      %p351 = por %p349, %p350
      %p352 = scmp.ne.s32.totalorder %s343, %s344
      %p353 = scmp.eq.s32.totalorder %s38, 0
      %p354 = por %p352, %p353
      %p355 = scmp.ne.s32.totalorder %s343, %s344
      %p356 = scmp.eq.s32.totalorder %s39, 3
      %p357 = por %p355, %p356
      %p359 = scmp.ne.s32.totalorder %s344, %s358
      %p360 = scmp.eq.s32.totalorder %s39, 0
      %p361 = por %p359, %p360
      %s362 = ssub.s32 %s40, %s52
      %p363 = scmp.eq.s32.totalorder %s362, 0
      %s365 = sadd.s32 %s364, 1
      %s366 = scalar_select %p363, %s364, %s365
      %p369 = pneg %p363
      %p370 = scmp.eq.s32.totalorder %s33, 3
      %p371 = por %p369, %p370
      %p372 = scmp.ne.s32.totalorder %s364, %s367
      %p373 = scmp.eq.s32.totalorder %s33, 0
      %p374 = por %p372, %p373
      %p375 = scmp.ne.s32.totalorder %s364, %s367
      %p376 = scmp.eq.s32.totalorder %s38, 3
      %p377 = por %p375, %p376
      %p378 = scmp.ne.s32.totalorder %s367, %s368
      %p379 = scmp.eq.s32.totalorder %s38, 0
      %p380 = por %p378, %p379
      %p381 = scmp.ne.s32.totalorder %s367, %s368
      %p382 = scmp.eq.s32.totalorder %s39, 3
      %p383 = por %p381, %p382
      %p385 = scmp.ne.s32.totalorder %s368, %s384
      %p386 = scmp.eq.s32.totalorder %s39, 0
      %p387 = por %p385, %p386
      %p388 = scmp.le.s32.totalorder 1, %s33
      %p389 = scmp.lt.s32.totalorder %s33, 5
      %p390 = pnand %p388, %p389
      %p391 = pneg %p390
      // Predicated region
      $region9: #{tpu_custom_call.1} parent=5 // pred_check
        _
      $region10: #{tpu_custom_call.1} parent=5 // pred_check_branch
        %393 = sbr.rel (%p390) target = $region12
      $region11: #{tpu_custom_call.1} parent=5 // pred_region
        %s394 = ssub.s32 %s33, 1
        // Predicated region
        $region13: #{tpu_custom_call.1} parent=11 // pred_check
          %p395 = pneg %p144
        $region14: #{tpu_custom_call.1} parent=11 // pred_check_branch
          %397 = sbr.rel (%p395) target = $region16
        $region15: #{tpu_custom_call.1} parent=11 // pred_region
          %399 = vsyncadd [#allocation14], 0
          %s400 = sshll.u32 %s3, 4
          %s401 = int_to_ptr.hbm [resolvable:$true] %s400
          %s402 = sshll.u32 [#allocation13], 4
          %s403 = int_to_ptr.vmem [resolvable:$true] %s402
          %408 = dma.hbm_to_vmem [thread:$0]  %s401, 2048, %s403, [#allocation14], 128, 128, 8
        $region16: #{tpu_custom_call.1} parent=11 // pred_fallthru
          _
        // Predicated region
        $region17: #{tpu_custom_call.1} parent=11 // pred_check
          %p409 = pneg %p165
        $region18: #{tpu_custom_call.1} parent=11 // pred_check_branch
          %411 = sbr.rel (%p409) target = $region20
        $region19: #{tpu_custom_call.1} parent=11 // pred_region
          _
        $region20: #{tpu_custom_call.1} parent=11 // pred_fallthru
          _
        // Predicated region
        $region21: #{tpu_custom_call.1} parent=11 // pred_check
          %p412 = pneg %p186
        $region22: #{tpu_custom_call.1} parent=11 // pred_check_branch
          %414 = sbr.rel (%p412) target = $region24
        $region23: #{tpu_custom_call.1} parent=11 // pred_region
          _
        $region24: #{tpu_custom_call.1} parent=11 // pred_fallthru
          _
        // Predicated region
        $region25: #{tpu_custom_call.1} parent=11 // pred_check
          %p415 = pneg %p207
        $region26: #{tpu_custom_call.1} parent=11 // pred_check_branch
          %417 = sbr.rel (%p415) target = $region28
        $region27: #{tpu_custom_call.1} parent=11 // pred_region
          %419 = vsyncadd [#allocation14], 0
          %s420 = sshll.u32 %s6, 4
          %s421 = int_to_ptr.hbm [resolvable:$true] %s420
          %s422 = sshll.u32 [#allocation15], 4
          %s423 = int_to_ptr.vmem [resolvable:$true] %s422
          %428 = dma.hbm_to_vmem [thread:$0]  %s421, 4096, %s423, [#allocation14], 256, 256, 16
        $region28: #{tpu_custom_call.1} parent=11 // pred_fallthru
          _
        // Predicated region
        $region29: #{tpu_custom_call.1} parent=11 // pred_check
          %p429 = pneg %p228
        $region30: #{tpu_custom_call.1} parent=11 // pred_check_branch
          %431 = sbr.rel (%p429) target = $region32
        $region31: #{tpu_custom_call.1} parent=11 // pred_region
          _
        $region32: #{tpu_custom_call.1} parent=11 // pred_fallthru
          _
        // Predicated region
        $region33: #{tpu_custom_call.1} parent=11 // pred_check
          %p432 = pneg %p249
        $region34: #{tpu_custom_call.1} parent=11 // pred_check_branch
          %434 = sbr.rel (%p432) target = $region36
        $region35: #{tpu_custom_call.1} parent=11 // pred_region
          %436 = vsyncadd [#allocation17], 0
          %s437 = sshll.u32 %s8, 4
          %s438 = int_to_ptr.hbm [resolvable:$true] %s437
          %s439 = sshll.u32 [#allocation16], 4
          %s440 = int_to_ptr.vmem [resolvable:$true] %s439
          %445 = dma.hbm_to_vmem [thread:$0]  %s438, 4096, %s440, [#allocation17], 128, 128, 8
        $region36: #{tpu_custom_call.1} parent=11 // pred_fallthru
          _
        // Predicated region
        $region37: #{tpu_custom_call.1} parent=11 // pred_check
          %p446 = pneg %p270
        $region38: #{tpu_custom_call.1} parent=11 // pred_check_branch
          %448 = sbr.rel (%p446) target = $region40
        $region39: #{tpu_custom_call.1} parent=11 // pred_region
          _
        $region40: #{tpu_custom_call.1} parent=11 // pred_fallthru
          _
        // Predicated region
        $region41: #{tpu_custom_call.1} parent=11 // pred_check
          %p449 = pneg %p291
        $region42: #{tpu_custom_call.1} parent=11 // pred_check_branch
          %451 = sbr.rel (%p449) target = $region44
        $region43: #{tpu_custom_call.1} parent=11 // pred_region
          _
        $region44: #{tpu_custom_call.1} parent=11 // pred_fallthru
          _
        // Predicated region
        $region45: #{tpu_custom_call.1} parent=11 // pred_check
          %p452 = pneg %p312
        $region46: #{tpu_custom_call.1} parent=11 // pred_check_branch
          %454 = sbr.rel (%p452) target = $region48
        $region47: #{tpu_custom_call.1} parent=11 // pred_region
          _
        $region48: #{tpu_custom_call.1} parent=11 // pred_fallthru
          _
        // Predicated region
        $region49: #{tpu_custom_call.1} parent=11 // pred_check
          %p455 = pneg %p333
        $region50: #{tpu_custom_call.1} parent=11 // pred_check_branch
          %457 = sbr.rel (%p455) target = $region52
        $region51: #{tpu_custom_call.1} parent=11 // pred_region
          _
        $region52: #{tpu_custom_call.1} parent=11 // pred_fallthru
          _
        // Predicated region
        $region53: #{tpu_custom_call.1} parent=11 // pred_check
          %p458 = pneg %p354
        $region54: #{tpu_custom_call.1} parent=11 // pred_check_branch
          %460 = sbr.rel (%p458) target = $region56
        $region55: #{tpu_custom_call.1} parent=11 // pred_region
          _
        $region56: #{tpu_custom_call.1} parent=11 // pred_fallthru
          _
      $region12: #{tpu_custom_call.1} parent=5 // pred_fallthru
        _
      %p461 = scmp.lt.s32.totalorder %s33, 4
      // Predicated region
      $region57: #{tpu_custom_call.1} parent=5 // pred_check
        %p462 = pneg %p461
      $region58: #{tpu_custom_call.1} parent=5 // pred_check_branch
        %464 = sbr.rel (%p462) target = $region60
      $region59: #{tpu_custom_call.1} parent=5 // pred_region
        // Predicated region
        $region61: #{tpu_custom_call.1} parent=59 // pred_check
          %p465 = pneg %p65
        $region62: #{tpu_custom_call.1} parent=59 // pred_check_branch
          %467 = sbr.rel (%p465) target = $region64
        $region63: #{tpu_custom_call.1} parent=59 // pred_region
          %s468 = sand.u32 %s55, 1
          %s469 = scalar_lea.sflag [#allocation8], %s468
          %s470 = sand.u32 %s55, 1
          %s471 = smul.addr %s470, 256
          %s472 = scalar_lea.vmem [#allocation7], %s471
          %s473 = smul.u32 32, %s40
          %475 = vsyncadd %s469, 0
          %s476 = smul.addr %s473, 8
          %s477 = scalar_lea.hbm %s0, %s476
          %s478 = sshll.u32 %s477, 4
          %s479 = int_to_ptr.hbm [resolvable:$true] %s478
          %s480 = sshll.u32 %s472, 4
          %s481 = int_to_ptr.vmem [resolvable:$true] %s480
          %486 = dma.hbm_to_vmem [thread:$0]  %s479, 4096, %s481, %s469, 128, 128, 8
        $region64: #{tpu_custom_call.1} parent=59 // pred_fallthru
          _
        // Predicated region
        $region65: #{tpu_custom_call.1} parent=59 // pred_check
          %p487 = pneg %p91
        $region66: #{tpu_custom_call.1} parent=59 // pred_check_branch
          %489 = sbr.rel (%p487) target = $region68
        $region67: #{tpu_custom_call.1} parent=59 // pred_region
          %s490 = sand.u32 %s33, 1
          %s491 = scalar_lea.sflag [#allocation11], %s490
          %s492 = sand.u32 %s81, 1
          %s493 = smul.addr %s492, 256
          %s494 = scalar_lea.vmem [#allocation10], %s493
          %s495 = smul.u32 32, %s41
          %497 = vsyncadd %s491, 0
          %s498 = smul.addr %s495, 8
          %s499 = scalar_lea.hbm %s1, %s498
          %s500 = sshll.u32 %s499, 4
          %s501 = int_to_ptr.hbm [resolvable:$true] %s500
          %s502 = sshll.u32 %s494, 4
          %s503 = int_to_ptr.vmem [resolvable:$true] %s502
          %508 = dma.hbm_to_vmem [thread:$0]  %s501, 4096, %s503, %s491, 128, 128, 8
        $region68: #{tpu_custom_call.1} parent=59 // pred_fallthru
          _
        // Predicated region
        $region69: #{tpu_custom_call.1} parent=59 // pred_check
          %p509 = pneg %p117
        $region70: #{tpu_custom_call.1} parent=59 // pred_check_branch
          %511 = sbr.rel (%p509) target = $region72
        $region71: #{tpu_custom_call.1} parent=59 // pred_region
          %s512 = sand.u32 %s33, 1
          %s513 = scalar_lea.sflag [#allocation11], %s512
          %s514 = sand.u32 %s107, 1
          %s515 = smul.addr %s514, 2
          %s516 = scalar_lea.vmem [#allocation12], %s515
          %s517 = smul.u32 2, %s41
          %519 = vsyncadd %s513, 0
          %s520 = scalar_lea.hbm %s2, %s517
          %s522 = sshll.u32 %s520, 4
          %s523 = int_to_ptr.hbm [resolvable:$true] %s522
          %s524 = sshll.u32 %s516, 4
          %s525 = int_to_ptr.vmem [resolvable:$true] %s524
          %527 = dma.hbm_to_vmem [thread:$0]  %s523, 32, %s525, %s513
        $region72: #{tpu_custom_call.1} parent=59 // pred_fallthru
          _
      $region60: #{tpu_custom_call.1} parent=5 // pred_fallthru
        _
      %p528 = scmp.le.s32.totalorder 1, %s33
      %p529 = scmp.lt.s32.totalorder %s33, 5
      %p530 = pnand %p528, %p529
      %p531 = pneg %p530
      // Predicated region
      $region73: #{tpu_custom_call.1} parent=5 // pred_check
        _
      $region74: #{tpu_custom_call.1} parent=5 // pred_check_branch
        %533 = sbr.rel (%p530) target = $region76
      $region75: #{tpu_custom_call.1} parent=5 // pred_region
        %s534 = ssub.s32 %s33, 1
        %s535 = sand.u32 %s58, 1
        %s536 = scalar_lea.sflag [#allocation8], %s535
        %s537 = sand.u32 %s58, 1
        %s538 = smul.addr %s537, 256
        %s539 = scalar_lea.vmem [#allocation7], %s538
        // Predicated region
        $region77: #{tpu_custom_call.1} parent=75 // pred_check
          %p540 = pneg %p71
        $region78: #{tpu_custom_call.1} parent=75 // pred_check_branch
          %542 = sbr.rel (%p540) target = $region80
        $region79: #{tpu_custom_call.1} parent=75 // pred_region
          %544 = dma.done %s536, 4096
        $region80: #{tpu_custom_call.1} parent=75 // pred_fallthru
          _
        %s545 = sand.u32 %s38, 1
        %s546 = scalar_lea.sflag [#allocation11], %s545
        %s547 = sand.u32 %s84, 1
        %s548 = smul.addr %s547, 256
        %s549 = scalar_lea.vmem [#allocation10], %s548
        // Predicated region
        $region81: #{tpu_custom_call.1} parent=75 // pred_check
          %p550 = pneg %p97
        $region82: #{tpu_custom_call.1} parent=75 // pred_check_branch
          %552 = sbr.rel (%p550) target = $region84
        $region83: #{tpu_custom_call.1} parent=75 // pred_region
          %554 = dma.done %s546, 4096
        $region84: #{tpu_custom_call.1} parent=75 // pred_fallthru
          _
        %s555 = sand.u32 %s38, 1
        %s556 = scalar_lea.sflag [#allocation11], %s555
        %s557 = sand.u32 %s110, 1
        %s558 = smul.addr %s557, 2
        %s559 = scalar_lea.vmem [#allocation12], %s558
        // Predicated region
        $region85: #{tpu_custom_call.1} parent=75 // pred_check
          %p560 = pneg %p123
        $region86: #{tpu_custom_call.1} parent=75 // pred_check_branch
          %562 = sbr.rel (%p560) target = $region88
        $region87: #{tpu_custom_call.1} parent=75 // pred_region
          %564 = dma.done %s556, 32
        $region88: #{tpu_custom_call.1} parent=75 // pred_fallthru
          _
        // Predicated region
        $region89: #{tpu_custom_call.1} parent=75 // pred_check
          %p565 = pneg %p144
        $region90: #{tpu_custom_call.1} parent=75 // pred_check_branch
          %567 = sbr.rel (%p565) target = $region92
        $region91: #{tpu_custom_call.1} parent=75 // pred_region
          %569 = dma.done [#allocation14], 2048
        $region92: #{tpu_custom_call.1} parent=75 // pred_fallthru
          _
        // Predicated region
        $region93: #{tpu_custom_call.1} parent=75 // pred_check
          %p570 = pneg %p207
        $region94: #{tpu_custom_call.1} parent=75 // pred_check_branch
          %572 = sbr.rel (%p570) target = $region96
        $region95: #{tpu_custom_call.1} parent=75 // pred_region
          %574 = dma.done [#allocation14], 4096
        $region96: #{tpu_custom_call.1} parent=75 // pred_fallthru
          _
        // Predicated region
        $region97: #{tpu_custom_call.1} parent=75 // pred_check
          %p575 = pneg %p249
        $region98: #{tpu_custom_call.1} parent=75 // pred_check_branch
          %577 = sbr.rel (%p575) target = $region100
        $region99: #{tpu_custom_call.1} parent=75 // pred_region
          %579 = dma.done [#allocation17], 4096
        $region100: #{tpu_custom_call.1} parent=75 // pred_fallthru
          _
        %s580 = sand.u32 %s58, 1
        %s581 = scalar_lea.sflag [#allocation8], %s580
        %s582 = sand.u32 %s58, 1
        %s583 = smul.addr %s582, 256
        %s584 = scalar_lea.vmem [#allocation7], %s583
        %p585 = pneg %p71
        %p586 = pneg %p68
        %s587 = sand.u32 %s38, 1
        %s588 = scalar_lea.sflag [#allocation11], %s587
        %s589 = sand.u32 %s84, 1
        %s590 = smul.addr %s589, 256
        %s591 = scalar_lea.vmem [#allocation10], %s590
        %p592 = pneg %p97
        %p593 = pneg %p94
        %s594 = sand.u32 %s38, 1
        %s595 = scalar_lea.sflag [#allocation11], %s594
        %s596 = sand.u32 %s110, 1
        %s597 = smul.addr %s596, 2
        %s598 = scalar_lea.vmem [#allocation12], %s597
        %p599 = pneg %p123
        %p600 = pneg %p120
        %p601 = pneg %p144
        %p602 = pneg %p141
        %p603 = pneg %p165
        %p604 = pneg %p162
        %p605 = pneg %p186
        %p606 = pneg %p183
        %p607 = pneg %p207
        %p608 = pneg %p204
        %p609 = pneg %p228
        %p610 = pneg %p225
        %p611 = pneg %p249
        %p612 = pneg %p246
        %p613 = pneg %p270
        %p614 = pneg %p267
        %p615 = pneg %p291
        %p616 = pneg %p288
        %p617 = pneg %p312
        %p618 = pneg %p309
        %p619 = pneg %p333
        %p620 = pneg %p330
        %p621 = pneg %p354
        %p622 = pneg %p351
        %p623 = pneg %p380
        %p624 = pneg %p377
        %s625 = sand.u32 %s367, 1
        %s626 = scalar_lea.sflag [#allocation9], %s625
        %s627 = sand.u32 %s367, 1
        %s628 = smul.addr %s627, 256
        %s629 = scalar_lea.vmem [#allocation18], %s628
        %s630 = smul.u32 32, %s42
        %s631 = smul.u32 32, %s43
        %s632 = smul.u32 2, %s43
        %s633 = smul.u32 32, %s42
        %p634 = scmp.eq.s32.totalorder %s43, 0
        // Predicated region
        $region101: #{tpu_custom_call.1} parent=75 // pred_check
          %p635 = pneg %p634
        $region102: #{tpu_custom_call.1} parent=75 // pred_check_branch
          %637 = sbr.rel (%p635) target = $region104
        $region103: #{tpu_custom_call.1} parent=75 // pred_region
          %v638 = vld [vmem:[%s539] sm:$0xff]
          %v639 = vld [vmem:[%s539 + $0x8] sm:$0xff]
          %v640 = vld [vmem:[%s539 + $0x10] sm:$0xff]
          %v641 = vld [vmem:[%s539 + $0x18] sm:$0xff]
          %v642 = vld [vmem:[%s539 + $0x20] sm:$0xff]
          %v643 = vld [vmem:[%s539 + $0x28] sm:$0xff]
          %v644 = vld [vmem:[%s539 + $0x30] sm:$0xff]
          %v645 = vld [vmem:[%s539 + $0x38] sm:$0xff]
          %v646 = vld [vmem:[%s539 + $0x40] sm:$0xff]
          %v647 = vld [vmem:[%s539 + $0x48] sm:$0xff]
          %v648 = vld [vmem:[%s539 + $0x50] sm:$0xff]
          %v649 = vld [vmem:[%s539 + $0x58] sm:$0xff]
          %v650 = vld [vmem:[%s539 + $0x60] sm:$0xff]
          %v651 = vld [vmem:[%s539 + $0x68] sm:$0xff]
          %v652 = vld [vmem:[%s539 + $0x70] sm:$0xff]
          %v653 = vld [vmem:[%s539 + $0x78] sm:$0xff]
          %v654 = vld [vmem:[%s539 + $0x80] sm:$0xff]
          %v655 = vld [vmem:[%s539 + $0x88] sm:$0xff]
          %v656 = vld [vmem:[%s539 + $0x90] sm:$0xff]
          %v657 = vld [vmem:[%s539 + $0x98] sm:$0xff]
          %v658 = vld [vmem:[%s539 + $0xa0] sm:$0xff]
          %v659 = vld [vmem:[%s539 + $0xa8] sm:$0xff]
          %v660 = vld [vmem:[%s539 + $0xb0] sm:$0xff]
          %v661 = vld [vmem:[%s539 + $0xb8] sm:$0xff]
          %v662 = vld [vmem:[%s539 + $0xc0] sm:$0xff]
          %v663 = vld [vmem:[%s539 + $0xc8] sm:$0xff]
          %v664 = vld [vmem:[%s539 + $0xd0] sm:$0xff]
          %v665 = vld [vmem:[%s539 + $0xd8] sm:$0xff]
          %v666 = vld [vmem:[%s539 + $0xe0] sm:$0xff]
          %v667 = vld [vmem:[%s539 + $0xe8] sm:$0xff]
          %v668 = vld [vmem:[%s539 + $0xf0] sm:$0xff]
          %v669 = vld [vmem:[%s539 + $0xf8] sm:$0xff]
          %v670 = vld [vmem:[#allocation13] sm:$0xff]
          %v671 = vld [vmem:[#allocation13 + $0x8] sm:$0xff]
          %v672 = vld [vmem:[#allocation13 + $0x10] sm:$0xff]
          %v673 = vld [vmem:[#allocation13 + $0x18] sm:$0xff]
          %v674 = vld [vmem:[#allocation13 + $0x20] sm:$0xff]
          %v675 = vld [vmem:[#allocation13 + $0x28] sm:$0xff]
          %v676 = vld [vmem:[#allocation13 + $0x30] sm:$0xff]
          %v677 = vld [vmem:[#allocation13 + $0x38] sm:$0xff]
          %v678 = vld [vmem:[#allocation13 + $0x40] sm:$0xff]
          %v679 = vld [vmem:[#allocation13 + $0x48] sm:$0xff]
          %v680 = vld [vmem:[#allocation13 + $0x50] sm:$0xff]
          %v681 = vld [vmem:[#allocation13 + $0x58] sm:$0xff]
          %v682 = vld [vmem:[#allocation13 + $0x60] sm:$0xff]
          %v683 = vld [vmem:[#allocation13 + $0x68] sm:$0xff]
          %v684 = vld [vmem:[#allocation13 + $0x70] sm:$0xff]
          %v685 = vld [vmem:[#allocation13 + $0x78] sm:$0xff]
          %v686 = vld [vmem:[%s4] sm:$0x1]
          %v688 = vperm.slane %v686, 0
          %690 = vmatpush.msra.mxu0 %v685
          %691 = vmatpush.msra.mxu0 %v684
          %692 = vmatpush.msra.mxu0 %v683
          %693 = vmatpush.msra.mxu0 %v682
          %694 = vmatpush.msra.mxu0 %v681
          %695 = vmatpush.msra.mxu0 %v680
          %696 = vmatpush.msra.mxu0 %v679
          %697 = vmatpush.msra.mxu0 %v678
          %698 = vmatpush.msra.mxu0 %v677
          %699 = vmatpush.msra.mxu0 %v676
          %700 = vmatpush.msra.mxu0 %v675
          %701 = vmatpush.msra.mxu0 %v674
          %702 = vmatpush.msra.mxu0 %v673
          %703 = vmatpush.msra.mxu0 %v672
          %704 = vmatpush.msra.mxu0 %v671
          %705 = vmatpush.msra.mxu0 %v670
          %706 = vmatmul.f32.gmra.mxu0 %v638
          %v707 = vpop.f32.mrf.mxu0
          %v708 = vadd.f32 %v688, %v707
          %709 = vmatmul.f32.gmra.mxu0 %v639
          %v710 = vpop.f32.mrf.mxu0
          %v711 = vadd.f32 %v688, %v710
          %712 = vmatmul.f32.gmra.mxu0 %v640
          %v713 = vpop.f32.mrf.mxu0
          %v714 = vadd.f32 %v688, %v713
          %715 = vmatmul.f32.gmra.mxu0 %v641
          %v716 = vpop.f32.mrf.mxu0
          %v717 = vadd.f32 %v688, %v716
          %718 = vmatmul.f32.gmra.mxu0 %v642
          %v719 = vpop.f32.mrf.mxu0
          %v720 = vadd.f32 %v688, %v719
          %721 = vmatmul.f32.gmra.mxu0 %v643
          %v722 = vpop.f32.mrf.mxu0
          %v723 = vadd.f32 %v688, %v722
          %724 = vmatmul.f32.gmra.mxu0 %v644
          %v725 = vpop.f32.mrf.mxu0
          %v726 = vadd.f32 %v688, %v725
          %727 = vmatmul.f32.gmra.mxu0 %v645
          %v728 = vpop.f32.mrf.mxu0
          %v729 = vadd.f32 %v688, %v728
          %730 = vmatmul.f32.gmra.mxu0 %v646
          %v731 = vpop.f32.mrf.mxu0
          %v732 = vadd.f32 %v688, %v731
          %733 = vmatmul.f32.gmra.mxu0 %v647
          %v734 = vpop.f32.mrf.mxu0
          %v735 = vadd.f32 %v688, %v734
          %736 = vmatmul.f32.gmra.mxu0 %v648
          %v737 = vpop.f32.mrf.mxu0
          %v738 = vadd.f32 %v688, %v737
          %739 = vmatmul.f32.gmra.mxu0 %v649
          %v740 = vpop.f32.mrf.mxu0
          %v741 = vadd.f32 %v688, %v740
          %742 = vmatmul.f32.gmra.mxu0 %v650
          %v743 = vpop.f32.mrf.mxu0
          %v744 = vadd.f32 %v688, %v743
          %745 = vmatmul.f32.gmra.mxu0 %v651
          %v746 = vpop.f32.mrf.mxu0
          %v747 = vadd.f32 %v688, %v746
          %748 = vmatmul.f32.gmra.mxu0 %v652
          %v749 = vpop.f32.mrf.mxu0
          %v750 = vadd.f32 %v688, %v749
          %751 = vmatmul.f32.gmra.mxu0 %v653
          %v752 = vpop.f32.mrf.mxu0
          %v753 = vadd.f32 %v688, %v752
          %754 = vmatmul.f32.gmra.mxu0 %v654
          %v755 = vpop.f32.mrf.mxu0
          %v756 = vadd.f32 %v688, %v755
          %757 = vmatmul.f32.gmra.mxu0 %v655
          %v758 = vpop.f32.mrf.mxu0
          %v759 = vadd.f32 %v688, %v758
          %760 = vmatmul.f32.gmra.mxu0 %v656
          %v761 = vpop.f32.mrf.mxu0
          %v762 = vadd.f32 %v688, %v761
          %763 = vmatmul.f32.gmra.mxu0 %v657
          %v764 = vpop.f32.mrf.mxu0
          %v765 = vadd.f32 %v688, %v764
          %766 = vmatmul.f32.gmra.mxu0 %v658
          %v767 = vpop.f32.mrf.mxu0
          %v768 = vadd.f32 %v688, %v767
          %769 = vmatmul.f32.gmra.mxu0 %v659
          %v770 = vpop.f32.mrf.mxu0
          %v771 = vadd.f32 %v688, %v770
          %772 = vmatmul.f32.gmra.mxu0 %v660
          %v773 = vpop.f32.mrf.mxu0
          %v774 = vadd.f32 %v688, %v773
          %775 = vmatmul.f32.gmra.mxu0 %v661
          %v776 = vpop.f32.mrf.mxu0
          %v777 = vadd.f32 %v688, %v776
          %778 = vmatmul.f32.gmra.mxu0 %v662
          %v779 = vpop.f32.mrf.mxu0
          %v780 = vadd.f32 %v688, %v779
          %781 = vmatmul.f32.gmra.mxu0 %v663
          %v782 = vpop.f32.mrf.mxu0
          %v783 = vadd.f32 %v688, %v782
          %784 = vmatmul.f32.gmra.mxu0 %v664
          %v785 = vpop.f32.mrf.mxu0
          %v786 = vadd.f32 %v688, %v785
          %787 = vmatmul.f32.gmra.mxu0 %v665
          %v788 = vpop.f32.mrf.mxu0
          %v789 = vadd.f32 %v688, %v788
          %790 = vmatmul.f32.gmra.mxu0 %v666
          %v791 = vpop.f32.mrf.mxu0
          %v792 = vadd.f32 %v688, %v791
          %793 = vmatmul.f32.gmra.mxu0 %v667
          %v794 = vpop.f32.mrf.mxu0
          %v795 = vadd.f32 %v688, %v794
          %796 = vmatmul.f32.gmra.mxu0 %v668
          %v797 = vpop.f32.mrf.mxu0
          %v798 = vadd.f32 %v688, %v797
          %799 = vmatmul.f32.gmra.mxu0 %v669
          %v800 = vpop.f32.mrf.mxu0
          %v801 = vadd.f32 %v688, %v800
          %802 = vdwg.mxu0
          %803 = vst [vmem:[#allocation2] sm:$0xff] %v708
          %804 = vst [vmem:[#allocation2 + $0x8] sm:$0xff] %v711
          %805 = vst [vmem:[#allocation2 + $0x10] sm:$0xff] %v714
          %806 = vst [vmem:[#allocation2 + $0x18] sm:$0xff] %v717
          %807 = vst [vmem:[#allocation2 + $0x20] sm:$0xff] %v720
          %808 = vst [vmem:[#allocation2 + $0x28] sm:$0xff] %v723
          %809 = vst [vmem:[#allocation2 + $0x30] sm:$0xff] %v726
          %810 = vst [vmem:[#allocation2 + $0x38] sm:$0xff] %v729
          %811 = vst [vmem:[#allocation2 + $0x40] sm:$0xff] %v732
          %812 = vst [vmem:[#allocation2 + $0x48] sm:$0xff] %v735
          %813 = vst [vmem:[#allocation2 + $0x50] sm:$0xff] %v738
          %814 = vst [vmem:[#allocation2 + $0x58] sm:$0xff] %v741
          %815 = vst [vmem:[#allocation2 + $0x60] sm:$0xff] %v744
          %816 = vst [vmem:[#allocation2 + $0x68] sm:$0xff] %v747
          %817 = vst [vmem:[#allocation2 + $0x70] sm:$0xff] %v750
          %818 = vst [vmem:[#allocation2 + $0x78] sm:$0xff] %v753
          %819 = vst [vmem:[#allocation2 + $0x80] sm:$0xff] %v756
          %820 = vst [vmem:[#allocation2 + $0x88] sm:$0xff] %v759
          %821 = vst [vmem:[#allocation2 + $0x90] sm:$0xff] %v762
          %822 = vst [vmem:[#allocation2 + $0x98] sm:$0xff] %v765
          %823 = vst [vmem:[#allocation2 + $0xa0] sm:$0xff] %v768
          %824 = vst [vmem:[#allocation2 + $0xa8] sm:$0xff] %v771
          %825 = vst [vmem:[#allocation2 + $0xb0] sm:$0xff] %v774
          %826 = vst [vmem:[#allocation2 + $0xb8] sm:$0xff] %v777
          %827 = vst [vmem:[#allocation2 + $0xc0] sm:$0xff] %v780
          %828 = vst [vmem:[#allocation2 + $0xc8] sm:$0xff] %v783
          %829 = vst [vmem:[#allocation2 + $0xd0] sm:$0xff] %v786
          %830 = vst [vmem:[#allocation2 + $0xd8] sm:$0xff] %v789
          %831 = vst [vmem:[#allocation2 + $0xe0] sm:$0xff] %v792
          %832 = vst [vmem:[#allocation2 + $0xe8] sm:$0xff] %v795
          %833 = vst [vmem:[#allocation2 + $0xf0] sm:$0xff] %v798
          %834 = vst [vmem:[#allocation2 + $0xf8] sm:$0xff] %v801
          %vm835 = vcmask 7168
          %836 = vst.msk [vmem:[#allocation3] sm:$0xff] %vm835, -inf
          %837 = vst.msk [vmem:[#allocation3 + $0x8] sm:$0xff] %vm835, -inf
          %838 = vst.msk [vmem:[#allocation3 + $0x10] sm:$0xff] %vm835, -inf
          %839 = vst.msk [vmem:[#allocation3 + $0x18] sm:$0xff] %vm835, -inf
          %840 = vst.msk [vmem:[#allocation3 + $0x20] sm:$0xff] %vm835, -inf
          %841 = vst.msk [vmem:[#allocation3 + $0x28] sm:$0xff] %vm835, -inf
          %842 = vst.msk [vmem:[#allocation3 + $0x30] sm:$0xff] %vm835, -inf
          %843 = vst.msk [vmem:[#allocation3 + $0x38] sm:$0xff] %vm835, -inf
          %844 = vst.msk [vmem:[#allocation3 + $0x40] sm:$0xff] %vm835, -inf
          %845 = vst.msk [vmem:[#allocation3 + $0x48] sm:$0xff] %vm835, -inf
          %846 = vst.msk [vmem:[#allocation3 + $0x50] sm:$0xff] %vm835, -inf
          %847 = vst.msk [vmem:[#allocation3 + $0x58] sm:$0xff] %vm835, -inf
          %848 = vst.msk [vmem:[#allocation3 + $0x60] sm:$0xff] %vm835, -inf
          %849 = vst.msk [vmem:[#allocation3 + $0x68] sm:$0xff] %vm835, -inf
          %850 = vst.msk [vmem:[#allocation3 + $0x70] sm:$0xff] %vm835, -inf
          %851 = vst.msk [vmem:[#allocation3 + $0x78] sm:$0xff] %vm835, -inf
          %852 = vst.msk [vmem:[#allocation3 + $0x80] sm:$0xff] %vm835, -inf
          %853 = vst.msk [vmem:[#allocation3 + $0x88] sm:$0xff] %vm835, -inf
          %854 = vst.msk [vmem:[#allocation3 + $0x90] sm:$0xff] %vm835, -inf
          %855 = vst.msk [vmem:[#allocation3 + $0x98] sm:$0xff] %vm835, -inf
          %856 = vst.msk [vmem:[#allocation3 + $0xa0] sm:$0xff] %vm835, -inf
          %857 = vst.msk [vmem:[#allocation3 + $0xa8] sm:$0xff] %vm835, -inf
          %858 = vst.msk [vmem:[#allocation3 + $0xb0] sm:$0xff] %vm835, -inf
          %859 = vst.msk [vmem:[#allocation3 + $0xb8] sm:$0xff] %vm835, -inf
          %860 = vst.msk [vmem:[#allocation3 + $0xc0] sm:$0xff] %vm835, -inf
          %861 = vst.msk [vmem:[#allocation3 + $0xc8] sm:$0xff] %vm835, -inf
          %862 = vst.msk [vmem:[#allocation3 + $0xd0] sm:$0xff] %vm835, -inf
          %863 = vst.msk [vmem:[#allocation3 + $0xd8] sm:$0xff] %vm835, -inf
          %864 = vst.msk [vmem:[#allocation3 + $0xe0] sm:$0xff] %vm835, -inf
          %865 = vst.msk [vmem:[#allocation3 + $0xe8] sm:$0xff] %vm835, -inf
          %866 = vst.msk [vmem:[#allocation3 + $0xf0] sm:$0xff] %vm835, -inf
          %867 = vst.msk [vmem:[#allocation3 + $0xf8] sm:$0xff] %vm835, -inf
          %868 = vst.msk [vmem:[#allocation4] sm:$0xff] %vm835, 0.0
          %869 = vst.msk [vmem:[#allocation4 + $0x8] sm:$0xff] %vm835, 0.0
          %870 = vst.msk [vmem:[#allocation4 + $0x10] sm:$0xff] %vm835, 0.0
          %871 = vst.msk [vmem:[#allocation4 + $0x18] sm:$0xff] %vm835, 0.0
          %872 = vst.msk [vmem:[#allocation4 + $0x20] sm:$0xff] %vm835, 0.0
          %873 = vst.msk [vmem:[#allocation4 + $0x28] sm:$0xff] %vm835, 0.0
          %874 = vst.msk [vmem:[#allocation4 + $0x30] sm:$0xff] %vm835, 0.0
          %875 = vst.msk [vmem:[#allocation4 + $0x38] sm:$0xff] %vm835, 0.0
          %876 = vst.msk [vmem:[#allocation4 + $0x40] sm:$0xff] %vm835, 0.0
          %877 = vst.msk [vmem:[#allocation4 + $0x48] sm:$0xff] %vm835, 0.0
          %878 = vst.msk [vmem:[#allocation4 + $0x50] sm:$0xff] %vm835, 0.0
          %879 = vst.msk [vmem:[#allocation4 + $0x58] sm:$0xff] %vm835, 0.0
          %880 = vst.msk [vmem:[#allocation4 + $0x60] sm:$0xff] %vm835, 0.0
          %881 = vst.msk [vmem:[#allocation4 + $0x68] sm:$0xff] %vm835, 0.0
          %882 = vst.msk [vmem:[#allocation4 + $0x70] sm:$0xff] %vm835, 0.0
          %883 = vst.msk [vmem:[#allocation4 + $0x78] sm:$0xff] %vm835, 0.0
          %884 = vst.msk [vmem:[#allocation4 + $0x80] sm:$0xff] %vm835, 0.0
          %885 = vst.msk [vmem:[#allocation4 + $0x88] sm:$0xff] %vm835, 0.0
          %886 = vst.msk [vmem:[#allocation4 + $0x90] sm:$0xff] %vm835, 0.0
          %887 = vst.msk [vmem:[#allocation4 + $0x98] sm:$0xff] %vm835, 0.0
          %888 = vst.msk [vmem:[#allocation4 + $0xa0] sm:$0xff] %vm835, 0.0
          %889 = vst.msk [vmem:[#allocation4 + $0xa8] sm:$0xff] %vm835, 0.0
          %890 = vst.msk [vmem:[#allocation4 + $0xb0] sm:$0xff] %vm835, 0.0
          %891 = vst.msk [vmem:[#allocation4 + $0xb8] sm:$0xff] %vm835, 0.0
          %892 = vst.msk [vmem:[#allocation4 + $0xc0] sm:$0xff] %vm835, 0.0
          %893 = vst.msk [vmem:[#allocation4 + $0xc8] sm:$0xff] %vm835, 0.0
          %894 = vst.msk [vmem:[#allocation4 + $0xd0] sm:$0xff] %vm835, 0.0
          %895 = vst.msk [vmem:[#allocation4 + $0xd8] sm:$0xff] %vm835, 0.0
          %896 = vst.msk [vmem:[#allocation4 + $0xe0] sm:$0xff] %vm835, 0.0
          %897 = vst.msk [vmem:[#allocation4 + $0xe8] sm:$0xff] %vm835, 0.0
          %898 = vst.msk [vmem:[#allocation4 + $0xf0] sm:$0xff] %vm835, 0.0
          %899 = vst.msk [vmem:[#allocation4 + $0xf8] sm:$0xff] %vm835, 0.0
          %900 = vst.msk [vmem:[#allocation5] sm:$0xff] %vm835, 0.0
          %901 = vst.msk [vmem:[#allocation5 + $0x8] sm:$0xff] %vm835, 0.0
          %902 = vst.msk [vmem:[#allocation5 + $0x10] sm:$0xff] %vm835, 0.0
          %903 = vst.msk [vmem:[#allocation5 + $0x18] sm:$0xff] %vm835, 0.0
          %904 = vst.msk [vmem:[#allocation5 + $0x20] sm:$0xff] %vm835, 0.0
          %905 = vst.msk [vmem:[#allocation5 + $0x28] sm:$0xff] %vm835, 0.0
          %906 = vst.msk [vmem:[#allocation5 + $0x30] sm:$0xff] %vm835, 0.0
          %907 = vst.msk [vmem:[#allocation5 + $0x38] sm:$0xff] %vm835, 0.0
          %908 = vst.msk [vmem:[#allocation5 + $0x40] sm:$0xff] %vm835, 0.0
          %909 = vst.msk [vmem:[#allocation5 + $0x48] sm:$0xff] %vm835, 0.0
          %910 = vst.msk [vmem:[#allocation5 + $0x50] sm:$0xff] %vm835, 0.0
          %911 = vst.msk [vmem:[#allocation5 + $0x58] sm:$0xff] %vm835, 0.0
          %912 = vst.msk [vmem:[#allocation5 + $0x60] sm:$0xff] %vm835, 0.0
          %913 = vst.msk [vmem:[#allocation5 + $0x68] sm:$0xff] %vm835, 0.0
          %914 = vst.msk [vmem:[#allocation5 + $0x70] sm:$0xff] %vm835, 0.0
          %915 = vst.msk [vmem:[#allocation5 + $0x78] sm:$0xff] %vm835, 0.0
          %916 = vst.msk [vmem:[#allocation5 + $0x80] sm:$0xff] %vm835, 0.0
          %917 = vst.msk [vmem:[#allocation5 + $0x88] sm:$0xff] %vm835, 0.0
          %918 = vst.msk [vmem:[#allocation5 + $0x90] sm:$0xff] %vm835, 0.0
          %919 = vst.msk [vmem:[#allocation5 + $0x98] sm:$0xff] %vm835, 0.0
          %920 = vst.msk [vmem:[#allocation5 + $0xa0] sm:$0xff] %vm835, 0.0
          %921 = vst.msk [vmem:[#allocation5 + $0xa8] sm:$0xff] %vm835, 0.0
          %922 = vst.msk [vmem:[#allocation5 + $0xb0] sm:$0xff] %vm835, 0.0
          %923 = vst.msk [vmem:[#allocation5 + $0xb8] sm:$0xff] %vm835, 0.0
          %924 = vst.msk [vmem:[#allocation5 + $0xc0] sm:$0xff] %vm835, 0.0
          %925 = vst.msk [vmem:[#allocation5 + $0xc8] sm:$0xff] %vm835, 0.0
          %926 = vst.msk [vmem:[#allocation5 + $0xd0] sm:$0xff] %vm835, 0.0
          %927 = vst.msk [vmem:[#allocation5 + $0xd8] sm:$0xff] %vm835, 0.0
          %928 = vst.msk [vmem:[#allocation5 + $0xe0] sm:$0xff] %vm835, 0.0
          %929 = vst.msk [vmem:[#allocation5 + $0xe8] sm:$0xff] %vm835, 0.0
          %930 = vst.msk [vmem:[#allocation5 + $0xf0] sm:$0xff] %vm835, 0.0
          %931 = vst.msk [vmem:[#allocation5 + $0xf8] sm:$0xff] %vm835, 0.0
        $region104: #{tpu_custom_call.1} parent=75 // pred_fallthru
          _
        %v932 = vld [vmem:[%s549] sm:$0xff]
        %v933 = vld [vmem:[%s549 + $0x8] sm:$0xff]
        %v934 = vld [vmem:[%s549 + $0x10] sm:$0xff]
        %v935 = vld [vmem:[%s549 + $0x18] sm:$0xff]
        %v936 = vld [vmem:[%s549 + $0x20] sm:$0xff]
        %v937 = vld [vmem:[%s549 + $0x28] sm:$0xff]
        %v938 = vld [vmem:[%s549 + $0x30] sm:$0xff]
        %v939 = vld [vmem:[%s549 + $0x38] sm:$0xff]
        %v940 = vld [vmem:[%s549 + $0x40] sm:$0xff]
        %v941 = vld [vmem:[%s549 + $0x48] sm:$0xff]
        %v942 = vld [vmem:[%s549 + $0x50] sm:$0xff]
        %v943 = vld [vmem:[%s549 + $0x58] sm:$0xff]
        %v944 = vld [vmem:[%s549 + $0x60] sm:$0xff]
        %v945 = vld [vmem:[%s549 + $0x68] sm:$0xff]
        %v946 = vld [vmem:[%s549 + $0x70] sm:$0xff]
        %v947 = vld [vmem:[%s549 + $0x78] sm:$0xff]
        %v948 = vld [vmem:[%s549 + $0x80] sm:$0xff]
        %v949 = vld [vmem:[%s549 + $0x88] sm:$0xff]
        %v950 = vld [vmem:[%s549 + $0x90] sm:$0xff]
        %v951 = vld [vmem:[%s549 + $0x98] sm:$0xff]
        %v952 = vld [vmem:[%s549 + $0xa0] sm:$0xff]
        %v953 = vld [vmem:[%s549 + $0xa8] sm:$0xff]
        %v954 = vld [vmem:[%s549 + $0xb0] sm:$0xff]
        %v955 = vld [vmem:[%s549 + $0xb8] sm:$0xff]
        %v956 = vld [vmem:[%s549 + $0xc0] sm:$0xff]
        %v957 = vld [vmem:[%s549 + $0xc8] sm:$0xff]
        %v958 = vld [vmem:[%s549 + $0xd0] sm:$0xff]
        %v959 = vld [vmem:[%s549 + $0xd8] sm:$0xff]
        %v960 = vld [vmem:[%s549 + $0xe0] sm:$0xff]
        %v961 = vld [vmem:[%s549 + $0xe8] sm:$0xff]
        %v962 = vld [vmem:[%s549 + $0xf0] sm:$0xff]
        %v963 = vld [vmem:[%s549 + $0xf8] sm:$0xff]
        %v964 = vld [vmem:[%s559] sm:$0x3]
        %v965 = vld [vmem:[#allocation2] sm:$0xff]
        %v966 = vld [vmem:[#allocation2 + $0x8] sm:$0xff]
        %v967 = vld [vmem:[#allocation2 + $0x10] sm:$0xff]
        %v968 = vld [vmem:[#allocation2 + $0x18] sm:$0xff]
        %v969 = vld [vmem:[#allocation2 + $0x20] sm:$0xff]
        %v970 = vld [vmem:[#allocation2 + $0x28] sm:$0xff]
        %v971 = vld [vmem:[#allocation2 + $0x30] sm:$0xff]
        %v972 = vld [vmem:[#allocation2 + $0x38] sm:$0xff]
        %v973 = vld [vmem:[#allocation2 + $0x40] sm:$0xff]
        %v974 = vld [vmem:[#allocation2 + $0x48] sm:$0xff]
        %v975 = vld [vmem:[#allocation2 + $0x50] sm:$0xff]
        %v976 = vld [vmem:[#allocation2 + $0x58] sm:$0xff]
        %v977 = vld [vmem:[#allocation2 + $0x60] sm:$0xff]
        %v978 = vld [vmem:[#allocation2 + $0x68] sm:$0xff]
        %v979 = vld [vmem:[#allocation2 + $0x70] sm:$0xff]
        %v980 = vld [vmem:[#allocation2 + $0x78] sm:$0xff]
        %v981 = vld [vmem:[#allocation2 + $0x80] sm:$0xff]
        %v982 = vld [vmem:[#allocation2 + $0x88] sm:$0xff]
        %v983 = vld [vmem:[#allocation2 + $0x90] sm:$0xff]
        %v984 = vld [vmem:[#allocation2 + $0x98] sm:$0xff]
        %v985 = vld [vmem:[#allocation2 + $0xa0] sm:$0xff]
        %v986 = vld [vmem:[#allocation2 + $0xa8] sm:$0xff]
        %v987 = vld [vmem:[#allocation2 + $0xb0] sm:$0xff]
        %v988 = vld [vmem:[#allocation2 + $0xb8] sm:$0xff]
        %v989 = vld [vmem:[#allocation2 + $0xc0] sm:$0xff]
        %v990 = vld [vmem:[#allocation2 + $0xc8] sm:$0xff]
        %v991 = vld [vmem:[#allocation2 + $0xd0] sm:$0xff]
        %v992 = vld [vmem:[#allocation2 + $0xd8] sm:$0xff]
        %v993 = vld [vmem:[#allocation2 + $0xe0] sm:$0xff]
        %v994 = vld [vmem:[#allocation2 + $0xe8] sm:$0xff]
        %v995 = vld [vmem:[#allocation2 + $0xf0] sm:$0xff]
        %v996 = vld [vmem:[#allocation2 + $0xf8] sm:$0xff]
        %997 = vmatpush.xpose.msra.mxu0 %v947
        %998 = vmatpush.xpose.msra.mxu0 %v946
        %999 = vmatpush.xpose.msra.mxu0 %v945
        %1000 = vmatpush.xpose.msra.mxu0 %v944
        %1001 = vmatpush.xpose.msra.mxu0 %v943
        %1002 = vmatpush.xpose.msra.mxu0 %v942
        %1003 = vmatpush.xpose.msra.mxu0 %v941
        %1004 = vmatpush.xpose.msra.mxu0 %v940
        %1005 = vmatpush.xpose.msra.mxu0 %v939
        %1006 = vmatpush.xpose.msra.mxu0 %v938
        %1007 = vmatpush.xpose.msra.mxu0 %v937
        %1008 = vmatpush.xpose.msra.mxu0 %v936
        %1009 = vmatpush.xpose.msra.mxu0 %v935
        %1010 = vmatpush.xpose.msra.mxu0 %v934
        %1011 = vmatpush.xpose.msra.mxu0 %v933
        %1012 = vmatpush.xpose.msra.mxu0 %v932
        %1013 = vmatmul.f32.gmra.mxu0 %v965
        %v1014 = vpop.f32.mrf.mxu0
        %v1015 = vadd.f32 0.0, %v1014
        %1016 = vmatmul.f32.gmra.mxu0 %v966
        %v1017 = vpop.f32.mrf.mxu0
        %v1018 = vadd.f32 0.0, %v1017
        %1019 = vmatmul.f32.gmra.mxu0 %v967
        %v1020 = vpop.f32.mrf.mxu0
        %v1021 = vadd.f32 0.0, %v1020
        %1022 = vmatmul.f32.gmra.mxu0 %v968
        %v1023 = vpop.f32.mrf.mxu0
        %v1024 = vadd.f32 0.0, %v1023
        %1025 = vmatmul.f32.gmra.mxu0 %v969
        %v1026 = vpop.f32.mrf.mxu0
        %v1027 = vadd.f32 0.0, %v1026
        %1028 = vmatmul.f32.gmra.mxu0 %v970
        %v1029 = vpop.f32.mrf.mxu0
        %v1030 = vadd.f32 0.0, %v1029
        %1031 = vmatmul.f32.gmra.mxu0 %v971
        %v1032 = vpop.f32.mrf.mxu0
        %v1033 = vadd.f32 0.0, %v1032
        %1034 = vmatmul.f32.gmra.mxu0 %v972
        %v1035 = vpop.f32.mrf.mxu0
        %v1036 = vadd.f32 0.0, %v1035
        %1037 = vmatmul.f32.gmra.mxu0 %v973
        %v1038 = vpop.f32.mrf.mxu0
        %v1039 = vadd.f32 0.0, %v1038
        %1040 = vmatmul.f32.gmra.mxu0 %v974
        %v1041 = vpop.f32.mrf.mxu0
        %v1042 = vadd.f32 0.0, %v1041
        %1043 = vmatmul.f32.gmra.mxu0 %v975
        %v1044 = vpop.f32.mrf.mxu0
        %v1045 = vadd.f32 0.0, %v1044
        %1046 = vmatmul.f32.gmra.mxu0 %v976
        %v1047 = vpop.f32.mrf.mxu0
        %v1048 = vadd.f32 0.0, %v1047
        %1049 = vmatmul.f32.gmra.mxu0 %v977
        %v1050 = vpop.f32.mrf.mxu0
        %v1051 = vadd.f32 0.0, %v1050
        %1052 = vmatmul.f32.gmra.mxu0 %v978
        %v1053 = vpop.f32.mrf.mxu0
        %v1054 = vadd.f32 0.0, %v1053
        %1055 = vmatmul.f32.gmra.mxu0 %v979
        %v1056 = vpop.f32.mrf.mxu0
        %v1057 = vadd.f32 0.0, %v1056
        %1058 = vmatmul.f32.gmra.mxu0 %v980
        %v1059 = vpop.f32.mrf.mxu0
        %v1060 = vadd.f32 0.0, %v1059
        %1061 = vmatmul.f32.gmra.mxu0 %v981
        %v1062 = vpop.f32.mrf.mxu0
        %v1063 = vadd.f32 0.0, %v1062
        %1064 = vmatmul.f32.gmra.mxu0 %v982
        %v1065 = vpop.f32.mrf.mxu0
        %v1066 = vadd.f32 0.0, %v1065
        %1067 = vmatmul.f32.gmra.mxu0 %v983
        %v1068 = vpop.f32.mrf.mxu0
        %v1069 = vadd.f32 0.0, %v1068
        %1070 = vmatmul.f32.gmra.mxu0 %v984
        %v1071 = vpop.f32.mrf.mxu0
        %v1072 = vadd.f32 0.0, %v1071
        %1073 = vmatmul.f32.gmra.mxu0 %v985
        %v1074 = vpop.f32.mrf.mxu0
        %v1075 = vadd.f32 0.0, %v1074
        %1076 = vmatmul.f32.gmra.mxu0 %v986
        %v1077 = vpop.f32.mrf.mxu0
        %v1078 = vadd.f32 0.0, %v1077
        %1079 = vmatmul.f32.gmra.mxu0 %v987
        %v1080 = vpop.f32.mrf.mxu0
        %v1081 = vadd.f32 0.0, %v1080
        %1082 = vmatmul.f32.gmra.mxu0 %v988
        %v1083 = vpop.f32.mrf.mxu0
        %v1084 = vadd.f32 0.0, %v1083
        %1085 = vmatmul.f32.gmra.mxu0 %v989
        %v1086 = vpop.f32.mrf.mxu0
        %v1087 = vadd.f32 0.0, %v1086
        %1088 = vmatmul.f32.gmra.mxu0 %v990
        %v1089 = vpop.f32.mrf.mxu0
        %v1090 = vadd.f32 0.0, %v1089
        %1091 = vmatmul.f32.gmra.mxu0 %v991
        %v1092 = vpop.f32.mrf.mxu0
        %v1093 = vadd.f32 0.0, %v1092
        %1094 = vmatmul.f32.gmra.mxu0 %v992
        %v1095 = vpop.f32.mrf.mxu0
        %v1096 = vadd.f32 0.0, %v1095
        %1097 = vmatmul.f32.gmra.mxu0 %v993
        %v1098 = vpop.f32.mrf.mxu0
        %v1099 = vadd.f32 0.0, %v1098
        %1100 = vmatmul.f32.gmra.mxu0 %v994
        %v1101 = vpop.f32.mrf.mxu0
        %v1102 = vadd.f32 0.0, %v1101
        %1103 = vmatmul.f32.gmra.mxu0 %v995
        %v1104 = vpop.f32.mrf.mxu0
        %v1105 = vadd.f32 0.0, %v1104
        %1106 = vmatmul.f32.gmra.mxu0 %v996
        %v1107 = vpop.f32.mrf.mxu0
        %v1108 = vadd.f32 0.0, %v1107
        %1109 = vdwg.mxu0
        %1110 = vmatpush.xpose.msra.mxu0 %v963
        %1111 = vmatpush.xpose.msra.mxu0 %v962
        %1112 = vmatpush.xpose.msra.mxu0 %v961
        %1113 = vmatpush.xpose.msra.mxu0 %v960
        %1114 = vmatpush.xpose.msra.mxu0 %v959
        %1115 = vmatpush.xpose.msra.mxu0 %v958
        %1116 = vmatpush.xpose.msra.mxu0 %v957
        %1117 = vmatpush.xpose.msra.mxu0 %v956
        %1118 = vmatpush.xpose.msra.mxu0 %v955
        %1119 = vmatpush.xpose.msra.mxu0 %v954
        %1120 = vmatpush.xpose.msra.mxu0 %v953
        %1121 = vmatpush.xpose.msra.mxu0 %v952
        %1122 = vmatpush.xpose.msra.mxu0 %v951
        %1123 = vmatpush.xpose.msra.mxu0 %v950
        %1124 = vmatpush.xpose.msra.mxu0 %v949
        %1125 = vmatpush.xpose.msra.mxu0 %v948
        %1126 = vmatmul.f32.gmra.mxu0 %v965
        %v1127 = vpop.f32.mrf.mxu0
        %v1128 = vadd.f32 0.0, %v1127
        %1129 = vmatmul.f32.gmra.mxu0 %v966
        %v1130 = vpop.f32.mrf.mxu0
        %v1131 = vadd.f32 0.0, %v1130
        %1132 = vmatmul.f32.gmra.mxu0 %v967
        %v1133 = vpop.f32.mrf.mxu0
        %v1134 = vadd.f32 0.0, %v1133
        %1135 = vmatmul.f32.gmra.mxu0 %v968
        %v1136 = vpop.f32.mrf.mxu0
        %v1137 = vadd.f32 0.0, %v1136
        %1138 = vmatmul.f32.gmra.mxu0 %v969
        %v1139 = vpop.f32.mrf.mxu0
        %v1140 = vadd.f32 0.0, %v1139
        %1141 = vmatmul.f32.gmra.mxu0 %v970
        %v1142 = vpop.f32.mrf.mxu0
        %v1143 = vadd.f32 0.0, %v1142
        %1144 = vmatmul.f32.gmra.mxu0 %v971
        %v1145 = vpop.f32.mrf.mxu0
        %v1146 = vadd.f32 0.0, %v1145
        %1147 = vmatmul.f32.gmra.mxu0 %v972
        %v1148 = vpop.f32.mrf.mxu0
        %v1149 = vadd.f32 0.0, %v1148
        %1150 = vmatmul.f32.gmra.mxu0 %v973
        %v1151 = vpop.f32.mrf.mxu0
        %v1152 = vadd.f32 0.0, %v1151
        %1153 = vmatmul.f32.gmra.mxu0 %v974
        %v1154 = vpop.f32.mrf.mxu0
        %v1155 = vadd.f32 0.0, %v1154
        %1156 = vmatmul.f32.gmra.mxu0 %v975
        %v1157 = vpop.f32.mrf.mxu0
        %v1158 = vadd.f32 0.0, %v1157
        %1159 = vmatmul.f32.gmra.mxu0 %v976
        %v1160 = vpop.f32.mrf.mxu0
        %v1161 = vadd.f32 0.0, %v1160
        %1162 = vmatmul.f32.gmra.mxu0 %v977
        %v1163 = vpop.f32.mrf.mxu0
        %v1164 = vadd.f32 0.0, %v1163
        %1165 = vmatmul.f32.gmra.mxu0 %v978
        %v1166 = vpop.f32.mrf.mxu0
        %v1167 = vadd.f32 0.0, %v1166
        %1168 = vmatmul.f32.gmra.mxu0 %v979
        %v1169 = vpop.f32.mrf.mxu0
        %v1170 = vadd.f32 0.0, %v1169
        %1171 = vmatmul.f32.gmra.mxu0 %v980
        %v1172 = vpop.f32.mrf.mxu0
        %v1173 = vadd.f32 0.0, %v1172
        %1174 = vmatmul.f32.gmra.mxu0 %v981
        %v1175 = vpop.f32.mrf.mxu0
        %v1176 = vadd.f32 0.0, %v1175
        %1177 = vmatmul.f32.gmra.mxu0 %v982
        %v1178 = vpop.f32.mrf.mxu0
        %v1179 = vadd.f32 0.0, %v1178
        %1180 = vmatmul.f32.gmra.mxu0 %v983
        %v1181 = vpop.f32.mrf.mxu0
        %v1182 = vadd.f32 0.0, %v1181
        %1183 = vmatmul.f32.gmra.mxu0 %v984
        %v1184 = vpop.f32.mrf.mxu0
        %v1185 = vadd.f32 0.0, %v1184
        %1186 = vmatmul.f32.gmra.mxu0 %v985
        %v1187 = vpop.f32.mrf.mxu0
        %v1188 = vadd.f32 0.0, %v1187
        %1189 = vmatmul.f32.gmra.mxu0 %v986
        %v1190 = vpop.f32.mrf.mxu0
        %v1191 = vadd.f32 0.0, %v1190
        %1192 = vmatmul.f32.gmra.mxu0 %v987
        %v1193 = vpop.f32.mrf.mxu0
        %v1194 = vadd.f32 0.0, %v1193
        %1195 = vmatmul.f32.gmra.mxu0 %v988
        %v1196 = vpop.f32.mrf.mxu0
        %v1197 = vadd.f32 0.0, %v1196
        %1198 = vmatmul.f32.gmra.mxu0 %v989
        %v1199 = vpop.f32.mrf.mxu0
        %v1200 = vadd.f32 0.0, %v1199
        %1201 = vmatmul.f32.gmra.mxu0 %v990
        %v1202 = vpop.f32.mrf.mxu0
        %v1203 = vadd.f32 0.0, %v1202
        %1204 = vmatmul.f32.gmra.mxu0 %v991
        %v1205 = vpop.f32.mrf.mxu0
        %v1206 = vadd.f32 0.0, %v1205
        %1207 = vmatmul.f32.gmra.mxu0 %v992
        %v1208 = vpop.f32.mrf.mxu0
        %v1209 = vadd.f32 0.0, %v1208
        %1210 = vmatmul.f32.gmra.mxu0 %v993
        %v1211 = vpop.f32.mrf.mxu0
        %v1212 = vadd.f32 0.0, %v1211
        %1213 = vmatmul.f32.gmra.mxu0 %v994
        %v1214 = vpop.f32.mrf.mxu0
        %v1215 = vadd.f32 0.0, %v1214
        %1216 = vmatmul.f32.gmra.mxu0 %v995
        %v1217 = vpop.f32.mrf.mxu0
        %v1218 = vadd.f32 0.0, %v1217
        %1219 = vmatmul.f32.gmra.mxu0 %v996
        %v1220 = vpop.f32.mrf.mxu0
        %v1221 = vadd.f32 0.0, %v1220
        %1222 = vdwg.mxu0
        %v1223 = vmul.f32 %v1015, 0.088388346
        %v1224 = vmul.f32 %v1128, 0.088388346
        %v1225 = vmul.f32 %v1018, 0.088388346
        %v1226 = vmul.f32 %v1131, 0.088388346
        %v1227 = vmul.f32 %v1021, 0.088388346
        %v1228 = vmul.f32 %v1134, 0.088388346
        %v1229 = vmul.f32 %v1024, 0.088388346
        %v1230 = vmul.f32 %v1137, 0.088388346
        %v1231 = vmul.f32 %v1027, 0.088388346
        %v1232 = vmul.f32 %v1140, 0.088388346
        %v1233 = vmul.f32 %v1030, 0.088388346
        %v1234 = vmul.f32 %v1143, 0.088388346
        %v1235 = vmul.f32 %v1033, 0.088388346
        %v1236 = vmul.f32 %v1146, 0.088388346
        %v1237 = vmul.f32 %v1036, 0.088388346
        %v1238 = vmul.f32 %v1149, 0.088388346
        %v1239 = vmul.f32 %v1039, 0.088388346
        %v1240 = vmul.f32 %v1152, 0.088388346
        %v1241 = vmul.f32 %v1042, 0.088388346
        %v1242 = vmul.f32 %v1155, 0.088388346
        %v1243 = vmul.f32 %v1045, 0.088388346
        %v1244 = vmul.f32 %v1158, 0.088388346
        %v1245 = vmul.f32 %v1048, 0.088388346
        %v1246 = vmul.f32 %v1161, 0.088388346
        %v1247 = vmul.f32 %v1051, 0.088388346
        %v1248 = vmul.f32 %v1164, 0.088388346
        %v1249 = vmul.f32 %v1054, 0.088388346
        %v1250 = vmul.f32 %v1167, 0.088388346
        %v1251 = vmul.f32 %v1057, 0.088388346
        %v1252 = vmul.f32 %v1170, 0.088388346
        %v1253 = vmul.f32 %v1060, 0.088388346
        %v1254 = vmul.f32 %v1173, 0.088388346
        %v1255 = vmul.f32 %v1063, 0.088388346
        %v1256 = vmul.f32 %v1176, 0.088388346
        %v1257 = vmul.f32 %v1066, 0.088388346
        %v1258 = vmul.f32 %v1179, 0.088388346
        %v1259 = vmul.f32 %v1069, 0.088388346
        %v1260 = vmul.f32 %v1182, 0.088388346
        %v1261 = vmul.f32 %v1072, 0.088388346
        %v1262 = vmul.f32 %v1185, 0.088388346
        %v1263 = vmul.f32 %v1075, 0.088388346
        %v1264 = vmul.f32 %v1188, 0.088388346
        %v1265 = vmul.f32 %v1078, 0.088388346
        %v1266 = vmul.f32 %v1191, 0.088388346
        %v1267 = vmul.f32 %v1081, 0.088388346
        %v1268 = vmul.f32 %v1194, 0.088388346
        %v1269 = vmul.f32 %v1084, 0.088388346
        %v1270 = vmul.f32 %v1197, 0.088388346
        %v1271 = vmul.f32 %v1087, 0.088388346
        %v1272 = vmul.f32 %v1200, 0.088388346
        %v1273 = vmul.f32 %v1090, 0.088388346
        %v1274 = vmul.f32 %v1203, 0.088388346
        %v1275 = vmul.f32 %v1093, 0.088388346
        %v1276 = vmul.f32 %v1206, 0.088388346
        %v1277 = vmul.f32 %v1096, 0.088388346
        %v1278 = vmul.f32 %v1209, 0.088388346
        %v1279 = vmul.f32 %v1099, 0.088388346
        %v1280 = vmul.f32 %v1212, 0.088388346
        %v1281 = vmul.f32 %v1102, 0.088388346
        %v1282 = vmul.f32 %v1215, 0.088388346
        %v1283 = vmul.f32 %v1105, 0.088388346
        %v1284 = vmul.f32 %v1218, 0.088388346
        %v1285 = vmul.f32 %v1108, 0.088388346
        %v1286 = vmul.f32 %v1221, 0.088388346
        %v1287 = vld [vmem:[#allocation3] sm:$0xff]
        %v1288 = vld [vmem:[#allocation3 + $0x8] sm:$0xff]
        %v1289 = vld [vmem:[#allocation3 + $0x10] sm:$0xff]
        %v1290 = vld [vmem:[#allocation3 + $0x18] sm:$0xff]
        %v1291 = vld [vmem:[#allocation3 + $0x20] sm:$0xff]
        %v1292 = vld [vmem:[#allocation3 + $0x28] sm:$0xff]
        %v1293 = vld [vmem:[#allocation3 + $0x30] sm:$0xff]
        %v1294 = vld [vmem:[#allocation3 + $0x38] sm:$0xff]
        %v1295 = vld [vmem:[#allocation3 + $0x40] sm:$0xff]
        %v1296 = vld [vmem:[#allocation3 + $0x48] sm:$0xff]
        %v1297 = vld [vmem:[#allocation3 + $0x50] sm:$0xff]
        %v1298 = vld [vmem:[#allocation3 + $0x58] sm:$0xff]
        %v1299 = vld [vmem:[#allocation3 + $0x60] sm:$0xff]
        %v1300 = vld [vmem:[#allocation3 + $0x68] sm:$0xff]
        %v1301 = vld [vmem:[#allocation3 + $0x70] sm:$0xff]
        %v1302 = vld [vmem:[#allocation3 + $0x78] sm:$0xff]
        %v1303 = vld [vmem:[#allocation3 + $0x80] sm:$0xff]
        %v1304 = vld [vmem:[#allocation3 + $0x88] sm:$0xff]
        %v1305 = vld [vmem:[#allocation3 + $0x90] sm:$0xff]
        %v1306 = vld [vmem:[#allocation3 + $0x98] sm:$0xff]
        %v1307 = vld [vmem:[#allocation3 + $0xa0] sm:$0xff]
        %v1308 = vld [vmem:[#allocation3 + $0xa8] sm:$0xff]
        %v1309 = vld [vmem:[#allocation3 + $0xb0] sm:$0xff]
        %v1310 = vld [vmem:[#allocation3 + $0xb8] sm:$0xff]
        %v1311 = vld [vmem:[#allocation3 + $0xc0] sm:$0xff]
        %v1312 = vld [vmem:[#allocation3 + $0xc8] sm:$0xff]
        %v1313 = vld [vmem:[#allocation3 + $0xd0] sm:$0xff]
        %v1314 = vld [vmem:[#allocation3 + $0xd8] sm:$0xff]
        %v1315 = vld [vmem:[#allocation3 + $0xe0] sm:$0xff]
        %v1316 = vld [vmem:[#allocation3 + $0xe8] sm:$0xff]
        %v1317 = vld [vmem:[#allocation3 + $0xf0] sm:$0xff]
        %v1318 = vld [vmem:[#allocation3 + $0xf8] sm:$0xff]
        %v1319 = vmax.f32 %v1223, %v1224
        %1320 = vmax.xlane.f32.xlu0 %v1319
        %v1321 = vpop.xlane.xlu0 %1320
        %v1322 = vmax.f32 %v1225, %v1226
        %1323 = vmax.xlane.f32.xlu0 %v1322
        %v1324 = vpop.xlane.xlu0 %1323
        %v1325 = vmax.f32 %v1227, %v1228
        %1326 = vmax.xlane.f32.xlu0 %v1325
        %v1327 = vpop.xlane.xlu0 %1326
        %v1328 = vmax.f32 %v1229, %v1230
        %1329 = vmax.xlane.f32.xlu0 %v1328
        %v1330 = vpop.xlane.xlu0 %1329
        %v1331 = vmax.f32 %v1231, %v1232
        %1332 = vmax.xlane.f32.xlu0 %v1331
        %v1333 = vpop.xlane.xlu0 %1332
        %v1334 = vmax.f32 %v1233, %v1234
        %1335 = vmax.xlane.f32.xlu0 %v1334
        %v1336 = vpop.xlane.xlu0 %1335
        %v1337 = vmax.f32 %v1235, %v1236
        %1338 = vmax.xlane.f32.xlu0 %v1337
        %v1339 = vpop.xlane.xlu0 %1338
        %v1340 = vmax.f32 %v1237, %v1238
        %1341 = vmax.xlane.f32.xlu0 %v1340
        %v1342 = vpop.xlane.xlu0 %1341
        %v1343 = vmax.f32 %v1239, %v1240
        %1344 = vmax.xlane.f32.xlu0 %v1343
        %v1345 = vpop.xlane.xlu0 %1344
        %v1346 = vmax.f32 %v1241, %v1242
        %1347 = vmax.xlane.f32.xlu0 %v1346
        %v1348 = vpop.xlane.xlu0 %1347
        %v1349 = vmax.f32 %v1243, %v1244
        %1350 = vmax.xlane.f32.xlu0 %v1349
        %v1351 = vpop.xlane.xlu0 %1350
        %v1352 = vmax.f32 %v1245, %v1246
        %1353 = vmax.xlane.f32.xlu0 %v1352
        %v1354 = vpop.xlane.xlu0 %1353
        %v1355 = vmax.f32 %v1247, %v1248
        %1356 = vmax.xlane.f32.xlu0 %v1355
        %v1357 = vpop.xlane.xlu0 %1356
        %v1358 = vmax.f32 %v1249, %v1250
        %1359 = vmax.xlane.f32.xlu0 %v1358
        %v1360 = vpop.xlane.xlu0 %1359
        %v1361 = vmax.f32 %v1251, %v1252
        %1362 = vmax.xlane.f32.xlu0 %v1361
        %v1363 = vpop.xlane.xlu0 %1362
        %v1364 = vmax.f32 %v1253, %v1254
        %1365 = vmax.xlane.f32.xlu0 %v1364
        %v1366 = vpop.xlane.xlu0 %1365
        %v1367 = vmax.f32 %v1255, %v1256
        %1368 = vmax.xlane.f32.xlu0 %v1367
        %v1369 = vpop.xlane.xlu0 %1368
        %v1370 = vmax.f32 %v1257, %v1258
        %1371 = vmax.xlane.f32.xlu0 %v1370
        %v1372 = vpop.xlane.xlu0 %1371
        %v1373 = vmax.f32 %v1259, %v1260
        %1374 = vmax.xlane.f32.xlu0 %v1373
        %v1375 = vpop.xlane.xlu0 %1374
        %v1376 = vmax.f32 %v1261, %v1262
        %1377 = vmax.xlane.f32.xlu0 %v1376
        %v1378 = vpop.xlane.xlu0 %1377
        %v1379 = vmax.f32 %v1263, %v1264
        %1380 = vmax.xlane.f32.xlu0 %v1379
        %v1381 = vpop.xlane.xlu0 %1380
        %v1382 = vmax.f32 %v1265, %v1266
        %1383 = vmax.xlane.f32.xlu0 %v1382
        %v1384 = vpop.xlane.xlu0 %1383
        %v1385 = vmax.f32 %v1267, %v1268
        %1386 = vmax.xlane.f32.xlu0 %v1385
        %v1387 = vpop.xlane.xlu0 %1386
        %v1388 = vmax.f32 %v1269, %v1270
        %1389 = vmax.xlane.f32.xlu0 %v1388
        %v1390 = vpop.xlane.xlu0 %1389
        %v1391 = vmax.f32 %v1271, %v1272
        %1392 = vmax.xlane.f32.xlu0 %v1391
        %v1393 = vpop.xlane.xlu0 %1392
        %v1394 = vmax.f32 %v1273, %v1274
        %1395 = vmax.xlane.f32.xlu0 %v1394
        %v1396 = vpop.xlane.xlu0 %1395
        %v1397 = vmax.f32 %v1275, %v1276
        %1398 = vmax.xlane.f32.xlu0 %v1397
        %v1399 = vpop.xlane.xlu0 %1398
        %v1400 = vmax.f32 %v1277, %v1278
        %1401 = vmax.xlane.f32.xlu0 %v1400
        %v1402 = vpop.xlane.xlu0 %1401
        %v1403 = vmax.f32 %v1279, %v1280
        %1404 = vmax.xlane.f32.xlu0 %v1403
        %v1405 = vpop.xlane.xlu0 %1404
        %v1406 = vmax.f32 %v1281, %v1282
        %1407 = vmax.xlane.f32.xlu0 %v1406
        %v1408 = vpop.xlane.xlu0 %1407
        %v1409 = vmax.f32 %v1283, %v1284
        %1410 = vmax.xlane.f32.xlu0 %v1409
        %v1411 = vpop.xlane.xlu0 %1410
        %v1412 = vmax.f32 %v1285, %v1286
        %1413 = vmax.xlane.f32.xlu0 %v1412
        %v1414 = vpop.xlane.xlu0 %1413
        %v1415 = vmax.f32 %v1287, %v1321
        %v1416 = vmax.f32 %v1288, %v1324
        %v1417 = vmax.f32 %v1289, %v1327
        %v1418 = vmax.f32 %v1290, %v1330
        %v1419 = vmax.f32 %v1291, %v1333
        %v1420 = vmax.f32 %v1292, %v1336
        %v1421 = vmax.f32 %v1293, %v1339
        %v1422 = vmax.f32 %v1294, %v1342
        %v1423 = vmax.f32 %v1295, %v1345
        %v1424 = vmax.f32 %v1296, %v1348
        %v1425 = vmax.f32 %v1297, %v1351
        %v1426 = vmax.f32 %v1298, %v1354
        %v1427 = vmax.f32 %v1299, %v1357
        %v1428 = vmax.f32 %v1300, %v1360
        %v1429 = vmax.f32 %v1301, %v1363
        %v1430 = vmax.f32 %v1302, %v1366
        %v1431 = vmax.f32 %v1303, %v1369
        %v1432 = vmax.f32 %v1304, %v1372
        %v1433 = vmax.f32 %v1305, %v1375
        %v1434 = vmax.f32 %v1306, %v1378
        %v1435 = vmax.f32 %v1307, %v1381
        %v1436 = vmax.f32 %v1308, %v1384
        %v1437 = vmax.f32 %v1309, %v1387
        %v1438 = vmax.f32 %v1310, %v1390
        %v1439 = vmax.f32 %v1311, %v1393
        %v1440 = vmax.f32 %v1312, %v1396
        %v1441 = vmax.f32 %v1313, %v1399
        %v1442 = vmax.f32 %v1314, %v1402
        %v1443 = vmax.f32 %v1315, %v1405
        %v1444 = vmax.f32 %v1316, %v1408
        %v1445 = vmax.f32 %v1317, %v1411
        %v1446 = vmax.f32 %v1318, %v1414
        %v1447 = vsub.f32 %v1287, %v1415
        %v1448 = vsub.f32 %v1288, %v1416
        %v1449 = vsub.f32 %v1289, %v1417
        %v1450 = vsub.f32 %v1290, %v1418
        %v1451 = vsub.f32 %v1291, %v1419
        %v1452 = vsub.f32 %v1292, %v1420
        %v1453 = vsub.f32 %v1293, %v1421
        %v1454 = vsub.f32 %v1294, %v1422
        %v1455 = vsub.f32 %v1295, %v1423
        %v1456 = vsub.f32 %v1296, %v1424
        %v1457 = vsub.f32 %v1297, %v1425
        %v1458 = vsub.f32 %v1298, %v1426
        %v1459 = vsub.f32 %v1299, %v1427
        %v1460 = vsub.f32 %v1300, %v1428
        %v1461 = vsub.f32 %v1301, %v1429
        %v1462 = vsub.f32 %v1302, %v1430
        %v1463 = vsub.f32 %v1303, %v1431
        %v1464 = vsub.f32 %v1304, %v1432
        %v1465 = vsub.f32 %v1305, %v1433
        %v1466 = vsub.f32 %v1306, %v1434
        %v1467 = vsub.f32 %v1307, %v1435
        %v1468 = vsub.f32 %v1308, %v1436
        %v1469 = vsub.f32 %v1309, %v1437
        %v1470 = vsub.f32 %v1310, %v1438
        %v1471 = vsub.f32 %v1311, %v1439
        %v1472 = vsub.f32 %v1312, %v1440
        %v1473 = vsub.f32 %v1313, %v1441
        %v1474 = vsub.f32 %v1314, %v1442
        %v1475 = vsub.f32 %v1315, %v1443
        %v1476 = vsub.f32 %v1316, %v1444
        %v1477 = vsub.f32 %v1317, %v1445
        %v1478 = vsub.f32 %v1318, %v1446
        %v1479 = vmul.f32 %v1447, 1.442695
        %v1480 = vpow.pop %v1479
        %v1481 = vmul.f32 %v1448, 1.442695
        %v1482 = vpow.pop %v1481
        %v1483 = vmul.f32 %v1449, 1.442695
        %v1484 = vpow.pop %v1483
        %v1485 = vmul.f32 %v1450, 1.442695
        %v1486 = vpow.pop %v1485
        %v1487 = vmul.f32 %v1451, 1.442695
        %v1488 = vpow.pop %v1487
        %v1489 = vmul.f32 %v1452, 1.442695
        %v1490 = vpow.pop %v1489
        %v1491 = vmul.f32 %v1453, 1.442695
        %v1492 = vpow.pop %v1491
        %v1493 = vmul.f32 %v1454, 1.442695
        %v1494 = vpow.pop %v1493
        %v1495 = vmul.f32 %v1455, 1.442695
        %v1496 = vpow.pop %v1495
        %v1497 = vmul.f32 %v1456, 1.442695
        %v1498 = vpow.pop %v1497
        %v1499 = vmul.f32 %v1457, 1.442695
        %v1500 = vpow.pop %v1499
        %v1501 = vmul.f32 %v1458, 1.442695
        %v1502 = vpow.pop %v1501
        %v1503 = vmul.f32 %v1459, 1.442695
        %v1504 = vpow.pop %v1503
        %v1505 = vmul.f32 %v1460, 1.442695
        %v1506 = vpow.pop %v1505
        %v1507 = vmul.f32 %v1461, 1.442695
        %v1508 = vpow.pop %v1507
        %v1509 = vmul.f32 %v1462, 1.442695
        %v1510 = vpow.pop %v1509
        %v1511 = vmul.f32 %v1463, 1.442695
        %v1512 = vpow.pop %v1511
        %v1513 = vmul.f32 %v1464, 1.442695
        %v1514 = vpow.pop %v1513
        %v1515 = vmul.f32 %v1465, 1.442695
        %v1516 = vpow.pop %v1515
        %v1517 = vmul.f32 %v1466, 1.442695
        %v1518 = vpow.pop %v1517
        %v1519 = vmul.f32 %v1467, 1.442695
        %v1520 = vpow.pop %v1519
        %v1521 = vmul.f32 %v1468, 1.442695
        %v1522 = vpow.pop %v1521
        %v1523 = vmul.f32 %v1469, 1.442695
        %v1524 = vpow.pop %v1523
        %v1525 = vmul.f32 %v1470, 1.442695
        %v1526 = vpow.pop %v1525
        %v1527 = vmul.f32 %v1471, 1.442695
        %v1528 = vpow.pop %v1527
        %v1529 = vmul.f32 %v1472, 1.442695
        %v1530 = vpow.pop %v1529
        %v1531 = vmul.f32 %v1473, 1.442695
        %v1532 = vpow.pop %v1531
        %v1533 = vmul.f32 %v1474, 1.442695
        %v1534 = vpow.pop %v1533
        %v1535 = vmul.f32 %v1475, 1.442695
        %v1536 = vpow.pop %v1535
        %v1537 = vmul.f32 %v1476, 1.442695
        %v1538 = vpow.pop %v1537
        %v1539 = vmul.f32 %v1477, 1.442695
        %v1540 = vpow.pop %v1539
        %v1541 = vmul.f32 %v1478, 1.442695
        %v1542 = vpow.pop %v1541
        %1544 = vset.pattern.permute.xlu0 0
        %1545 = vperm.xlu0 %1544, %v1415
        %v1546 = vpop.permute.xlu0 %1545
        %1549 = vset.pattern.permute.xlu0 0
        %1550 = vperm.xlu0 %1549, %v1416
        %v1551 = vpop.permute.xlu0 %1550
        %1554 = vset.pattern.permute.xlu0 0
        %1555 = vperm.xlu0 %1554, %v1417
        %v1556 = vpop.permute.xlu0 %1555
        %1559 = vset.pattern.permute.xlu0 0
        %1560 = vperm.xlu0 %1559, %v1418
        %v1561 = vpop.permute.xlu0 %1560
        %1564 = vset.pattern.permute.xlu0 0
        %1565 = vperm.xlu0 %1564, %v1419
        %v1566 = vpop.permute.xlu0 %1565
        %1569 = vset.pattern.permute.xlu0 0
        %1570 = vperm.xlu0 %1569, %v1420
        %v1571 = vpop.permute.xlu0 %1570
        %1574 = vset.pattern.permute.xlu0 0
        %1575 = vperm.xlu0 %1574, %v1421
        %v1576 = vpop.permute.xlu0 %1575
        %1579 = vset.pattern.permute.xlu0 0
        %1580 = vperm.xlu0 %1579, %v1422
        %v1581 = vpop.permute.xlu0 %1580
        %1584 = vset.pattern.permute.xlu0 0
        %1585 = vperm.xlu0 %1584, %v1423
        %v1586 = vpop.permute.xlu0 %1585
        %1589 = vset.pattern.permute.xlu0 0
        %1590 = vperm.xlu0 %1589, %v1424
        %v1591 = vpop.permute.xlu0 %1590
        %1594 = vset.pattern.permute.xlu0 0
        %1595 = vperm.xlu0 %1594, %v1425
        %v1596 = vpop.permute.xlu0 %1595
        %1599 = vset.pattern.permute.xlu0 0
        %1600 = vperm.xlu0 %1599, %v1426
        %v1601 = vpop.permute.xlu0 %1600
        %1604 = vset.pattern.permute.xlu0 0
        %1605 = vperm.xlu0 %1604, %v1427
        %v1606 = vpop.permute.xlu0 %1605
        %1609 = vset.pattern.permute.xlu0 0
        %1610 = vperm.xlu0 %1609, %v1428
        %v1611 = vpop.permute.xlu0 %1610
        %1614 = vset.pattern.permute.xlu0 0
        %1615 = vperm.xlu0 %1614, %v1429
        %v1616 = vpop.permute.xlu0 %1615
        %1619 = vset.pattern.permute.xlu0 0
        %1620 = vperm.xlu0 %1619, %v1430
        %v1621 = vpop.permute.xlu0 %1620
        %1624 = vset.pattern.permute.xlu0 0
        %1625 = vperm.xlu0 %1624, %v1431
        %v1626 = vpop.permute.xlu0 %1625
        %1629 = vset.pattern.permute.xlu0 0
        %1630 = vperm.xlu0 %1629, %v1432
        %v1631 = vpop.permute.xlu0 %1630
        %1634 = vset.pattern.permute.xlu0 0
        %1635 = vperm.xlu0 %1634, %v1433
        %v1636 = vpop.permute.xlu0 %1635
        %1639 = vset.pattern.permute.xlu0 0
        %1640 = vperm.xlu0 %1639, %v1434
        %v1641 = vpop.permute.xlu0 %1640
        %1644 = vset.pattern.permute.xlu0 0
        %1645 = vperm.xlu0 %1644, %v1435
        %v1646 = vpop.permute.xlu0 %1645
        %1649 = vset.pattern.permute.xlu0 0
        %1650 = vperm.xlu0 %1649, %v1436
        %v1651 = vpop.permute.xlu0 %1650
        %1654 = vset.pattern.permute.xlu0 0
        %1655 = vperm.xlu0 %1654, %v1437
        %v1656 = vpop.permute.xlu0 %1655
        %1659 = vset.pattern.permute.xlu0 0
        %1660 = vperm.xlu0 %1659, %v1438
        %v1661 = vpop.permute.xlu0 %1660
        %1664 = vset.pattern.permute.xlu0 0
        %1665 = vperm.xlu0 %1664, %v1439
        %v1666 = vpop.permute.xlu0 %1665
        %1669 = vset.pattern.permute.xlu0 0
        %1670 = vperm.xlu0 %1669, %v1440
        %v1671 = vpop.permute.xlu0 %1670
        %1674 = vset.pattern.permute.xlu0 0
        %1675 = vperm.xlu0 %1674, %v1441
        %v1676 = vpop.permute.xlu0 %1675
        %1679 = vset.pattern.permute.xlu0 0
        %1680 = vperm.xlu0 %1679, %v1442
        %v1681 = vpop.permute.xlu0 %1680
        %1684 = vset.pattern.permute.xlu0 0
        %1685 = vperm.xlu0 %1684, %v1443
        %v1686 = vpop.permute.xlu0 %1685
        %1689 = vset.pattern.permute.xlu0 0
        %1690 = vperm.xlu0 %1689, %v1444
        %v1691 = vpop.permute.xlu0 %1690
        %1694 = vset.pattern.permute.xlu0 0
        %1695 = vperm.xlu0 %1694, %v1445
        %v1696 = vpop.permute.xlu0 %1695
        %1699 = vset.pattern.permute.xlu0 0
        %1700 = vperm.xlu0 %1699, %v1446
        %v1701 = vpop.permute.xlu0 %1700
        %v1703 = vsub.f32 %v1223, %v1546
        %v1704 = vsub.f32 %v1224, %v1546
        %v1705 = vsub.f32 %v1225, %v1551
        %v1706 = vsub.f32 %v1226, %v1551
        %v1707 = vsub.f32 %v1227, %v1556
        %v1708 = vsub.f32 %v1228, %v1556
        %v1709 = vsub.f32 %v1229, %v1561
        %v1710 = vsub.f32 %v1230, %v1561
        %v1711 = vsub.f32 %v1231, %v1566
        %v1712 = vsub.f32 %v1232, %v1566
        %v1713 = vsub.f32 %v1233, %v1571
        %v1714 = vsub.f32 %v1234, %v1571
        %v1715 = vsub.f32 %v1235, %v1576
        %v1716 = vsub.f32 %v1236, %v1576
        %v1717 = vsub.f32 %v1237, %v1581
        %v1718 = vsub.f32 %v1238, %v1581
        %v1719 = vsub.f32 %v1239, %v1586
        %v1720 = vsub.f32 %v1240, %v1586
        %v1721 = vsub.f32 %v1241, %v1591
        %v1722 = vsub.f32 %v1242, %v1591
        %v1723 = vsub.f32 %v1243, %v1596
        %v1724 = vsub.f32 %v1244, %v1596
        %v1725 = vsub.f32 %v1245, %v1601
        %v1726 = vsub.f32 %v1246, %v1601
        %v1727 = vsub.f32 %v1247, %v1606
        %v1728 = vsub.f32 %v1248, %v1606
        %v1729 = vsub.f32 %v1249, %v1611
        %v1730 = vsub.f32 %v1250, %v1611
        %v1731 = vsub.f32 %v1251, %v1616
        %v1732 = vsub.f32 %v1252, %v1616
        %v1733 = vsub.f32 %v1253, %v1621
        %v1734 = vsub.f32 %v1254, %v1621
        %v1735 = vsub.f32 %v1255, %v1626
        %v1736 = vsub.f32 %v1256, %v1626
        %v1737 = vsub.f32 %v1257, %v1631
        %v1738 = vsub.f32 %v1258, %v1631
        %v1739 = vsub.f32 %v1259, %v1636
        %v1740 = vsub.f32 %v1260, %v1636
        %v1741 = vsub.f32 %v1261, %v1641
        %v1742 = vsub.f32 %v1262, %v1641
        %v1743 = vsub.f32 %v1263, %v1646
        %v1744 = vsub.f32 %v1264, %v1646
        %v1745 = vsub.f32 %v1265, %v1651
        %v1746 = vsub.f32 %v1266, %v1651
        %v1747 = vsub.f32 %v1267, %v1656
        %v1748 = vsub.f32 %v1268, %v1656
        %v1749 = vsub.f32 %v1269, %v1661
        %v1750 = vsub.f32 %v1270, %v1661
        %v1751 = vsub.f32 %v1271, %v1666
        %v1752 = vsub.f32 %v1272, %v1666
        %v1753 = vsub.f32 %v1273, %v1671
        %v1754 = vsub.f32 %v1274, %v1671
        %v1755 = vsub.f32 %v1275, %v1676
        %v1756 = vsub.f32 %v1276, %v1676
        %v1757 = vsub.f32 %v1277, %v1681
        %v1758 = vsub.f32 %v1278, %v1681
        %v1759 = vsub.f32 %v1279, %v1686
        %v1760 = vsub.f32 %v1280, %v1686
        %v1761 = vsub.f32 %v1281, %v1691
        %v1762 = vsub.f32 %v1282, %v1691
        %v1763 = vsub.f32 %v1283, %v1696
        %v1764 = vsub.f32 %v1284, %v1696
        %v1765 = vsub.f32 %v1285, %v1701
        %v1766 = vsub.f32 %v1286, %v1701
        %v1767 = vmul.f32 %v1703, 1.442695
        %v1768 = vpow.pop %v1767
        %v1769 = vmul.f32 %v1704, 1.442695
        %v1770 = vpow.pop %v1769
        %v1771 = vmul.f32 %v1705, 1.442695
        %v1772 = vpow.pop %v1771
        %v1773 = vmul.f32 %v1706, 1.442695
        %v1774 = vpow.pop %v1773
        %v1775 = vmul.f32 %v1707, 1.442695
        %v1776 = vpow.pop %v1775
        %v1777 = vmul.f32 %v1708, 1.442695
        %v1778 = vpow.pop %v1777
        %v1779 = vmul.f32 %v1709, 1.442695
        %v1780 = vpow.pop %v1779
        %v1781 = vmul.f32 %v1710, 1.442695
        %v1782 = vpow.pop %v1781
        %v1783 = vmul.f32 %v1711, 1.442695
        %v1784 = vpow.pop %v1783
        %v1785 = vmul.f32 %v1712, 1.442695
        %v1786 = vpow.pop %v1785
        %v1787 = vmul.f32 %v1713, 1.442695
        %v1788 = vpow.pop %v1787
        %v1789 = vmul.f32 %v1714, 1.442695
        %v1790 = vpow.pop %v1789
        %v1791 = vmul.f32 %v1715, 1.442695
        %v1792 = vpow.pop %v1791
        %v1793 = vmul.f32 %v1716, 1.442695
        %v1794 = vpow.pop %v1793
        %v1795 = vmul.f32 %v1717, 1.442695
        %v1796 = vpow.pop %v1795
        %v1797 = vmul.f32 %v1718, 1.442695
        %v1798 = vpow.pop %v1797
        %v1799 = vmul.f32 %v1719, 1.442695
        %v1800 = vpow.pop %v1799
        %v1801 = vmul.f32 %v1720, 1.442695
        %v1802 = vpow.pop %v1801
        %v1803 = vmul.f32 %v1721, 1.442695
        %v1804 = vpow.pop %v1803
        %v1805 = vmul.f32 %v1722, 1.442695
        %v1806 = vpow.pop %v1805
        %v1807 = vmul.f32 %v1723, 1.442695
        %v1808 = vpow.pop %v1807
        %v1809 = vmul.f32 %v1724, 1.442695
        %v1810 = vpow.pop %v1809
        %v1811 = vmul.f32 %v1725, 1.442695
        %v1812 = vpow.pop %v1811
        %v1813 = vmul.f32 %v1726, 1.442695
        %v1814 = vpow.pop %v1813
        %v1815 = vmul.f32 %v1727, 1.442695
        %v1816 = vpow.pop %v1815
        %v1817 = vmul.f32 %v1728, 1.442695
        %v1818 = vpow.pop %v1817
        %v1819 = vmul.f32 %v1729, 1.442695
        %v1820 = vpow.pop %v1819
        %v1821 = vmul.f32 %v1730, 1.442695
        %v1822 = vpow.pop %v1821
        %v1823 = vmul.f32 %v1731, 1.442695
        %v1824 = vpow.pop %v1823
        %v1825 = vmul.f32 %v1732, 1.442695
        %v1826 = vpow.pop %v1825
        %v1827 = vmul.f32 %v1733, 1.442695
        %v1828 = vpow.pop %v1827
        %v1829 = vmul.f32 %v1734, 1.442695
        %v1830 = vpow.pop %v1829
        %v1831 = vmul.f32 %v1735, 1.442695
        %v1832 = vpow.pop %v1831
        %v1833 = vmul.f32 %v1736, 1.442695
        %v1834 = vpow.pop %v1833
        %v1835 = vmul.f32 %v1737, 1.442695
        %v1836 = vpow.pop %v1835
        %v1837 = vmul.f32 %v1738, 1.442695
        %v1838 = vpow.pop %v1837
        %v1839 = vmul.f32 %v1739, 1.442695
        %v1840 = vpow.pop %v1839
        %v1841 = vmul.f32 %v1740, 1.442695
        %v1842 = vpow.pop %v1841
        %v1843 = vmul.f32 %v1741, 1.442695
        %v1844 = vpow.pop %v1843
        %v1845 = vmul.f32 %v1742, 1.442695
        %v1846 = vpow.pop %v1845
        %v1847 = vmul.f32 %v1743, 1.442695
        %v1848 = vpow.pop %v1847
        %v1849 = vmul.f32 %v1744, 1.442695
        %v1850 = vpow.pop %v1849
        %v1851 = vmul.f32 %v1745, 1.442695
        %v1852 = vpow.pop %v1851
        %v1853 = vmul.f32 %v1746, 1.442695
        %v1854 = vpow.pop %v1853
        %v1855 = vmul.f32 %v1747, 1.442695
        %v1856 = vpow.pop %v1855
        %v1857 = vmul.f32 %v1748, 1.442695
        %v1858 = vpow.pop %v1857
        %v1859 = vmul.f32 %v1749, 1.442695
        %v1860 = vpow.pop %v1859
        %v1861 = vmul.f32 %v1750, 1.442695
        %v1862 = vpow.pop %v1861
        %v1863 = vmul.f32 %v1751, 1.442695
        %v1864 = vpow.pop %v1863
        %v1865 = vmul.f32 %v1752, 1.442695
        %v1866 = vpow.pop %v1865
        %v1867 = vmul.f32 %v1753, 1.442695
        %v1868 = vpow.pop %v1867
        %v1869 = vmul.f32 %v1754, 1.442695
        %v1870 = vpow.pop %v1869
        %v1871 = vmul.f32 %v1755, 1.442695
        %v1872 = vpow.pop %v1871
        %v1873 = vmul.f32 %v1756, 1.442695
        %v1874 = vpow.pop %v1873
        %v1875 = vmul.f32 %v1757, 1.442695
        %v1876 = vpow.pop %v1875
        %v1877 = vmul.f32 %v1758, 1.442695
        %v1878 = vpow.pop %v1877
        %v1879 = vmul.f32 %v1759, 1.442695
        %v1880 = vpow.pop %v1879
        %v1881 = vmul.f32 %v1760, 1.442695
        %v1882 = vpow.pop %v1881
        %v1883 = vmul.f32 %v1761, 1.442695
        %v1884 = vpow.pop %v1883
        %v1885 = vmul.f32 %v1762, 1.442695
        %v1886 = vpow.pop %v1885
        %v1887 = vmul.f32 %v1763, 1.442695
        %v1888 = vpow.pop %v1887
        %v1889 = vmul.f32 %v1764, 1.442695
        %v1890 = vpow.pop %v1889
        %v1891 = vmul.f32 %v1765, 1.442695
        %v1892 = vpow.pop %v1891
        %v1893 = vmul.f32 %v1766, 1.442695
        %v1894 = vpow.pop %v1893
        %v1895 = vld [vmem:[#allocation4] sm:$0xff]
        %v1896 = vld [vmem:[#allocation4 + $0x8] sm:$0xff]
        %v1897 = vld [vmem:[#allocation4 + $0x10] sm:$0xff]
        %v1898 = vld [vmem:[#allocation4 + $0x18] sm:$0xff]
        %v1899 = vld [vmem:[#allocation4 + $0x20] sm:$0xff]
        %v1900 = vld [vmem:[#allocation4 + $0x28] sm:$0xff]
        %v1901 = vld [vmem:[#allocation4 + $0x30] sm:$0xff]
        %v1902 = vld [vmem:[#allocation4 + $0x38] sm:$0xff]
        %v1903 = vld [vmem:[#allocation4 + $0x40] sm:$0xff]
        %v1904 = vld [vmem:[#allocation4 + $0x48] sm:$0xff]
        %v1905 = vld [vmem:[#allocation4 + $0x50] sm:$0xff]
        %v1906 = vld [vmem:[#allocation4 + $0x58] sm:$0xff]
        %v1907 = vld [vmem:[#allocation4 + $0x60] sm:$0xff]
        %v1908 = vld [vmem:[#allocation4 + $0x68] sm:$0xff]
        %v1909 = vld [vmem:[#allocation4 + $0x70] sm:$0xff]
        %v1910 = vld [vmem:[#allocation4 + $0x78] sm:$0xff]
        %v1911 = vld [vmem:[#allocation4 + $0x80] sm:$0xff]
        %v1912 = vld [vmem:[#allocation4 + $0x88] sm:$0xff]
        %v1913 = vld [vmem:[#allocation4 + $0x90] sm:$0xff]
        %v1914 = vld [vmem:[#allocation4 + $0x98] sm:$0xff]
        %v1915 = vld [vmem:[#allocation4 + $0xa0] sm:$0xff]
        %v1916 = vld [vmem:[#allocation4 + $0xa8] sm:$0xff]
        %v1917 = vld [vmem:[#allocation4 + $0xb0] sm:$0xff]
        %v1918 = vld [vmem:[#allocation4 + $0xb8] sm:$0xff]
        %v1919 = vld [vmem:[#allocation4 + $0xc0] sm:$0xff]
        %v1920 = vld [vmem:[#allocation4 + $0xc8] sm:$0xff]
        %v1921 = vld [vmem:[#allocation4 + $0xd0] sm:$0xff]
        %v1922 = vld [vmem:[#allocation4 + $0xd8] sm:$0xff]
        %v1923 = vld [vmem:[#allocation4 + $0xe0] sm:$0xff]
        %v1924 = vld [vmem:[#allocation4 + $0xe8] sm:$0xff]
        %v1925 = vld [vmem:[#allocation4 + $0xf0] sm:$0xff]
        %v1926 = vld [vmem:[#allocation4 + $0xf8] sm:$0xff]
        %v1927 = vmul.f32 %v1480, %v1895
        %v1928 = vmul.f32 %v1482, %v1896
        %v1929 = vmul.f32 %v1484, %v1897
        %v1930 = vmul.f32 %v1486, %v1898
        %v1931 = vmul.f32 %v1488, %v1899
        %v1932 = vmul.f32 %v1490, %v1900
        %v1933 = vmul.f32 %v1492, %v1901
        %v1934 = vmul.f32 %v1494, %v1902
        %v1935 = vmul.f32 %v1496, %v1903
        %v1936 = vmul.f32 %v1498, %v1904
        %v1937 = vmul.f32 %v1500, %v1905
        %v1938 = vmul.f32 %v1502, %v1906
        %v1939 = vmul.f32 %v1504, %v1907
        %v1940 = vmul.f32 %v1506, %v1908
        %v1941 = vmul.f32 %v1508, %v1909
        %v1942 = vmul.f32 %v1510, %v1910
        %v1943 = vmul.f32 %v1512, %v1911
        %v1944 = vmul.f32 %v1514, %v1912
        %v1945 = vmul.f32 %v1516, %v1913
        %v1946 = vmul.f32 %v1518, %v1914
        %v1947 = vmul.f32 %v1520, %v1915
        %v1948 = vmul.f32 %v1522, %v1916
        %v1949 = vmul.f32 %v1524, %v1917
        %v1950 = vmul.f32 %v1526, %v1918
        %v1951 = vmul.f32 %v1528, %v1919
        %v1952 = vmul.f32 %v1530, %v1920
        %v1953 = vmul.f32 %v1532, %v1921
        %v1954 = vmul.f32 %v1534, %v1922
        %v1955 = vmul.f32 %v1536, %v1923
        %v1956 = vmul.f32 %v1538, %v1924
        %v1957 = vmul.f32 %v1540, %v1925
        %v1958 = vmul.f32 %v1542, %v1926
        %v1959 = vadd.f32 %v1768, %v1770
        %1960 = vadd.xlane.f32.xlu0 %v1959
        %v1961 = vpop.xlane.xlu0 %1960
        %v1962 = vadd.f32 %v1772, %v1774
        %1963 = vadd.xlane.f32.xlu0 %v1962
        %v1964 = vpop.xlane.xlu0 %1963
        %v1965 = vadd.f32 %v1776, %v1778
        %1966 = vadd.xlane.f32.xlu0 %v1965
        %v1967 = vpop.xlane.xlu0 %1966
        %v1968 = vadd.f32 %v1780, %v1782
        %1969 = vadd.xlane.f32.xlu0 %v1968
        %v1970 = vpop.xlane.xlu0 %1969
        %v1971 = vadd.f32 %v1784, %v1786
        %1972 = vadd.xlane.f32.xlu0 %v1971
        %v1973 = vpop.xlane.xlu0 %1972
        %v1974 = vadd.f32 %v1788, %v1790
        %1975 = vadd.xlane.f32.xlu0 %v1974
        %v1976 = vpop.xlane.xlu0 %1975
        %v1977 = vadd.f32 %v1792, %v1794
        %1978 = vadd.xlane.f32.xlu0 %v1977
        %v1979 = vpop.xlane.xlu0 %1978
        %v1980 = vadd.f32 %v1796, %v1798
        %1981 = vadd.xlane.f32.xlu0 %v1980
        %v1982 = vpop.xlane.xlu0 %1981
        %v1983 = vadd.f32 %v1800, %v1802
        %1984 = vadd.xlane.f32.xlu0 %v1983
        %v1985 = vpop.xlane.xlu0 %1984
        %v1986 = vadd.f32 %v1804, %v1806
        %1987 = vadd.xlane.f32.xlu0 %v1986
        %v1988 = vpop.xlane.xlu0 %1987
        %v1989 = vadd.f32 %v1808, %v1810
        %1990 = vadd.xlane.f32.xlu0 %v1989
        %v1991 = vpop.xlane.xlu0 %1990
        %v1992 = vadd.f32 %v1812, %v1814
        %1993 = vadd.xlane.f32.xlu0 %v1992
        %v1994 = vpop.xlane.xlu0 %1993
        %v1995 = vadd.f32 %v1816, %v1818
        %1996 = vadd.xlane.f32.xlu0 %v1995
        %v1997 = vpop.xlane.xlu0 %1996
        %v1998 = vadd.f32 %v1820, %v1822
        %1999 = vadd.xlane.f32.xlu0 %v1998
        %v2000 = vpop.xlane.xlu0 %1999
        %v2001 = vadd.f32 %v1824, %v1826
        %2002 = vadd.xlane.f32.xlu0 %v2001
        %v2003 = vpop.xlane.xlu0 %2002
        %v2004 = vadd.f32 %v1828, %v1830
        %2005 = vadd.xlane.f32.xlu0 %v2004
        %v2006 = vpop.xlane.xlu0 %2005
        %v2007 = vadd.f32 %v1832, %v1834
        %2008 = vadd.xlane.f32.xlu0 %v2007
        %v2009 = vpop.xlane.xlu0 %2008
        %v2010 = vadd.f32 %v1836, %v1838
        %2011 = vadd.xlane.f32.xlu0 %v2010
        %v2012 = vpop.xlane.xlu0 %2011
        %v2013 = vadd.f32 %v1840, %v1842
        %2014 = vadd.xlane.f32.xlu0 %v2013
        %v2015 = vpop.xlane.xlu0 %2014
        %v2016 = vadd.f32 %v1844, %v1846
        %2017 = vadd.xlane.f32.xlu0 %v2016
        %v2018 = vpop.xlane.xlu0 %2017
        %v2019 = vadd.f32 %v1848, %v1850
        %2020 = vadd.xlane.f32.xlu0 %v2019
        %v2021 = vpop.xlane.xlu0 %2020
        %v2022 = vadd.f32 %v1852, %v1854
        %2023 = vadd.xlane.f32.xlu0 %v2022
        %v2024 = vpop.xlane.xlu0 %2023
        %v2025 = vadd.f32 %v1856, %v1858
        %2026 = vadd.xlane.f32.xlu0 %v2025
        %v2027 = vpop.xlane.xlu0 %2026
        %v2028 = vadd.f32 %v1860, %v1862
        %2029 = vadd.xlane.f32.xlu0 %v2028
        %v2030 = vpop.xlane.xlu0 %2029
        %v2031 = vadd.f32 %v1864, %v1866
        %2032 = vadd.xlane.f32.xlu0 %v2031
        %v2033 = vpop.xlane.xlu0 %2032
        %v2034 = vadd.f32 %v1868, %v1870
        %2035 = vadd.xlane.f32.xlu0 %v2034
        %v2036 = vpop.xlane.xlu0 %2035
        %v2037 = vadd.f32 %v1872, %v1874
        %2038 = vadd.xlane.f32.xlu0 %v2037
        %v2039 = vpop.xlane.xlu0 %2038
        %v2040 = vadd.f32 %v1876, %v1878
        %2041 = vadd.xlane.f32.xlu0 %v2040
        %v2042 = vpop.xlane.xlu0 %2041
        %v2043 = vadd.f32 %v1880, %v1882
        %2044 = vadd.xlane.f32.xlu0 %v2043
        %v2045 = vpop.xlane.xlu0 %2044
        %v2046 = vadd.f32 %v1884, %v1886
        %2047 = vadd.xlane.f32.xlu0 %v2046
        %v2048 = vpop.xlane.xlu0 %2047
        %v2049 = vadd.f32 %v1888, %v1890
        %2050 = vadd.xlane.f32.xlu0 %v2049
        %v2051 = vpop.xlane.xlu0 %2050
        %v2052 = vadd.f32 %v1892, %v1894
        %2053 = vadd.xlane.f32.xlu0 %v2052
        %v2054 = vpop.xlane.xlu0 %2053
        %v2055 = vadd.f32 %v1927, %v1961
        %v2056 = vadd.f32 %v1928, %v1964
        %v2057 = vadd.f32 %v1929, %v1967
        %v2058 = vadd.f32 %v1930, %v1970
        %v2059 = vadd.f32 %v1931, %v1973
        %v2060 = vadd.f32 %v1932, %v1976
        %v2061 = vadd.f32 %v1933, %v1979
        %v2062 = vadd.f32 %v1934, %v1982
        %v2063 = vadd.f32 %v1935, %v1985
        %v2064 = vadd.f32 %v1936, %v1988
        %v2065 = vadd.f32 %v1937, %v1991
        %v2066 = vadd.f32 %v1938, %v1994
        %v2067 = vadd.f32 %v1939, %v1997
        %v2068 = vadd.f32 %v1940, %v2000
        %v2069 = vadd.f32 %v1941, %v2003
        %v2070 = vadd.f32 %v1942, %v2006
        %v2071 = vadd.f32 %v1943, %v2009
        %v2072 = vadd.f32 %v1944, %v2012
        %v2073 = vadd.f32 %v1945, %v2015
        %v2074 = vadd.f32 %v1946, %v2018
        %v2075 = vadd.f32 %v1947, %v2021
        %v2076 = vadd.f32 %v1948, %v2024
        %v2077 = vadd.f32 %v1949, %v2027
        %v2078 = vadd.f32 %v1950, %v2030
        %v2079 = vadd.f32 %v1951, %v2033
        %v2080 = vadd.f32 %v1952, %v2036
        %v2081 = vadd.f32 %v1953, %v2039
        %v2082 = vadd.f32 %v1954, %v2042
        %v2083 = vadd.f32 %v1955, %v2045
        %v2084 = vadd.f32 %v1956, %v2048
        %v2085 = vadd.f32 %v1957, %v2051
        %v2086 = vadd.f32 %v1958, %v2054
        %vm2087 = vcmask 7168
        %2088 = vst.msk [vmem:[#allocation4] sm:$0xff] %vm2087, %v2055
        %2089 = vst.msk [vmem:[#allocation4 + $0x8] sm:$0xff] %vm2087, %v2056
        %2090 = vst.msk [vmem:[#allocation4 + $0x10] sm:$0xff] %vm2087, %v2057
        %2091 = vst.msk [vmem:[#allocation4 + $0x18] sm:$0xff] %vm2087, %v2058
        %2092 = vst.msk [vmem:[#allocation4 + $0x20] sm:$0xff] %vm2087, %v2059
        %2093 = vst.msk [vmem:[#allocation4 + $0x28] sm:$0xff] %vm2087, %v2060
        %2094 = vst.msk [vmem:[#allocation4 + $0x30] sm:$0xff] %vm2087, %v2061
        %2095 = vst.msk [vmem:[#allocation4 + $0x38] sm:$0xff] %vm2087, %v2062
        %2096 = vst.msk [vmem:[#allocation4 + $0x40] sm:$0xff] %vm2087, %v2063
        %2097 = vst.msk [vmem:[#allocation4 + $0x48] sm:$0xff] %vm2087, %v2064
        %2098 = vst.msk [vmem:[#allocation4 + $0x50] sm:$0xff] %vm2087, %v2065
        %2099 = vst.msk [vmem:[#allocation4 + $0x58] sm:$0xff] %vm2087, %v2066
        %2100 = vst.msk [vmem:[#allocation4 + $0x60] sm:$0xff] %vm2087, %v2067
        %2101 = vst.msk [vmem:[#allocation4 + $0x68] sm:$0xff] %vm2087, %v2068
        %2102 = vst.msk [vmem:[#allocation4 + $0x70] sm:$0xff] %vm2087, %v2069
        %2103 = vst.msk [vmem:[#allocation4 + $0x78] sm:$0xff] %vm2087, %v2070
        %2104 = vst.msk [vmem:[#allocation4 + $0x80] sm:$0xff] %vm2087, %v2071
        %2105 = vst.msk [vmem:[#allocation4 + $0x88] sm:$0xff] %vm2087, %v2072
        %2106 = vst.msk [vmem:[#allocation4 + $0x90] sm:$0xff] %vm2087, %v2073
        %2107 = vst.msk [vmem:[#allocation4 + $0x98] sm:$0xff] %vm2087, %v2074
        %2108 = vst.msk [vmem:[#allocation4 + $0xa0] sm:$0xff] %vm2087, %v2075
        %2109 = vst.msk [vmem:[#allocation4 + $0xa8] sm:$0xff] %vm2087, %v2076
        %2110 = vst.msk [vmem:[#allocation4 + $0xb0] sm:$0xff] %vm2087, %v2077
        %2111 = vst.msk [vmem:[#allocation4 + $0xb8] sm:$0xff] %vm2087, %v2078
        %2112 = vst.msk [vmem:[#allocation4 + $0xc0] sm:$0xff] %vm2087, %v2079
        %2113 = vst.msk [vmem:[#allocation4 + $0xc8] sm:$0xff] %vm2087, %v2080
        %2114 = vst.msk [vmem:[#allocation4 + $0xd0] sm:$0xff] %vm2087, %v2081
        %2115 = vst.msk [vmem:[#allocation4 + $0xd8] sm:$0xff] %vm2087, %v2082
        %2116 = vst.msk [vmem:[#allocation4 + $0xe0] sm:$0xff] %vm2087, %v2083
        %2117 = vst.msk [vmem:[#allocation4 + $0xe8] sm:$0xff] %vm2087, %v2084
        %2118 = vst.msk [vmem:[#allocation4 + $0xf0] sm:$0xff] %vm2087, %v2085
        %2119 = vst.msk [vmem:[#allocation4 + $0xf8] sm:$0xff] %vm2087, %v2086
        %v2120 = vld [vmem:[#allocation5] sm:$0xff]
        %v2121 = vld [vmem:[#allocation5 + $0x8] sm:$0xff]
        %v2122 = vld [vmem:[#allocation5 + $0x10] sm:$0xff]
        %v2123 = vld [vmem:[#allocation5 + $0x18] sm:$0xff]
        %v2124 = vld [vmem:[#allocation5 + $0x20] sm:$0xff]
        %v2125 = vld [vmem:[#allocation5 + $0x28] sm:$0xff]
        %v2126 = vld [vmem:[#allocation5 + $0x30] sm:$0xff]
        %v2127 = vld [vmem:[#allocation5 + $0x38] sm:$0xff]
        %v2128 = vld [vmem:[#allocation5 + $0x40] sm:$0xff]
        %v2129 = vld [vmem:[#allocation5 + $0x48] sm:$0xff]
        %v2130 = vld [vmem:[#allocation5 + $0x50] sm:$0xff]
        %v2131 = vld [vmem:[#allocation5 + $0x58] sm:$0xff]
        %v2132 = vld [vmem:[#allocation5 + $0x60] sm:$0xff]
        %v2133 = vld [vmem:[#allocation5 + $0x68] sm:$0xff]
        %v2134 = vld [vmem:[#allocation5 + $0x70] sm:$0xff]
        %v2135 = vld [vmem:[#allocation5 + $0x78] sm:$0xff]
        %v2136 = vld [vmem:[#allocation5 + $0x80] sm:$0xff]
        %v2137 = vld [vmem:[#allocation5 + $0x88] sm:$0xff]
        %v2138 = vld [vmem:[#allocation5 + $0x90] sm:$0xff]
        %v2139 = vld [vmem:[#allocation5 + $0x98] sm:$0xff]
        %v2140 = vld [vmem:[#allocation5 + $0xa0] sm:$0xff]
        %v2141 = vld [vmem:[#allocation5 + $0xa8] sm:$0xff]
        %v2142 = vld [vmem:[#allocation5 + $0xb0] sm:$0xff]
        %v2143 = vld [vmem:[#allocation5 + $0xb8] sm:$0xff]
        %v2144 = vld [vmem:[#allocation5 + $0xc0] sm:$0xff]
        %v2145 = vld [vmem:[#allocation5 + $0xc8] sm:$0xff]
        %v2146 = vld [vmem:[#allocation5 + $0xd0] sm:$0xff]
        %v2147 = vld [vmem:[#allocation5 + $0xd8] sm:$0xff]
        %v2148 = vld [vmem:[#allocation5 + $0xe0] sm:$0xff]
        %v2149 = vld [vmem:[#allocation5 + $0xe8] sm:$0xff]
        %v2150 = vld [vmem:[#allocation5 + $0xf0] sm:$0xff]
        %v2151 = vld [vmem:[#allocation5 + $0xf8] sm:$0xff]
        %v2152 = vmul.f32 %v1480, %v2120
        %v2153 = vmul.f32 %v1482, %v2121
        %v2154 = vmul.f32 %v1484, %v2122
        %v2155 = vmul.f32 %v1486, %v2123
        %v2156 = vmul.f32 %v1488, %v2124
        %v2157 = vmul.f32 %v1490, %v2125
        %v2158 = vmul.f32 %v1492, %v2126
        %v2159 = vmul.f32 %v1494, %v2127
        %v2160 = vmul.f32 %v1496, %v2128
        %v2161 = vmul.f32 %v1498, %v2129
        %v2162 = vmul.f32 %v1500, %v2130
        %v2163 = vmul.f32 %v1502, %v2131
        %v2164 = vmul.f32 %v1504, %v2132
        %v2165 = vmul.f32 %v1506, %v2133
        %v2166 = vmul.f32 %v1508, %v2134
        %v2167 = vmul.f32 %v1510, %v2135
        %v2168 = vmul.f32 %v1512, %v2136
        %v2169 = vmul.f32 %v1514, %v2137
        %v2170 = vmul.f32 %v1516, %v2138
        %v2171 = vmul.f32 %v1518, %v2139
        %v2172 = vmul.f32 %v1520, %v2140
        %v2173 = vmul.f32 %v1522, %v2141
        %v2174 = vmul.f32 %v1524, %v2142
        %v2175 = vmul.f32 %v1526, %v2143
        %v2176 = vmul.f32 %v1528, %v2144
        %v2177 = vmul.f32 %v1530, %v2145
        %v2178 = vmul.f32 %v1532, %v2146
        %v2179 = vmul.f32 %v1534, %v2147
        %v2180 = vmul.f32 %v1536, %v2148
        %v2181 = vmul.f32 %v1538, %v2149
        %v2182 = vmul.f32 %v1540, %v2150
        %v2183 = vmul.f32 %v1542, %v2151
        %v2185 = vperm.slane %v964, 0
        %v2186 = vperm.slane %v964, 1
        %v2189 = vmul.f32 %v1768, %v2185
        %v2190 = vmul.f32 %v1770, %v2186
        %v2191 = vmul.f32 %v1772, %v2185
        %v2192 = vmul.f32 %v1774, %v2186
        %v2193 = vmul.f32 %v1776, %v2185
        %v2194 = vmul.f32 %v1778, %v2186
        %v2195 = vmul.f32 %v1780, %v2185
        %v2196 = vmul.f32 %v1782, %v2186
        %v2197 = vmul.f32 %v1784, %v2185
        %v2198 = vmul.f32 %v1786, %v2186
        %v2199 = vmul.f32 %v1788, %v2185
        %v2200 = vmul.f32 %v1790, %v2186
        %v2201 = vmul.f32 %v1792, %v2185
        %v2202 = vmul.f32 %v1794, %v2186
        %v2203 = vmul.f32 %v1796, %v2185
        %v2204 = vmul.f32 %v1798, %v2186
        %v2205 = vmul.f32 %v1800, %v2185
        %v2206 = vmul.f32 %v1802, %v2186
        %v2207 = vmul.f32 %v1804, %v2185
        %v2208 = vmul.f32 %v1806, %v2186
        %v2209 = vmul.f32 %v1808, %v2185
        %v2210 = vmul.f32 %v1810, %v2186
        %v2211 = vmul.f32 %v1812, %v2185
        %v2212 = vmul.f32 %v1814, %v2186
        %v2213 = vmul.f32 %v1816, %v2185
        %v2214 = vmul.f32 %v1818, %v2186
        %v2215 = vmul.f32 %v1820, %v2185
        %v2216 = vmul.f32 %v1822, %v2186
        %v2217 = vmul.f32 %v1824, %v2185
        %v2218 = vmul.f32 %v1826, %v2186
        %v2219 = vmul.f32 %v1828, %v2185
        %v2220 = vmul.f32 %v1830, %v2186
        %v2221 = vmul.f32 %v1832, %v2185
        %v2222 = vmul.f32 %v1834, %v2186
        %v2223 = vmul.f32 %v1836, %v2185
        %v2224 = vmul.f32 %v1838, %v2186
        %v2225 = vmul.f32 %v1840, %v2185
        %v2226 = vmul.f32 %v1842, %v2186
        %v2227 = vmul.f32 %v1844, %v2185
        %v2228 = vmul.f32 %v1846, %v2186
        %v2229 = vmul.f32 %v1848, %v2185
        %v2230 = vmul.f32 %v1850, %v2186
        %v2231 = vmul.f32 %v1852, %v2185
        %v2232 = vmul.f32 %v1854, %v2186
        %v2233 = vmul.f32 %v1856, %v2185
        %v2234 = vmul.f32 %v1858, %v2186
        %v2235 = vmul.f32 %v1860, %v2185
        %v2236 = vmul.f32 %v1862, %v2186
        %v2237 = vmul.f32 %v1864, %v2185
        %v2238 = vmul.f32 %v1866, %v2186
        %v2239 = vmul.f32 %v1868, %v2185
        %v2240 = vmul.f32 %v1870, %v2186
        %v2241 = vmul.f32 %v1872, %v2185
        %v2242 = vmul.f32 %v1874, %v2186
        %v2243 = vmul.f32 %v1876, %v2185
        %v2244 = vmul.f32 %v1878, %v2186
        %v2245 = vmul.f32 %v1880, %v2185
        %v2246 = vmul.f32 %v1882, %v2186
        %v2247 = vmul.f32 %v1884, %v2185
        %v2248 = vmul.f32 %v1886, %v2186
        %v2249 = vmul.f32 %v1888, %v2185
        %v2250 = vmul.f32 %v1890, %v2186
        %v2251 = vmul.f32 %v1892, %v2185
        %v2252 = vmul.f32 %v1894, %v2186
        %v2253 = vadd.f32 %v2189, %v2190
        %2254 = vadd.xlane.f32.xlu0 %v2253
        %v2255 = vpop.xlane.xlu0 %2254
        %v2256 = vadd.f32 %v2191, %v2192
        %2257 = vadd.xlane.f32.xlu0 %v2256
        %v2258 = vpop.xlane.xlu0 %2257
        %v2259 = vadd.f32 %v2193, %v2194
        %2260 = vadd.xlane.f32.xlu0 %v2259
        %v2261 = vpop.xlane.xlu0 %2260
        %v2262 = vadd.f32 %v2195, %v2196
        %2263 = vadd.xlane.f32.xlu0 %v2262
        %v2264 = vpop.xlane.xlu0 %2263
        %v2265 = vadd.f32 %v2197, %v2198
        %2266 = vadd.xlane.f32.xlu0 %v2265
        %v2267 = vpop.xlane.xlu0 %2266
        %v2268 = vadd.f32 %v2199, %v2200
        %2269 = vadd.xlane.f32.xlu0 %v2268
        %v2270 = vpop.xlane.xlu0 %2269
        %v2271 = vadd.f32 %v2201, %v2202
        %2272 = vadd.xlane.f32.xlu0 %v2271
        %v2273 = vpop.xlane.xlu0 %2272
        %v2274 = vadd.f32 %v2203, %v2204
        %2275 = vadd.xlane.f32.xlu0 %v2274
        %v2276 = vpop.xlane.xlu0 %2275
        %v2277 = vadd.f32 %v2205, %v2206
        %2278 = vadd.xlane.f32.xlu0 %v2277
        %v2279 = vpop.xlane.xlu0 %2278
        %v2280 = vadd.f32 %v2207, %v2208
        %2281 = vadd.xlane.f32.xlu0 %v2280
        %v2282 = vpop.xlane.xlu0 %2281
        %v2283 = vadd.f32 %v2209, %v2210
        %2284 = vadd.xlane.f32.xlu0 %v2283
        %v2285 = vpop.xlane.xlu0 %2284
        %v2286 = vadd.f32 %v2211, %v2212
        %2287 = vadd.xlane.f32.xlu0 %v2286
        %v2288 = vpop.xlane.xlu0 %2287
        %v2289 = vadd.f32 %v2213, %v2214
        %2290 = vadd.xlane.f32.xlu0 %v2289
        %v2291 = vpop.xlane.xlu0 %2290
        %v2292 = vadd.f32 %v2215, %v2216
        %2293 = vadd.xlane.f32.xlu0 %v2292
        %v2294 = vpop.xlane.xlu0 %2293
        %v2295 = vadd.f32 %v2217, %v2218
        %2296 = vadd.xlane.f32.xlu0 %v2295
        %v2297 = vpop.xlane.xlu0 %2296
        %v2298 = vadd.f32 %v2219, %v2220
        %2299 = vadd.xlane.f32.xlu0 %v2298
        %v2300 = vpop.xlane.xlu0 %2299
        %v2301 = vadd.f32 %v2221, %v2222
        %2302 = vadd.xlane.f32.xlu0 %v2301
        %v2303 = vpop.xlane.xlu0 %2302
        %v2304 = vadd.f32 %v2223, %v2224
        %2305 = vadd.xlane.f32.xlu0 %v2304
        %v2306 = vpop.xlane.xlu0 %2305
        %v2307 = vadd.f32 %v2225, %v2226
        %2308 = vadd.xlane.f32.xlu0 %v2307
        %v2309 = vpop.xlane.xlu0 %2308
        %v2310 = vadd.f32 %v2227, %v2228
        %2311 = vadd.xlane.f32.xlu0 %v2310
        %v2312 = vpop.xlane.xlu0 %2311
        %v2313 = vadd.f32 %v2229, %v2230
        %2314 = vadd.xlane.f32.xlu0 %v2313
        %v2315 = vpop.xlane.xlu0 %2314
        %v2316 = vadd.f32 %v2231, %v2232
        %2317 = vadd.xlane.f32.xlu0 %v2316
        %v2318 = vpop.xlane.xlu0 %2317
        %v2319 = vadd.f32 %v2233, %v2234
        %2320 = vadd.xlane.f32.xlu0 %v2319
        %v2321 = vpop.xlane.xlu0 %2320
        %v2322 = vadd.f32 %v2235, %v2236
        %2323 = vadd.xlane.f32.xlu0 %v2322
        %v2324 = vpop.xlane.xlu0 %2323
        %v2325 = vadd.f32 %v2237, %v2238
        %2326 = vadd.xlane.f32.xlu0 %v2325
        %v2327 = vpop.xlane.xlu0 %2326
        %v2328 = vadd.f32 %v2239, %v2240
        %2329 = vadd.xlane.f32.xlu0 %v2328
        %v2330 = vpop.xlane.xlu0 %2329
        %v2331 = vadd.f32 %v2241, %v2242
        %2332 = vadd.xlane.f32.xlu0 %v2331
        %v2333 = vpop.xlane.xlu0 %2332
        %v2334 = vadd.f32 %v2243, %v2244
        %2335 = vadd.xlane.f32.xlu0 %v2334
        %v2336 = vpop.xlane.xlu0 %2335
        %v2337 = vadd.f32 %v2245, %v2246
        %2338 = vadd.xlane.f32.xlu0 %v2337
        %v2339 = vpop.xlane.xlu0 %2338
        %v2340 = vadd.f32 %v2247, %v2248
        %2341 = vadd.xlane.f32.xlu0 %v2340
        %v2342 = vpop.xlane.xlu0 %2341
        %v2343 = vadd.f32 %v2249, %v2250
        %2344 = vadd.xlane.f32.xlu0 %v2343
        %v2345 = vpop.xlane.xlu0 %2344
        %v2346 = vadd.f32 %v2251, %v2252
        %2347 = vadd.xlane.f32.xlu0 %v2346
        %v2348 = vpop.xlane.xlu0 %2347
        %v2349 = vadd.f32 %v2152, %v2255
        %v2350 = vadd.f32 %v2153, %v2258
        %v2351 = vadd.f32 %v2154, %v2261
        %v2352 = vadd.f32 %v2155, %v2264
        %v2353 = vadd.f32 %v2156, %v2267
        %v2354 = vadd.f32 %v2157, %v2270
        %v2355 = vadd.f32 %v2158, %v2273
        %v2356 = vadd.f32 %v2159, %v2276
        %v2357 = vadd.f32 %v2160, %v2279
        %v2358 = vadd.f32 %v2161, %v2282
        %v2359 = vadd.f32 %v2162, %v2285
        %v2360 = vadd.f32 %v2163, %v2288
        %v2361 = vadd.f32 %v2164, %v2291
        %v2362 = vadd.f32 %v2165, %v2294
        %v2363 = vadd.f32 %v2166, %v2297
        %v2364 = vadd.f32 %v2167, %v2300
        %v2365 = vadd.f32 %v2168, %v2303
        %v2366 = vadd.f32 %v2169, %v2306
        %v2367 = vadd.f32 %v2170, %v2309
        %v2368 = vadd.f32 %v2171, %v2312
        %v2369 = vadd.f32 %v2172, %v2315
        %v2370 = vadd.f32 %v2173, %v2318
        %v2371 = vadd.f32 %v2174, %v2321
        %v2372 = vadd.f32 %v2175, %v2324
        %v2373 = vadd.f32 %v2176, %v2327
        %v2374 = vadd.f32 %v2177, %v2330
        %v2375 = vadd.f32 %v2178, %v2333
        %v2376 = vadd.f32 %v2179, %v2336
        %v2377 = vadd.f32 %v2180, %v2339
        %v2378 = vadd.f32 %v2181, %v2342
        %v2379 = vadd.f32 %v2182, %v2345
        %v2380 = vadd.f32 %v2183, %v2348
        %2381 = vst.msk [vmem:[#allocation5] sm:$0xff] %vm2087, %v2349
        %2382 = vst.msk [vmem:[#allocation5 + $0x8] sm:$0xff] %vm2087, %v2350
        %2383 = vst.msk [vmem:[#allocation5 + $0x10] sm:$0xff] %vm2087, %v2351
        %2384 = vst.msk [vmem:[#allocation5 + $0x18] sm:$0xff] %vm2087, %v2352
        %2385 = vst.msk [vmem:[#allocation5 + $0x20] sm:$0xff] %vm2087, %v2353
        %2386 = vst.msk [vmem:[#allocation5 + $0x28] sm:$0xff] %vm2087, %v2354
        %2387 = vst.msk [vmem:[#allocation5 + $0x30] sm:$0xff] %vm2087, %v2355
        %2388 = vst.msk [vmem:[#allocation5 + $0x38] sm:$0xff] %vm2087, %v2356
        %2389 = vst.msk [vmem:[#allocation5 + $0x40] sm:$0xff] %vm2087, %v2357
        %2390 = vst.msk [vmem:[#allocation5 + $0x48] sm:$0xff] %vm2087, %v2358
        %2391 = vst.msk [vmem:[#allocation5 + $0x50] sm:$0xff] %vm2087, %v2359
        %2392 = vst.msk [vmem:[#allocation5 + $0x58] sm:$0xff] %vm2087, %v2360
        %2393 = vst.msk [vmem:[#allocation5 + $0x60] sm:$0xff] %vm2087, %v2361
        %2394 = vst.msk [vmem:[#allocation5 + $0x68] sm:$0xff] %vm2087, %v2362
        %2395 = vst.msk [vmem:[#allocation5 + $0x70] sm:$0xff] %vm2087, %v2363
        %2396 = vst.msk [vmem:[#allocation5 + $0x78] sm:$0xff] %vm2087, %v2364
        %2397 = vst.msk [vmem:[#allocation5 + $0x80] sm:$0xff] %vm2087, %v2365
        %2398 = vst.msk [vmem:[#allocation5 + $0x88] sm:$0xff] %vm2087, %v2366
        %2399 = vst.msk [vmem:[#allocation5 + $0x90] sm:$0xff] %vm2087, %v2367
        %2400 = vst.msk [vmem:[#allocation5 + $0x98] sm:$0xff] %vm2087, %v2368
        %2401 = vst.msk [vmem:[#allocation5 + $0xa0] sm:$0xff] %vm2087, %v2369
        %2402 = vst.msk [vmem:[#allocation5 + $0xa8] sm:$0xff] %vm2087, %v2370
        %2403 = vst.msk [vmem:[#allocation5 + $0xb0] sm:$0xff] %vm2087, %v2371
        %2404 = vst.msk [vmem:[#allocation5 + $0xb8] sm:$0xff] %vm2087, %v2372
        %2405 = vst.msk [vmem:[#allocation5 + $0xc0] sm:$0xff] %vm2087, %v2373
        %2406 = vst.msk [vmem:[#allocation5 + $0xc8] sm:$0xff] %vm2087, %v2374
        %2407 = vst.msk [vmem:[#allocation5 + $0xd0] sm:$0xff] %vm2087, %v2375
        %2408 = vst.msk [vmem:[#allocation5 + $0xd8] sm:$0xff] %vm2087, %v2376
        %2409 = vst.msk [vmem:[#allocation5 + $0xe0] sm:$0xff] %vm2087, %v2377
        %2410 = vst.msk [vmem:[#allocation5 + $0xe8] sm:$0xff] %vm2087, %v2378
        %2411 = vst.msk [vmem:[#allocation5 + $0xf0] sm:$0xff] %vm2087, %v2379
        %2412 = vst.msk [vmem:[#allocation5 + $0xf8] sm:$0xff] %vm2087, %v2380
        %2413 = vst.msk [vmem:[#allocation3] sm:$0xff] %vm2087, %v1415
        %2414 = vst.msk [vmem:[#allocation3 + $0x8] sm:$0xff] %vm2087, %v1416
        %2415 = vst.msk [vmem:[#allocation3 + $0x10] sm:$0xff] %vm2087, %v1417
        %2416 = vst.msk [vmem:[#allocation3 + $0x18] sm:$0xff] %vm2087, %v1418
        %2417 = vst.msk [vmem:[#allocation3 + $0x20] sm:$0xff] %vm2087, %v1419
        %2418 = vst.msk [vmem:[#allocation3 + $0x28] sm:$0xff] %vm2087, %v1420
        %2419 = vst.msk [vmem:[#allocation3 + $0x30] sm:$0xff] %vm2087, %v1421
        %2420 = vst.msk [vmem:[#allocation3 + $0x38] sm:$0xff] %vm2087, %v1422
        %2421 = vst.msk [vmem:[#allocation3 + $0x40] sm:$0xff] %vm2087, %v1423
        %2422 = vst.msk [vmem:[#allocation3 + $0x48] sm:$0xff] %vm2087, %v1424
        %2423 = vst.msk [vmem:[#allocation3 + $0x50] sm:$0xff] %vm2087, %v1425
        %2424 = vst.msk [vmem:[#allocation3 + $0x58] sm:$0xff] %vm2087, %v1426
        %2425 = vst.msk [vmem:[#allocation3 + $0x60] sm:$0xff] %vm2087, %v1427
        %2426 = vst.msk [vmem:[#allocation3 + $0x68] sm:$0xff] %vm2087, %v1428
        %2427 = vst.msk [vmem:[#allocation3 + $0x70] sm:$0xff] %vm2087, %v1429
        %2428 = vst.msk [vmem:[#allocation3 + $0x78] sm:$0xff] %vm2087, %v1430
        %2429 = vst.msk [vmem:[#allocation3 + $0x80] sm:$0xff] %vm2087, %v1431
        %2430 = vst.msk [vmem:[#allocation3 + $0x88] sm:$0xff] %vm2087, %v1432
        %2431 = vst.msk [vmem:[#allocation3 + $0x90] sm:$0xff] %vm2087, %v1433
        %2432 = vst.msk [vmem:[#allocation3 + $0x98] sm:$0xff] %vm2087, %v1434
        %2433 = vst.msk [vmem:[#allocation3 + $0xa0] sm:$0xff] %vm2087, %v1435
        %2434 = vst.msk [vmem:[#allocation3 + $0xa8] sm:$0xff] %vm2087, %v1436
        %2435 = vst.msk [vmem:[#allocation3 + $0xb0] sm:$0xff] %vm2087, %v1437
        %2436 = vst.msk [vmem:[#allocation3 + $0xb8] sm:$0xff] %vm2087, %v1438
        %2437 = vst.msk [vmem:[#allocation3 + $0xc0] sm:$0xff] %vm2087, %v1439
        %2438 = vst.msk [vmem:[#allocation3 + $0xc8] sm:$0xff] %vm2087, %v1440
        %2439 = vst.msk [vmem:[#allocation3 + $0xd0] sm:$0xff] %vm2087, %v1441
        %2440 = vst.msk [vmem:[#allocation3 + $0xd8] sm:$0xff] %vm2087, %v1442
        %2441 = vst.msk [vmem:[#allocation3 + $0xe0] sm:$0xff] %vm2087, %v1443
        %2442 = vst.msk [vmem:[#allocation3 + $0xe8] sm:$0xff] %vm2087, %v1444
        %2443 = vst.msk [vmem:[#allocation3 + $0xf0] sm:$0xff] %vm2087, %v1445
        %2444 = vst.msk [vmem:[#allocation3 + $0xf8] sm:$0xff] %vm2087, %v1446
        %p2445 = scmp.eq.s32.totalorder %s43, 1
        // Predicated region
        $region105: #{tpu_custom_call.1} parent=75 // pred_check
          %p2446 = pneg %p2445
        $region106: #{tpu_custom_call.1} parent=75 // pred_check_branch
          %2448 = sbr.rel (%p2446) target = $region108
        $region107: #{tpu_custom_call.1} parent=75 // pred_region
          %v2449 = vld [vmem:[%s539] sm:$0xff]
          %v2450 = vld [vmem:[%s539 + $0x8] sm:$0xff]
          %v2451 = vld [vmem:[%s539 + $0x10] sm:$0xff]
          %v2452 = vld [vmem:[%s539 + $0x18] sm:$0xff]
          %v2453 = vld [vmem:[%s539 + $0x20] sm:$0xff]
          %v2454 = vld [vmem:[%s539 + $0x28] sm:$0xff]
          %v2455 = vld [vmem:[%s539 + $0x30] sm:$0xff]
          %v2456 = vld [vmem:[%s539 + $0x38] sm:$0xff]
          %v2457 = vld [vmem:[%s539 + $0x40] sm:$0xff]
          %v2458 = vld [vmem:[%s539 + $0x48] sm:$0xff]
          %v2459 = vld [vmem:[%s539 + $0x50] sm:$0xff]
          %v2460 = vld [vmem:[%s539 + $0x58] sm:$0xff]
          %v2461 = vld [vmem:[%s539 + $0x60] sm:$0xff]
          %v2462 = vld [vmem:[%s539 + $0x68] sm:$0xff]
          %v2463 = vld [vmem:[%s539 + $0x70] sm:$0xff]
          %v2464 = vld [vmem:[%s539 + $0x78] sm:$0xff]
          %v2465 = vld [vmem:[%s539 + $0x80] sm:$0xff]
          %v2466 = vld [vmem:[%s539 + $0x88] sm:$0xff]
          %v2467 = vld [vmem:[%s539 + $0x90] sm:$0xff]
          %v2468 = vld [vmem:[%s539 + $0x98] sm:$0xff]
          %v2469 = vld [vmem:[%s539 + $0xa0] sm:$0xff]
          %v2470 = vld [vmem:[%s539 + $0xa8] sm:$0xff]
          %v2471 = vld [vmem:[%s539 + $0xb0] sm:$0xff]
          %v2472 = vld [vmem:[%s539 + $0xb8] sm:$0xff]
          %v2473 = vld [vmem:[%s539 + $0xc0] sm:$0xff]
          %v2474 = vld [vmem:[%s539 + $0xc8] sm:$0xff]
          %v2475 = vld [vmem:[%s539 + $0xd0] sm:$0xff]
          %v2476 = vld [vmem:[%s539 + $0xd8] sm:$0xff]
          %v2477 = vld [vmem:[%s539 + $0xe0] sm:$0xff]
          %v2478 = vld [vmem:[%s539 + $0xe8] sm:$0xff]
          %v2479 = vld [vmem:[%s539 + $0xf0] sm:$0xff]
          %v2480 = vld [vmem:[%s539 + $0xf8] sm:$0xff]
          %v2481 = vld [vmem:[#allocation6] sm:$0x1]
          %v2482 = vld [vmem:[#allocation4] sm:$0xff]
          %v2483 = vld [vmem:[#allocation4 + $0x8] sm:$0xff]
          %v2484 = vld [vmem:[#allocation4 + $0x10] sm:$0xff]
          %v2485 = vld [vmem:[#allocation4 + $0x18] sm:$0xff]
          %v2486 = vld [vmem:[#allocation4 + $0x20] sm:$0xff]
          %v2487 = vld [vmem:[#allocation4 + $0x28] sm:$0xff]
          %v2488 = vld [vmem:[#allocation4 + $0x30] sm:$0xff]
          %v2489 = vld [vmem:[#allocation4 + $0x38] sm:$0xff]
          %v2490 = vld [vmem:[#allocation4 + $0x40] sm:$0xff]
          %v2491 = vld [vmem:[#allocation4 + $0x48] sm:$0xff]
          %v2492 = vld [vmem:[#allocation4 + $0x50] sm:$0xff]
          %v2493 = vld [vmem:[#allocation4 + $0x58] sm:$0xff]
          %v2494 = vld [vmem:[#allocation4 + $0x60] sm:$0xff]
          %v2495 = vld [vmem:[#allocation4 + $0x68] sm:$0xff]
          %v2496 = vld [vmem:[#allocation4 + $0x70] sm:$0xff]
          %v2497 = vld [vmem:[#allocation4 + $0x78] sm:$0xff]
          %v2498 = vld [vmem:[#allocation4 + $0x80] sm:$0xff]
          %v2499 = vld [vmem:[#allocation4 + $0x88] sm:$0xff]
          %v2500 = vld [vmem:[#allocation4 + $0x90] sm:$0xff]
          %v2501 = vld [vmem:[#allocation4 + $0x98] sm:$0xff]
          %v2502 = vld [vmem:[#allocation4 + $0xa0] sm:$0xff]
          %v2503 = vld [vmem:[#allocation4 + $0xa8] sm:$0xff]
          %v2504 = vld [vmem:[#allocation4 + $0xb0] sm:$0xff]
          %v2505 = vld [vmem:[#allocation4 + $0xb8] sm:$0xff]
          %v2506 = vld [vmem:[#allocation4 + $0xc0] sm:$0xff]
          %v2507 = vld [vmem:[#allocation4 + $0xc8] sm:$0xff]
          %v2508 = vld [vmem:[#allocation4 + $0xd0] sm:$0xff]
          %v2509 = vld [vmem:[#allocation4 + $0xd8] sm:$0xff]
          %v2510 = vld [vmem:[#allocation4 + $0xe0] sm:$0xff]
          %v2511 = vld [vmem:[#allocation4 + $0xe8] sm:$0xff]
          %v2512 = vld [vmem:[#allocation4 + $0xf0] sm:$0xff]
          %v2513 = vld [vmem:[#allocation4 + $0xf8] sm:$0xff]
          %v2514 = vrcp.pop %v2482
          %v2515 = vrcp.pop %v2483
          %v2516 = vrcp.pop %v2484
          %v2517 = vrcp.pop %v2485
          %v2518 = vrcp.pop %v2486
          %v2519 = vrcp.pop %v2487
          %v2520 = vrcp.pop %v2488
          %v2521 = vrcp.pop %v2489
          %v2522 = vrcp.pop %v2490
          %v2523 = vrcp.pop %v2491
          %v2524 = vrcp.pop %v2492
          %v2525 = vrcp.pop %v2493
          %v2526 = vrcp.pop %v2494
          %v2527 = vrcp.pop %v2495
          %v2528 = vrcp.pop %v2496
          %v2529 = vrcp.pop %v2497
          %v2530 = vrcp.pop %v2498
          %v2531 = vrcp.pop %v2499
          %v2532 = vrcp.pop %v2500
          %v2533 = vrcp.pop %v2501
          %v2534 = vrcp.pop %v2502
          %v2535 = vrcp.pop %v2503
          %v2536 = vrcp.pop %v2504
          %v2537 = vrcp.pop %v2505
          %v2538 = vrcp.pop %v2506
          %v2539 = vrcp.pop %v2507
          %v2540 = vrcp.pop %v2508
          %v2541 = vrcp.pop %v2509
          %v2542 = vrcp.pop %v2510
          %v2543 = vrcp.pop %v2511
          %v2544 = vrcp.pop %v2512
          %v2545 = vrcp.pop %v2513
          %v2546 = vld [vmem:[#allocation5] sm:$0xff]
          %v2547 = vld [vmem:[#allocation5 + $0x8] sm:$0xff]
          %v2548 = vld [vmem:[#allocation5 + $0x10] sm:$0xff]
          %v2549 = vld [vmem:[#allocation5 + $0x18] sm:$0xff]
          %v2550 = vld [vmem:[#allocation5 + $0x20] sm:$0xff]
          %v2551 = vld [vmem:[#allocation5 + $0x28] sm:$0xff]
          %v2552 = vld [vmem:[#allocation5 + $0x30] sm:$0xff]
          %v2553 = vld [vmem:[#allocation5 + $0x38] sm:$0xff]
          %v2554 = vld [vmem:[#allocation5 + $0x40] sm:$0xff]
          %v2555 = vld [vmem:[#allocation5 + $0x48] sm:$0xff]
          %v2556 = vld [vmem:[#allocation5 + $0x50] sm:$0xff]
          %v2557 = vld [vmem:[#allocation5 + $0x58] sm:$0xff]
          %v2558 = vld [vmem:[#allocation5 + $0x60] sm:$0xff]
          %v2559 = vld [vmem:[#allocation5 + $0x68] sm:$0xff]
          %v2560 = vld [vmem:[#allocation5 + $0x70] sm:$0xff]
          %v2561 = vld [vmem:[#allocation5 + $0x78] sm:$0xff]
          %v2562 = vld [vmem:[#allocation5 + $0x80] sm:$0xff]
          %v2563 = vld [vmem:[#allocation5 + $0x88] sm:$0xff]
          %v2564 = vld [vmem:[#allocation5 + $0x90] sm:$0xff]
          %v2565 = vld [vmem:[#allocation5 + $0x98] sm:$0xff]
          %v2566 = vld [vmem:[#allocation5 + $0xa0] sm:$0xff]
          %v2567 = vld [vmem:[#allocation5 + $0xa8] sm:$0xff]
          %v2568 = vld [vmem:[#allocation5 + $0xb0] sm:$0xff]
          %v2569 = vld [vmem:[#allocation5 + $0xb8] sm:$0xff]
          %v2570 = vld [vmem:[#allocation5 + $0xc0] sm:$0xff]
          %v2571 = vld [vmem:[#allocation5 + $0xc8] sm:$0xff]
          %v2572 = vld [vmem:[#allocation5 + $0xd0] sm:$0xff]
          %v2573 = vld [vmem:[#allocation5 + $0xd8] sm:$0xff]
          %v2574 = vld [vmem:[#allocation5 + $0xe0] sm:$0xff]
          %v2575 = vld [vmem:[#allocation5 + $0xe8] sm:$0xff]
          %v2576 = vld [vmem:[#allocation5 + $0xf0] sm:$0xff]
          %v2577 = vld [vmem:[#allocation5 + $0xf8] sm:$0xff]
          %v2578 = vmul.f32 %v2546, %v2514
          %v2579 = vmul.f32 %v2547, %v2515
          %v2580 = vmul.f32 %v2548, %v2516
          %v2581 = vmul.f32 %v2549, %v2517
          %v2582 = vmul.f32 %v2550, %v2518
          %v2583 = vmul.f32 %v2551, %v2519
          %v2584 = vmul.f32 %v2552, %v2520
          %v2585 = vmul.f32 %v2553, %v2521
          %v2586 = vmul.f32 %v2554, %v2522
          %v2587 = vmul.f32 %v2555, %v2523
          %v2588 = vmul.f32 %v2556, %v2524
          %v2589 = vmul.f32 %v2557, %v2525
          %v2590 = vmul.f32 %v2558, %v2526
          %v2591 = vmul.f32 %v2559, %v2527
          %v2592 = vmul.f32 %v2560, %v2528
          %v2593 = vmul.f32 %v2561, %v2529
          %v2594 = vmul.f32 %v2562, %v2530
          %v2595 = vmul.f32 %v2563, %v2531
          %v2596 = vmul.f32 %v2564, %v2532
          %v2597 = vmul.f32 %v2565, %v2533
          %v2598 = vmul.f32 %v2566, %v2534
          %v2599 = vmul.f32 %v2567, %v2535
          %v2600 = vmul.f32 %v2568, %v2536
          %v2601 = vmul.f32 %v2569, %v2537
          %v2602 = vmul.f32 %v2570, %v2538
          %v2603 = vmul.f32 %v2571, %v2539
          %v2604 = vmul.f32 %v2572, %v2540
          %v2605 = vmul.f32 %v2573, %v2541
          %v2606 = vmul.f32 %v2574, %v2542
          %v2607 = vmul.f32 %v2575, %v2543
          %v2608 = vmul.f32 %v2576, %v2544
          %v2609 = vmul.f32 %v2577, %v2545
          %v2611 = vperm.slane %v2481, 0
          %v2613 = vadd.f32 %v2611, %v2578
          %v2614 = vadd.f32 %v2611, %v2579
          %v2615 = vadd.f32 %v2611, %v2580
          %v2616 = vadd.f32 %v2611, %v2581
          %v2617 = vadd.f32 %v2611, %v2582
          %v2618 = vadd.f32 %v2611, %v2583
          %v2619 = vadd.f32 %v2611, %v2584
          %v2620 = vadd.f32 %v2611, %v2585
          %v2621 = vadd.f32 %v2611, %v2586
          %v2622 = vadd.f32 %v2611, %v2587
          %v2623 = vadd.f32 %v2611, %v2588
          %v2624 = vadd.f32 %v2611, %v2589
          %v2625 = vadd.f32 %v2611, %v2590
          %v2626 = vadd.f32 %v2611, %v2591
          %v2627 = vadd.f32 %v2611, %v2592
          %v2628 = vadd.f32 %v2611, %v2593
          %v2629 = vadd.f32 %v2611, %v2594
          %v2630 = vadd.f32 %v2611, %v2595
          %v2631 = vadd.f32 %v2611, %v2596
          %v2632 = vadd.f32 %v2611, %v2597
          %v2633 = vadd.f32 %v2611, %v2598
          %v2634 = vadd.f32 %v2611, %v2599
          %v2635 = vadd.f32 %v2611, %v2600
          %v2636 = vadd.f32 %v2611, %v2601
          %v2637 = vadd.f32 %v2611, %v2602
          %v2638 = vadd.f32 %v2611, %v2603
          %v2639 = vadd.f32 %v2611, %v2604
          %v2640 = vadd.f32 %v2611, %v2605
          %v2641 = vadd.f32 %v2611, %v2606
          %v2642 = vadd.f32 %v2611, %v2607
          %v2643 = vadd.f32 %v2611, %v2608
          %v2644 = vadd.f32 %v2611, %v2609
          %2646 = vset.pattern.permute.xlu0 0
          %2647 = vperm.xlu0 %2646, %v2613
          %v2648 = vpop.permute.xlu0 %2647
          %2651 = vset.pattern.permute.xlu0 0
          %2652 = vperm.xlu0 %2651, %v2614
          %v2653 = vpop.permute.xlu0 %2652
          %2656 = vset.pattern.permute.xlu0 0
          %2657 = vperm.xlu0 %2656, %v2615
          %v2658 = vpop.permute.xlu0 %2657
          %2661 = vset.pattern.permute.xlu0 0
          %2662 = vperm.xlu0 %2661, %v2616
          %v2663 = vpop.permute.xlu0 %2662
          %2666 = vset.pattern.permute.xlu0 0
          %2667 = vperm.xlu0 %2666, %v2617
          %v2668 = vpop.permute.xlu0 %2667
          %2671 = vset.pattern.permute.xlu0 0
          %2672 = vperm.xlu0 %2671, %v2618
          %v2673 = vpop.permute.xlu0 %2672
          %2676 = vset.pattern.permute.xlu0 0
          %2677 = vperm.xlu0 %2676, %v2619
          %v2678 = vpop.permute.xlu0 %2677
          %2681 = vset.pattern.permute.xlu0 0
          %2682 = vperm.xlu0 %2681, %v2620
          %v2683 = vpop.permute.xlu0 %2682
          %2686 = vset.pattern.permute.xlu0 0
          %2687 = vperm.xlu0 %2686, %v2621
          %v2688 = vpop.permute.xlu0 %2687
          %2691 = vset.pattern.permute.xlu0 0
          %2692 = vperm.xlu0 %2691, %v2622
          %v2693 = vpop.permute.xlu0 %2692
          %2696 = vset.pattern.permute.xlu0 0
          %2697 = vperm.xlu0 %2696, %v2623
          %v2698 = vpop.permute.xlu0 %2697
          %2701 = vset.pattern.permute.xlu0 0
          %2702 = vperm.xlu0 %2701, %v2624
          %v2703 = vpop.permute.xlu0 %2702
          %2706 = vset.pattern.permute.xlu0 0
          %2707 = vperm.xlu0 %2706, %v2625
          %v2708 = vpop.permute.xlu0 %2707
          %2711 = vset.pattern.permute.xlu0 0
          %2712 = vperm.xlu0 %2711, %v2626
          %v2713 = vpop.permute.xlu0 %2712
          %2716 = vset.pattern.permute.xlu0 0
          %2717 = vperm.xlu0 %2716, %v2627
          %v2718 = vpop.permute.xlu0 %2717
          %2721 = vset.pattern.permute.xlu0 0
          %2722 = vperm.xlu0 %2721, %v2628
          %v2723 = vpop.permute.xlu0 %2722
          %2726 = vset.pattern.permute.xlu0 0
          %2727 = vperm.xlu0 %2726, %v2629
          %v2728 = vpop.permute.xlu0 %2727
          %2731 = vset.pattern.permute.xlu0 0
          %2732 = vperm.xlu0 %2731, %v2630
          %v2733 = vpop.permute.xlu0 %2732
          %2736 = vset.pattern.permute.xlu0 0
          %2737 = vperm.xlu0 %2736, %v2631
          %v2738 = vpop.permute.xlu0 %2737
          %2741 = vset.pattern.permute.xlu0 0
          %2742 = vperm.xlu0 %2741, %v2632
          %v2743 = vpop.permute.xlu0 %2742
          %2746 = vset.pattern.permute.xlu0 0
          %2747 = vperm.xlu0 %2746, %v2633
          %v2748 = vpop.permute.xlu0 %2747
          %2751 = vset.pattern.permute.xlu0 0
          %2752 = vperm.xlu0 %2751, %v2634
          %v2753 = vpop.permute.xlu0 %2752
          %2756 = vset.pattern.permute.xlu0 0
          %2757 = vperm.xlu0 %2756, %v2635
          %v2758 = vpop.permute.xlu0 %2757
          %2761 = vset.pattern.permute.xlu0 0
          %2762 = vperm.xlu0 %2761, %v2636
          %v2763 = vpop.permute.xlu0 %2762
          %2766 = vset.pattern.permute.xlu0 0
          %2767 = vperm.xlu0 %2766, %v2637
          %v2768 = vpop.permute.xlu0 %2767
          %2771 = vset.pattern.permute.xlu0 0
          %2772 = vperm.xlu0 %2771, %v2638
          %v2773 = vpop.permute.xlu0 %2772
          %2776 = vset.pattern.permute.xlu0 0
          %2777 = vperm.xlu0 %2776, %v2639
          %v2778 = vpop.permute.xlu0 %2777
          %2781 = vset.pattern.permute.xlu0 0
          %2782 = vperm.xlu0 %2781, %v2640
          %v2783 = vpop.permute.xlu0 %2782
          %2786 = vset.pattern.permute.xlu0 0
          %2787 = vperm.xlu0 %2786, %v2641
          %v2788 = vpop.permute.xlu0 %2787
          %2791 = vset.pattern.permute.xlu0 0
          %2792 = vperm.xlu0 %2791, %v2642
          %v2793 = vpop.permute.xlu0 %2792
          %2796 = vset.pattern.permute.xlu0 0
          %2797 = vperm.xlu0 %2796, %v2643
          %v2798 = vpop.permute.xlu0 %2797
          %2801 = vset.pattern.permute.xlu0 0
          %2802 = vperm.xlu0 %2801, %v2644
          %v2803 = vpop.permute.xlu0 %2802
          %v2805 = vadd.f32 %v2449, %v2648
          %v2806 = vadd.f32 %v2450, %v2653
          %v2807 = vadd.f32 %v2451, %v2658
          %v2808 = vadd.f32 %v2452, %v2663
          %v2809 = vadd.f32 %v2453, %v2668
          %v2810 = vadd.f32 %v2454, %v2673
          %v2811 = vadd.f32 %v2455, %v2678
          %v2812 = vadd.f32 %v2456, %v2683
          %v2813 = vadd.f32 %v2457, %v2688
          %v2814 = vadd.f32 %v2458, %v2693
          %v2815 = vadd.f32 %v2459, %v2698
          %v2816 = vadd.f32 %v2460, %v2703
          %v2817 = vadd.f32 %v2461, %v2708
          %v2818 = vadd.f32 %v2462, %v2713
          %v2819 = vadd.f32 %v2463, %v2718
          %v2820 = vadd.f32 %v2464, %v2723
          %v2821 = vadd.f32 %v2465, %v2728
          %v2822 = vadd.f32 %v2466, %v2733
          %v2823 = vadd.f32 %v2467, %v2738
          %v2824 = vadd.f32 %v2468, %v2743
          %v2825 = vadd.f32 %v2469, %v2748
          %v2826 = vadd.f32 %v2470, %v2753
          %v2827 = vadd.f32 %v2471, %v2758
          %v2828 = vadd.f32 %v2472, %v2763
          %v2829 = vadd.f32 %v2473, %v2768
          %v2830 = vadd.f32 %v2474, %v2773
          %v2831 = vadd.f32 %v2475, %v2778
          %v2832 = vadd.f32 %v2476, %v2783
          %v2833 = vadd.f32 %v2477, %v2788
          %v2834 = vadd.f32 %v2478, %v2793
          %v2835 = vadd.f32 %v2479, %v2798
          %v2836 = vadd.f32 %v2480, %v2803
          %2837 = vadd.xlane.f32.xlu0 %v2805
          %v2838 = vpop.xlane.xlu0 %2837
          %2839 = vadd.xlane.f32.xlu0 %v2806
          %v2840 = vpop.xlane.xlu0 %2839
          %2841 = vadd.xlane.f32.xlu0 %v2807
          %v2842 = vpop.xlane.xlu0 %2841
          %2843 = vadd.xlane.f32.xlu0 %v2808
          %v2844 = vpop.xlane.xlu0 %2843
          %2845 = vadd.xlane.f32.xlu0 %v2809
          %v2846 = vpop.xlane.xlu0 %2845
          %2847 = vadd.xlane.f32.xlu0 %v2810
          %v2848 = vpop.xlane.xlu0 %2847
          %2849 = vadd.xlane.f32.xlu0 %v2811
          %v2850 = vpop.xlane.xlu0 %2849
          %2851 = vadd.xlane.f32.xlu0 %v2812
          %v2852 = vpop.xlane.xlu0 %2851
          %2853 = vadd.xlane.f32.xlu0 %v2813
          %v2854 = vpop.xlane.xlu0 %2853
          %2855 = vadd.xlane.f32.xlu0 %v2814
          %v2856 = vpop.xlane.xlu0 %2855
          %2857 = vadd.xlane.f32.xlu0 %v2815
          %v2858 = vpop.xlane.xlu0 %2857
          %2859 = vadd.xlane.f32.xlu0 %v2816
          %v2860 = vpop.xlane.xlu0 %2859
          %2861 = vadd.xlane.f32.xlu0 %v2817
          %v2862 = vpop.xlane.xlu0 %2861
          %2863 = vadd.xlane.f32.xlu0 %v2818
          %v2864 = vpop.xlane.xlu0 %2863
          %2865 = vadd.xlane.f32.xlu0 %v2819
          %v2866 = vpop.xlane.xlu0 %2865
          %2867 = vadd.xlane.f32.xlu0 %v2820
          %v2868 = vpop.xlane.xlu0 %2867
          %2869 = vadd.xlane.f32.xlu0 %v2821
          %v2870 = vpop.xlane.xlu0 %2869
          %2871 = vadd.xlane.f32.xlu0 %v2822
          %v2872 = vpop.xlane.xlu0 %2871
          %2873 = vadd.xlane.f32.xlu0 %v2823
          %v2874 = vpop.xlane.xlu0 %2873
          %2875 = vadd.xlane.f32.xlu0 %v2824
          %v2876 = vpop.xlane.xlu0 %2875
          %2877 = vadd.xlane.f32.xlu0 %v2825
          %v2878 = vpop.xlane.xlu0 %2877
          %2879 = vadd.xlane.f32.xlu0 %v2826
          %v2880 = vpop.xlane.xlu0 %2879
          %2881 = vadd.xlane.f32.xlu0 %v2827
          %v2882 = vpop.xlane.xlu0 %2881
          %2883 = vadd.xlane.f32.xlu0 %v2828
          %v2884 = vpop.xlane.xlu0 %2883
          %2885 = vadd.xlane.f32.xlu0 %v2829
          %v2886 = vpop.xlane.xlu0 %2885
          %2887 = vadd.xlane.f32.xlu0 %v2830
          %v2888 = vpop.xlane.xlu0 %2887
          %2889 = vadd.xlane.f32.xlu0 %v2831
          %v2890 = vpop.xlane.xlu0 %2889
          %2891 = vadd.xlane.f32.xlu0 %v2832
          %v2892 = vpop.xlane.xlu0 %2891
          %2893 = vadd.xlane.f32.xlu0 %v2833
          %v2894 = vpop.xlane.xlu0 %2893
          %2895 = vadd.xlane.f32.xlu0 %v2834
          %v2896 = vpop.xlane.xlu0 %2895
          %2897 = vadd.xlane.f32.xlu0 %v2835
          %v2898 = vpop.xlane.xlu0 %2897
          %2899 = vadd.xlane.f32.xlu0 %v2836
          %v2900 = vpop.xlane.xlu0 %2899
          %v2901 = vrcp.pop 128.0
          %v2902 = vmul.f32 128.0, %v2901
          %v2903 = vsub.f32 1.0, %v2902
          %v2904 = vmul.f32 %v2901, %v2903
          %v2905 = vadd.f32 %v2901, %v2904
          %vm2906 = vweird.f32 %v2901
          %v2907 = vsel %vm2906, %v2901, %v2905
          %v2908 = vmul.f32 %v2838, %v2907
          %v2909 = vmul.f32 %v2840, %v2907
          %v2910 = vmul.f32 %v2842, %v2907
          %v2911 = vmul.f32 %v2844, %v2907
          %v2912 = vmul.f32 %v2846, %v2907
          %v2913 = vmul.f32 %v2848, %v2907
          %v2914 = vmul.f32 %v2850, %v2907
          %v2915 = vmul.f32 %v2852, %v2907
          %v2916 = vmul.f32 %v2854, %v2907
          %v2917 = vmul.f32 %v2856, %v2907
          %v2918 = vmul.f32 %v2858, %v2907
          %v2919 = vmul.f32 %v2860, %v2907
          %v2920 = vmul.f32 %v2862, %v2907
          %v2921 = vmul.f32 %v2864, %v2907
          %v2922 = vmul.f32 %v2866, %v2907
          %v2923 = vmul.f32 %v2868, %v2907
          %v2924 = vmul.f32 %v2870, %v2907
          %v2925 = vmul.f32 %v2872, %v2907
          %v2926 = vmul.f32 %v2874, %v2907
          %v2927 = vmul.f32 %v2876, %v2907
          %v2928 = vmul.f32 %v2878, %v2907
          %v2929 = vmul.f32 %v2880, %v2907
          %v2930 = vmul.f32 %v2882, %v2907
          %v2931 = vmul.f32 %v2884, %v2907
          %v2932 = vmul.f32 %v2886, %v2907
          %v2933 = vmul.f32 %v2888, %v2907
          %v2934 = vmul.f32 %v2890, %v2907
          %v2935 = vmul.f32 %v2892, %v2907
          %v2936 = vmul.f32 %v2894, %v2907
          %v2937 = vmul.f32 %v2896, %v2907
          %v2938 = vmul.f32 %v2898, %v2907
          %v2939 = vmul.f32 %v2900, %v2907
          %v2940 = vsub.f32 %v2805, %v2908
          %v2941 = vsub.f32 %v2806, %v2909
          %v2942 = vsub.f32 %v2807, %v2910
          %v2943 = vsub.f32 %v2808, %v2911
          %v2944 = vsub.f32 %v2809, %v2912
          %v2945 = vsub.f32 %v2810, %v2913
          %v2946 = vsub.f32 %v2811, %v2914
          %v2947 = vsub.f32 %v2812, %v2915
          %v2948 = vsub.f32 %v2813, %v2916
          %v2949 = vsub.f32 %v2814, %v2917
          %v2950 = vsub.f32 %v2815, %v2918
          %v2951 = vsub.f32 %v2816, %v2919
          %v2952 = vsub.f32 %v2817, %v2920
          %v2953 = vsub.f32 %v2818, %v2921
          %v2954 = vsub.f32 %v2819, %v2922
          %v2955 = vsub.f32 %v2820, %v2923
          %v2956 = vsub.f32 %v2821, %v2924
          %v2957 = vsub.f32 %v2822, %v2925
          %v2958 = vsub.f32 %v2823, %v2926
          %v2959 = vsub.f32 %v2824, %v2927
          %v2960 = vsub.f32 %v2825, %v2928
          %v2961 = vsub.f32 %v2826, %v2929
          %v2962 = vsub.f32 %v2827, %v2930
          %v2963 = vsub.f32 %v2828, %v2931
          %v2964 = vsub.f32 %v2829, %v2932
          %v2965 = vsub.f32 %v2830, %v2933
          %v2966 = vsub.f32 %v2831, %v2934
          %v2967 = vsub.f32 %v2832, %v2935
          %v2968 = vsub.f32 %v2833, %v2936
          %v2969 = vsub.f32 %v2834, %v2937
          %v2970 = vsub.f32 %v2835, %v2938
          %v2971 = vsub.f32 %v2836, %v2939
          %v2972 = vmul.f32 %v2940, %v2940
          %v2973 = vmul.f32 %v2941, %v2941
          %v2974 = vmul.f32 %v2942, %v2942
          %v2975 = vmul.f32 %v2943, %v2943
          %v2976 = vmul.f32 %v2944, %v2944
          %v2977 = vmul.f32 %v2945, %v2945
          %v2978 = vmul.f32 %v2946, %v2946
          %v2979 = vmul.f32 %v2947, %v2947
          %v2980 = vmul.f32 %v2948, %v2948
          %v2981 = vmul.f32 %v2949, %v2949
          %v2982 = vmul.f32 %v2950, %v2950
          %v2983 = vmul.f32 %v2951, %v2951
          %v2984 = vmul.f32 %v2952, %v2952
          %v2985 = vmul.f32 %v2953, %v2953
          %v2986 = vmul.f32 %v2954, %v2954
          %v2987 = vmul.f32 %v2955, %v2955
          %v2988 = vmul.f32 %v2956, %v2956
          %v2989 = vmul.f32 %v2957, %v2957
          %v2990 = vmul.f32 %v2958, %v2958
          %v2991 = vmul.f32 %v2959, %v2959
          %v2992 = vmul.f32 %v2960, %v2960
          %v2993 = vmul.f32 %v2961, %v2961
          %v2994 = vmul.f32 %v2962, %v2962
          %v2995 = vmul.f32 %v2963, %v2963
          %v2996 = vmul.f32 %v2964, %v2964
          %v2997 = vmul.f32 %v2965, %v2965
          %v2998 = vmul.f32 %v2966, %v2966
          %v2999 = vmul.f32 %v2967, %v2967
          %v3000 = vmul.f32 %v2968, %v2968
          %v3001 = vmul.f32 %v2969, %v2969
          %v3002 = vmul.f32 %v2970, %v2970
          %v3003 = vmul.f32 %v2971, %v2971
          %3004 = vadd.xlane.f32.xlu0 %v2972
          %v3005 = vpop.xlane.xlu0 %3004
          %3006 = vadd.xlane.f32.xlu0 %v2973
          %v3007 = vpop.xlane.xlu0 %3006
          %3008 = vadd.xlane.f32.xlu0 %v2974
          %v3009 = vpop.xlane.xlu0 %3008
          %3010 = vadd.xlane.f32.xlu0 %v2975
          %v3011 = vpop.xlane.xlu0 %3010
          %3012 = vadd.xlane.f32.xlu0 %v2976
          %v3013 = vpop.xlane.xlu0 %3012
          %3014 = vadd.xlane.f32.xlu0 %v2977
          %v3015 = vpop.xlane.xlu0 %3014
          %3016 = vadd.xlane.f32.xlu0 %v2978
          %v3017 = vpop.xlane.xlu0 %3016
          %3018 = vadd.xlane.f32.xlu0 %v2979
          %v3019 = vpop.xlane.xlu0 %3018
          %3020 = vadd.xlane.f32.xlu0 %v2980
          %v3021 = vpop.xlane.xlu0 %3020
          %3022 = vadd.xlane.f32.xlu0 %v2981
          %v3023 = vpop.xlane.xlu0 %3022
          %3024 = vadd.xlane.f32.xlu0 %v2982
          %v3025 = vpop.xlane.xlu0 %3024
          %3026 = vadd.xlane.f32.xlu0 %v2983
          %v3027 = vpop.xlane.xlu0 %3026
          %3028 = vadd.xlane.f32.xlu0 %v2984
          %v3029 = vpop.xlane.xlu0 %3028
          %3030 = vadd.xlane.f32.xlu0 %v2985
          %v3031 = vpop.xlane.xlu0 %3030
          %3032 = vadd.xlane.f32.xlu0 %v2986
          %v3033 = vpop.xlane.xlu0 %3032
          %3034 = vadd.xlane.f32.xlu0 %v2987
          %v3035 = vpop.xlane.xlu0 %3034
          %3036 = vadd.xlane.f32.xlu0 %v2988
          %v3037 = vpop.xlane.xlu0 %3036
          %3038 = vadd.xlane.f32.xlu0 %v2989
          %v3039 = vpop.xlane.xlu0 %3038
          %3040 = vadd.xlane.f32.xlu0 %v2990
          %v3041 = vpop.xlane.xlu0 %3040
          %3042 = vadd.xlane.f32.xlu0 %v2991
          %v3043 = vpop.xlane.xlu0 %3042
          %3044 = vadd.xlane.f32.xlu0 %v2992
          %v3045 = vpop.xlane.xlu0 %3044
          %3046 = vadd.xlane.f32.xlu0 %v2993
          %v3047 = vpop.xlane.xlu0 %3046
          %3048 = vadd.xlane.f32.xlu0 %v2994
          %v3049 = vpop.xlane.xlu0 %3048
          %3050 = vadd.xlane.f32.xlu0 %v2995
          %v3051 = vpop.xlane.xlu0 %3050
          %3052 = vadd.xlane.f32.xlu0 %v2996
          %v3053 = vpop.xlane.xlu0 %3052
          %3054 = vadd.xlane.f32.xlu0 %v2997
          %v3055 = vpop.xlane.xlu0 %3054
          %3056 = vadd.xlane.f32.xlu0 %v2998
          %v3057 = vpop.xlane.xlu0 %3056
          %3058 = vadd.xlane.f32.xlu0 %v2999
          %v3059 = vpop.xlane.xlu0 %3058
          %3060 = vadd.xlane.f32.xlu0 %v3000
          %v3061 = vpop.xlane.xlu0 %3060
          %3062 = vadd.xlane.f32.xlu0 %v3001
          %v3063 = vpop.xlane.xlu0 %3062
          %3064 = vadd.xlane.f32.xlu0 %v3002
          %v3065 = vpop.xlane.xlu0 %3064
          %3066 = vadd.xlane.f32.xlu0 %v3003
          %v3067 = vpop.xlane.xlu0 %3066
          %v3068 = vmul.f32 %v3005, %v2907
          %v3069 = vmul.f32 %v3007, %v2907
          %v3070 = vmul.f32 %v3009, %v2907
          %v3071 = vmul.f32 %v3011, %v2907
          %v3072 = vmul.f32 %v3013, %v2907
          %v3073 = vmul.f32 %v3015, %v2907
          %v3074 = vmul.f32 %v3017, %v2907
          %v3075 = vmul.f32 %v3019, %v2907
          %v3076 = vmul.f32 %v3021, %v2907
          %v3077 = vmul.f32 %v3023, %v2907
          %v3078 = vmul.f32 %v3025, %v2907
          %v3079 = vmul.f32 %v3027, %v2907
          %v3080 = vmul.f32 %v3029, %v2907
          %v3081 = vmul.f32 %v3031, %v2907
          %v3082 = vmul.f32 %v3033, %v2907
          %v3083 = vmul.f32 %v3035, %v2907
          %v3084 = vmul.f32 %v3037, %v2907
          %v3085 = vmul.f32 %v3039, %v2907
          %v3086 = vmul.f32 %v3041, %v2907
          %v3087 = vmul.f32 %v3043, %v2907
          %v3088 = vmul.f32 %v3045, %v2907
          %v3089 = vmul.f32 %v3047, %v2907
          %v3090 = vmul.f32 %v3049, %v2907
          %v3091 = vmul.f32 %v3051, %v2907
          %v3092 = vmul.f32 %v3053, %v2907
          %v3093 = vmul.f32 %v3055, %v2907
          %v3094 = vmul.f32 %v3057, %v2907
          %v3095 = vmul.f32 %v3059, %v2907
          %v3096 = vmul.f32 %v3061, %v2907
          %v3097 = vmul.f32 %v3063, %v2907
          %v3098 = vmul.f32 %v3065, %v2907
          %v3099 = vmul.f32 %v3067, %v2907
          %v3100 = vadd.f32 %v3068, 1e-05
          %v3101 = vadd.f32 %v3069, 1e-05
          %v3102 = vadd.f32 %v3070, 1e-05
          %v3103 = vadd.f32 %v3071, 1e-05
          %v3104 = vadd.f32 %v3072, 1e-05
          %v3105 = vadd.f32 %v3073, 1e-05
          %v3106 = vadd.f32 %v3074, 1e-05
          %v3107 = vadd.f32 %v3075, 1e-05
          %v3108 = vadd.f32 %v3076, 1e-05
          %v3109 = vadd.f32 %v3077, 1e-05
          %v3110 = vadd.f32 %v3078, 1e-05
          %v3111 = vadd.f32 %v3079, 1e-05
          %v3112 = vadd.f32 %v3080, 1e-05
          %v3113 = vadd.f32 %v3081, 1e-05
          %v3114 = vadd.f32 %v3082, 1e-05
          %v3115 = vadd.f32 %v3083, 1e-05
          %v3116 = vadd.f32 %v3084, 1e-05
          %v3117 = vadd.f32 %v3085, 1e-05
          %v3118 = vadd.f32 %v3086, 1e-05
          %v3119 = vadd.f32 %v3087, 1e-05
          %v3120 = vadd.f32 %v3088, 1e-05
          %v3121 = vadd.f32 %v3089, 1e-05
          %v3122 = vadd.f32 %v3090, 1e-05
          %v3123 = vadd.f32 %v3091, 1e-05
          %v3124 = vadd.f32 %v3092, 1e-05
          %v3125 = vadd.f32 %v3093, 1e-05
          %v3126 = vadd.f32 %v3094, 1e-05
          %v3127 = vadd.f32 %v3095, 1e-05
          %v3128 = vadd.f32 %v3096, 1e-05
          %v3129 = vadd.f32 %v3097, 1e-05
          %v3130 = vadd.f32 %v3098, 1e-05
          %v3131 = vadd.f32 %v3099, 1e-05
          %v3132 = vrsqrt.pop %v3100
          %v3133 = vmul.f32 %v3132, %v3100
          %v3134 = vmul.f32 %v3133, %v3132
          %v3135 = vmul.f32 0.5, %v3134
          %v3136 = vsub.f32 1.5, %v3135
          %v3137 = vmul.f32 %v3132, %v3136
          %vm3138 = vweird.f32 %v3100
          %vm3139 = vweird.f32 %v3132
          %vm3140 = vmor %vm3138, %vm3139
          %v3141 = vsel %vm3140, %v3132, %v3137
          %v3142 = vrsqrt.pop %v3101
          %v3143 = vmul.f32 %v3142, %v3101
          %v3144 = vmul.f32 %v3143, %v3142
          %v3145 = vmul.f32 0.5, %v3144
          %v3146 = vsub.f32 1.5, %v3145
          %v3147 = vmul.f32 %v3142, %v3146
          %vm3148 = vweird.f32 %v3101
          %vm3149 = vweird.f32 %v3142
          %vm3150 = vmor %vm3148, %vm3149
          %v3151 = vsel %vm3150, %v3142, %v3147
          %v3152 = vrsqrt.pop %v3102
          %v3153 = vmul.f32 %v3152, %v3102
          %v3154 = vmul.f32 %v3153, %v3152
          %v3155 = vmul.f32 0.5, %v3154
          %v3156 = vsub.f32 1.5, %v3155
          %v3157 = vmul.f32 %v3152, %v3156
          %vm3158 = vweird.f32 %v3102
          %vm3159 = vweird.f32 %v3152
          %vm3160 = vmor %vm3158, %vm3159
          %v3161 = vsel %vm3160, %v3152, %v3157
          %v3162 = vrsqrt.pop %v3103
          %v3163 = vmul.f32 %v3162, %v3103
          %v3164 = vmul.f32 %v3163, %v3162
          %v3165 = vmul.f32 0.5, %v3164
          %v3166 = vsub.f32 1.5, %v3165
          %v3167 = vmul.f32 %v3162, %v3166
          %vm3168 = vweird.f32 %v3103
          %vm3169 = vweird.f32 %v3162
          %vm3170 = vmor %vm3168, %vm3169
          %v3171 = vsel %vm3170, %v3162, %v3167
          %v3172 = vrsqrt.pop %v3104
          %v3173 = vmul.f32 %v3172, %v3104
          %v3174 = vmul.f32 %v3173, %v3172
          %v3175 = vmul.f32 0.5, %v3174
          %v3176 = vsub.f32 1.5, %v3175
          %v3177 = vmul.f32 %v3172, %v3176
          %vm3178 = vweird.f32 %v3104
          %vm3179 = vweird.f32 %v3172
          %vm3180 = vmor %vm3178, %vm3179
          %v3181 = vsel %vm3180, %v3172, %v3177
          %v3182 = vrsqrt.pop %v3105
          %v3183 = vmul.f32 %v3182, %v3105
          %v3184 = vmul.f32 %v3183, %v3182
          %v3185 = vmul.f32 0.5, %v3184
          %v3186 = vsub.f32 1.5, %v3185
          %v3187 = vmul.f32 %v3182, %v3186
          %vm3188 = vweird.f32 %v3105
          %vm3189 = vweird.f32 %v3182
          %vm3190 = vmor %vm3188, %vm3189
          %v3191 = vsel %vm3190, %v3182, %v3187
          %v3192 = vrsqrt.pop %v3106
          %v3193 = vmul.f32 %v3192, %v3106
          %v3194 = vmul.f32 %v3193, %v3192
          %v3195 = vmul.f32 0.5, %v3194
          %v3196 = vsub.f32 1.5, %v3195
          %v3197 = vmul.f32 %v3192, %v3196
          %vm3198 = vweird.f32 %v3106
          %vm3199 = vweird.f32 %v3192
          %vm3200 = vmor %vm3198, %vm3199
          %v3201 = vsel %vm3200, %v3192, %v3197
          %v3202 = vrsqrt.pop %v3107
          %v3203 = vmul.f32 %v3202, %v3107
          %v3204 = vmul.f32 %v3203, %v3202
          %v3205 = vmul.f32 0.5, %v3204
          %v3206 = vsub.f32 1.5, %v3205
          %v3207 = vmul.f32 %v3202, %v3206
          %vm3208 = vweird.f32 %v3107
          %vm3209 = vweird.f32 %v3202
          %vm3210 = vmor %vm3208, %vm3209
          %v3211 = vsel %vm3210, %v3202, %v3207
          %v3212 = vrsqrt.pop %v3108
          %v3213 = vmul.f32 %v3212, %v3108
          %v3214 = vmul.f32 %v3213, %v3212
          %v3215 = vmul.f32 0.5, %v3214
          %v3216 = vsub.f32 1.5, %v3215
          %v3217 = vmul.f32 %v3212, %v3216
          %vm3218 = vweird.f32 %v3108
          %vm3219 = vweird.f32 %v3212
          %vm3220 = vmor %vm3218, %vm3219
          %v3221 = vsel %vm3220, %v3212, %v3217
          %v3222 = vrsqrt.pop %v3109
          %v3223 = vmul.f32 %v3222, %v3109
          %v3224 = vmul.f32 %v3223, %v3222
          %v3225 = vmul.f32 0.5, %v3224
          %v3226 = vsub.f32 1.5, %v3225
          %v3227 = vmul.f32 %v3222, %v3226
          %vm3228 = vweird.f32 %v3109
          %vm3229 = vweird.f32 %v3222
          %vm3230 = vmor %vm3228, %vm3229
          %v3231 = vsel %vm3230, %v3222, %v3227
          %v3232 = vrsqrt.pop %v3110
          %v3233 = vmul.f32 %v3232, %v3110
          %v3234 = vmul.f32 %v3233, %v3232
          %v3235 = vmul.f32 0.5, %v3234
          %v3236 = vsub.f32 1.5, %v3235
          %v3237 = vmul.f32 %v3232, %v3236
          %vm3238 = vweird.f32 %v3110
          %vm3239 = vweird.f32 %v3232
          %vm3240 = vmor %vm3238, %vm3239
          %v3241 = vsel %vm3240, %v3232, %v3237
          %v3242 = vrsqrt.pop %v3111
          %v3243 = vmul.f32 %v3242, %v3111
          %v3244 = vmul.f32 %v3243, %v3242
          %v3245 = vmul.f32 0.5, %v3244
          %v3246 = vsub.f32 1.5, %v3245
          %v3247 = vmul.f32 %v3242, %v3246
          %vm3248 = vweird.f32 %v3111
          %vm3249 = vweird.f32 %v3242
          %vm3250 = vmor %vm3248, %vm3249
          %v3251 = vsel %vm3250, %v3242, %v3247
          %v3252 = vrsqrt.pop %v3112
          %v3253 = vmul.f32 %v3252, %v3112
          %v3254 = vmul.f32 %v3253, %v3252
          %v3255 = vmul.f32 0.5, %v3254
          %v3256 = vsub.f32 1.5, %v3255
          %v3257 = vmul.f32 %v3252, %v3256
          %vm3258 = vweird.f32 %v3112
          %vm3259 = vweird.f32 %v3252
          %vm3260 = vmor %vm3258, %vm3259
          %v3261 = vsel %vm3260, %v3252, %v3257
          %v3262 = vrsqrt.pop %v3113
          %v3263 = vmul.f32 %v3262, %v3113
          %v3264 = vmul.f32 %v3263, %v3262
          %v3265 = vmul.f32 0.5, %v3264
          %v3266 = vsub.f32 1.5, %v3265
          %v3267 = vmul.f32 %v3262, %v3266
          %vm3268 = vweird.f32 %v3113
          %vm3269 = vweird.f32 %v3262
          %vm3270 = vmor %vm3268, %vm3269
          %v3271 = vsel %vm3270, %v3262, %v3267
          %v3272 = vrsqrt.pop %v3114
          %v3273 = vmul.f32 %v3272, %v3114
          %v3274 = vmul.f32 %v3273, %v3272
          %v3275 = vmul.f32 0.5, %v3274
          %v3276 = vsub.f32 1.5, %v3275
          %v3277 = vmul.f32 %v3272, %v3276
          %vm3278 = vweird.f32 %v3114
          %vm3279 = vweird.f32 %v3272
          %vm3280 = vmor %vm3278, %vm3279
          %v3281 = vsel %vm3280, %v3272, %v3277
          %v3282 = vrsqrt.pop %v3115
          %v3283 = vmul.f32 %v3282, %v3115
          %v3284 = vmul.f32 %v3283, %v3282
          %v3285 = vmul.f32 0.5, %v3284
          %v3286 = vsub.f32 1.5, %v3285
          %v3287 = vmul.f32 %v3282, %v3286
          %vm3288 = vweird.f32 %v3115
          %vm3289 = vweird.f32 %v3282
          %vm3290 = vmor %vm3288, %vm3289
          %v3291 = vsel %vm3290, %v3282, %v3287
          %v3292 = vrsqrt.pop %v3116
          %v3293 = vmul.f32 %v3292, %v3116
          %v3294 = vmul.f32 %v3293, %v3292
          %v3295 = vmul.f32 0.5, %v3294
          %v3296 = vsub.f32 1.5, %v3295
          %v3297 = vmul.f32 %v3292, %v3296
          %vm3298 = vweird.f32 %v3116
          %vm3299 = vweird.f32 %v3292
          %vm3300 = vmor %vm3298, %vm3299
          %v3301 = vsel %vm3300, %v3292, %v3297
          %v3302 = vrsqrt.pop %v3117
          %v3303 = vmul.f32 %v3302, %v3117
          %v3304 = vmul.f32 %v3303, %v3302
          %v3305 = vmul.f32 0.5, %v3304
          %v3306 = vsub.f32 1.5, %v3305
          %v3307 = vmul.f32 %v3302, %v3306
          %vm3308 = vweird.f32 %v3117
          %vm3309 = vweird.f32 %v3302
          %vm3310 = vmor %vm3308, %vm3309
          %v3311 = vsel %vm3310, %v3302, %v3307
          %v3312 = vrsqrt.pop %v3118
          %v3313 = vmul.f32 %v3312, %v3118
          %v3314 = vmul.f32 %v3313, %v3312
          %v3315 = vmul.f32 0.5, %v3314
          %v3316 = vsub.f32 1.5, %v3315
          %v3317 = vmul.f32 %v3312, %v3316
          %vm3318 = vweird.f32 %v3118
          %vm3319 = vweird.f32 %v3312
          %vm3320 = vmor %vm3318, %vm3319
          %v3321 = vsel %vm3320, %v3312, %v3317
          %v3322 = vrsqrt.pop %v3119
          %v3323 = vmul.f32 %v3322, %v3119
          %v3324 = vmul.f32 %v3323, %v3322
          %v3325 = vmul.f32 0.5, %v3324
          %v3326 = vsub.f32 1.5, %v3325
          %v3327 = vmul.f32 %v3322, %v3326
          %vm3328 = vweird.f32 %v3119
          %vm3329 = vweird.f32 %v3322
          %vm3330 = vmor %vm3328, %vm3329
          %v3331 = vsel %vm3330, %v3322, %v3327
          %v3332 = vrsqrt.pop %v3120
          %v3333 = vmul.f32 %v3332, %v3120
          %v3334 = vmul.f32 %v3333, %v3332
          %v3335 = vmul.f32 0.5, %v3334
          %v3336 = vsub.f32 1.5, %v3335
          %v3337 = vmul.f32 %v3332, %v3336
          %vm3338 = vweird.f32 %v3120
          %vm3339 = vweird.f32 %v3332
          %vm3340 = vmor %vm3338, %vm3339
          %v3341 = vsel %vm3340, %v3332, %v3337
          %v3342 = vrsqrt.pop %v3121
          %v3343 = vmul.f32 %v3342, %v3121
          %v3344 = vmul.f32 %v3343, %v3342
          %v3345 = vmul.f32 0.5, %v3344
          %v3346 = vsub.f32 1.5, %v3345
          %v3347 = vmul.f32 %v3342, %v3346
          %vm3348 = vweird.f32 %v3121
          %vm3349 = vweird.f32 %v3342
          %vm3350 = vmor %vm3348, %vm3349
          %v3351 = vsel %vm3350, %v3342, %v3347
          %v3352 = vrsqrt.pop %v3122
          %v3353 = vmul.f32 %v3352, %v3122
          %v3354 = vmul.f32 %v3353, %v3352
          %v3355 = vmul.f32 0.5, %v3354
          %v3356 = vsub.f32 1.5, %v3355
          %v3357 = vmul.f32 %v3352, %v3356
          %vm3358 = vweird.f32 %v3122
          %vm3359 = vweird.f32 %v3352
          %vm3360 = vmor %vm3358, %vm3359
          %v3361 = vsel %vm3360, %v3352, %v3357
          %v3362 = vrsqrt.pop %v3123
          %v3363 = vmul.f32 %v3362, %v3123
          %v3364 = vmul.f32 %v3363, %v3362
          %v3365 = vmul.f32 0.5, %v3364
          %v3366 = vsub.f32 1.5, %v3365
          %v3367 = vmul.f32 %v3362, %v3366
          %vm3368 = vweird.f32 %v3123
          %vm3369 = vweird.f32 %v3362
          %vm3370 = vmor %vm3368, %vm3369
          %v3371 = vsel %vm3370, %v3362, %v3367
          %v3372 = vrsqrt.pop %v3124
          %v3373 = vmul.f32 %v3372, %v3124
          %v3374 = vmul.f32 %v3373, %v3372
          %v3375 = vmul.f32 0.5, %v3374
          %v3376 = vsub.f32 1.5, %v3375
          %v3377 = vmul.f32 %v3372, %v3376
          %vm3378 = vweird.f32 %v3124
          %vm3379 = vweird.f32 %v3372
          %vm3380 = vmor %vm3378, %vm3379
          %v3381 = vsel %vm3380, %v3372, %v3377
          %v3382 = vrsqrt.pop %v3125
          %v3383 = vmul.f32 %v3382, %v3125
          %v3384 = vmul.f32 %v3383, %v3382
          %v3385 = vmul.f32 0.5, %v3384
          %v3386 = vsub.f32 1.5, %v3385
          %v3387 = vmul.f32 %v3382, %v3386
          %vm3388 = vweird.f32 %v3125
          %vm3389 = vweird.f32 %v3382
          %vm3390 = vmor %vm3388, %vm3389
          %v3391 = vsel %vm3390, %v3382, %v3387
          %v3392 = vrsqrt.pop %v3126
          %v3393 = vmul.f32 %v3392, %v3126
          %v3394 = vmul.f32 %v3393, %v3392
          %v3395 = vmul.f32 0.5, %v3394
          %v3396 = vsub.f32 1.5, %v3395
          %v3397 = vmul.f32 %v3392, %v3396
          %vm3398 = vweird.f32 %v3126
          %vm3399 = vweird.f32 %v3392
          %vm3400 = vmor %vm3398, %vm3399
          %v3401 = vsel %vm3400, %v3392, %v3397
          %v3402 = vrsqrt.pop %v3127
          %v3403 = vmul.f32 %v3402, %v3127
          %v3404 = vmul.f32 %v3403, %v3402
          %v3405 = vmul.f32 0.5, %v3404
          %v3406 = vsub.f32 1.5, %v3405
          %v3407 = vmul.f32 %v3402, %v3406
          %vm3408 = vweird.f32 %v3127
          %vm3409 = vweird.f32 %v3402
          %vm3410 = vmor %vm3408, %vm3409
          %v3411 = vsel %vm3410, %v3402, %v3407
          %v3412 = vrsqrt.pop %v3128
          %v3413 = vmul.f32 %v3412, %v3128
          %v3414 = vmul.f32 %v3413, %v3412
          %v3415 = vmul.f32 0.5, %v3414
          %v3416 = vsub.f32 1.5, %v3415
          %v3417 = vmul.f32 %v3412, %v3416
          %vm3418 = vweird.f32 %v3128
          %vm3419 = vweird.f32 %v3412
          %vm3420 = vmor %vm3418, %vm3419
          %v3421 = vsel %vm3420, %v3412, %v3417
          %v3422 = vrsqrt.pop %v3129
          %v3423 = vmul.f32 %v3422, %v3129
          %v3424 = vmul.f32 %v3423, %v3422
          %v3425 = vmul.f32 0.5, %v3424
          %v3426 = vsub.f32 1.5, %v3425
          %v3427 = vmul.f32 %v3422, %v3426
          %vm3428 = vweird.f32 %v3129
          %vm3429 = vweird.f32 %v3422
          %vm3430 = vmor %vm3428, %vm3429
          %v3431 = vsel %vm3430, %v3422, %v3427
          %v3432 = vrsqrt.pop %v3130
          %v3433 = vmul.f32 %v3432, %v3130
          %v3434 = vmul.f32 %v3433, %v3432
          %v3435 = vmul.f32 0.5, %v3434
          %v3436 = vsub.f32 1.5, %v3435
          %v3437 = vmul.f32 %v3432, %v3436
          %vm3438 = vweird.f32 %v3130
          %vm3439 = vweird.f32 %v3432
          %vm3440 = vmor %vm3438, %vm3439
          %v3441 = vsel %vm3440, %v3432, %v3437
          %v3442 = vrsqrt.pop %v3131
          %v3443 = vmul.f32 %v3442, %v3131
          %v3444 = vmul.f32 %v3443, %v3442
          %v3445 = vmul.f32 0.5, %v3444
          %v3446 = vsub.f32 1.5, %v3445
          %v3447 = vmul.f32 %v3442, %v3446
          %vm3448 = vweird.f32 %v3131
          %vm3449 = vweird.f32 %v3442
          %vm3450 = vmor %vm3448, %vm3449
          %v3451 = vsel %vm3450, %v3442, %v3447
          %v3452 = vmul.f32 %v2940, %v3141
          %v3453 = vmul.f32 %v2941, %v3151
          %v3454 = vmul.f32 %v2942, %v3161
          %v3455 = vmul.f32 %v2943, %v3171
          %v3456 = vmul.f32 %v2944, %v3181
          %v3457 = vmul.f32 %v2945, %v3191
          %v3458 = vmul.f32 %v2946, %v3201
          %v3459 = vmul.f32 %v2947, %v3211
          %v3460 = vmul.f32 %v2948, %v3221
          %v3461 = vmul.f32 %v2949, %v3231
          %v3462 = vmul.f32 %v2950, %v3241
          %v3463 = vmul.f32 %v2951, %v3251
          %v3464 = vmul.f32 %v2952, %v3261
          %v3465 = vmul.f32 %v2953, %v3271
          %v3466 = vmul.f32 %v2954, %v3281
          %v3467 = vmul.f32 %v2955, %v3291
          %v3468 = vmul.f32 %v2956, %v3301
          %v3469 = vmul.f32 %v2957, %v3311
          %v3470 = vmul.f32 %v2958, %v3321
          %v3471 = vmul.f32 %v2959, %v3331
          %v3472 = vmul.f32 %v2960, %v3341
          %v3473 = vmul.f32 %v2961, %v3351
          %v3474 = vmul.f32 %v2962, %v3361
          %v3475 = vmul.f32 %v2963, %v3371
          %v3476 = vmul.f32 %v2964, %v3381
          %v3477 = vmul.f32 %v2965, %v3391
          %v3478 = vmul.f32 %v2966, %v3401
          %v3479 = vmul.f32 %v2967, %v3411
          %v3480 = vmul.f32 %v2968, %v3421
          %v3481 = vmul.f32 %v2969, %v3431
          %v3482 = vmul.f32 %v2970, %v3441
          %v3483 = vmul.f32 %v2971, %v3451
          %v3484 = vld [vmem:[%s10] sm:$0x1]
          %v3486 = vperm.slane %v3484, 0
          %v3488 = vmul.f32 %v3452, %v3486
          %v3489 = vmul.f32 %v3453, %v3486
          %v3490 = vmul.f32 %v3454, %v3486
          %v3491 = vmul.f32 %v3455, %v3486
          %v3492 = vmul.f32 %v3456, %v3486
          %v3493 = vmul.f32 %v3457, %v3486
          %v3494 = vmul.f32 %v3458, %v3486
          %v3495 = vmul.f32 %v3459, %v3486
          %v3496 = vmul.f32 %v3460, %v3486
          %v3497 = vmul.f32 %v3461, %v3486
          %v3498 = vmul.f32 %v3462, %v3486
          %v3499 = vmul.f32 %v3463, %v3486
          %v3500 = vmul.f32 %v3464, %v3486
          %v3501 = vmul.f32 %v3465, %v3486
          %v3502 = vmul.f32 %v3466, %v3486
          %v3503 = vmul.f32 %v3467, %v3486
          %v3504 = vmul.f32 %v3468, %v3486
          %v3505 = vmul.f32 %v3469, %v3486
          %v3506 = vmul.f32 %v3470, %v3486
          %v3507 = vmul.f32 %v3471, %v3486
          %v3508 = vmul.f32 %v3472, %v3486
          %v3509 = vmul.f32 %v3473, %v3486
          %v3510 = vmul.f32 %v3474, %v3486
          %v3511 = vmul.f32 %v3475, %v3486
          %v3512 = vmul.f32 %v3476, %v3486
          %v3513 = vmul.f32 %v3477, %v3486
          %v3514 = vmul.f32 %v3478, %v3486
          %v3515 = vmul.f32 %v3479, %v3486
          %v3516 = vmul.f32 %v3480, %v3486
          %v3517 = vmul.f32 %v3481, %v3486
          %v3518 = vmul.f32 %v3482, %v3486
          %v3519 = vmul.f32 %v3483, %v3486
          %v3520 = vld [vmem:[%s11] sm:$0x1]
          %v3522 = vperm.slane %v3520, 0
          %v3524 = vadd.f32 %v3488, %v3522
          %v3525 = vadd.f32 %v3489, %v3522
          %v3526 = vadd.f32 %v3490, %v3522
          %v3527 = vadd.f32 %v3491, %v3522
          %v3528 = vadd.f32 %v3492, %v3522
          %v3529 = vadd.f32 %v3493, %v3522
          %v3530 = vadd.f32 %v3494, %v3522
          %v3531 = vadd.f32 %v3495, %v3522
          %v3532 = vadd.f32 %v3496, %v3522
          %v3533 = vadd.f32 %v3497, %v3522
          %v3534 = vadd.f32 %v3498, %v3522
          %v3535 = vadd.f32 %v3499, %v3522
          %v3536 = vadd.f32 %v3500, %v3522
          %v3537 = vadd.f32 %v3501, %v3522
          %v3538 = vadd.f32 %v3502, %v3522
          %v3539 = vadd.f32 %v3503, %v3522
          %v3540 = vadd.f32 %v3504, %v3522
          %v3541 = vadd.f32 %v3505, %v3522
          %v3542 = vadd.f32 %v3506, %v3522
          %v3543 = vadd.f32 %v3507, %v3522
          %v3544 = vadd.f32 %v3508, %v3522
          %v3545 = vadd.f32 %v3509, %v3522
          %v3546 = vadd.f32 %v3510, %v3522
          %v3547 = vadd.f32 %v3511, %v3522
          %v3548 = vadd.f32 %v3512, %v3522
          %v3549 = vadd.f32 %v3513, %v3522
          %v3550 = vadd.f32 %v3514, %v3522
          %v3551 = vadd.f32 %v3515, %v3522
          %v3552 = vadd.f32 %v3516, %v3522
          %v3553 = vadd.f32 %v3517, %v3522
          %v3554 = vadd.f32 %v3518, %v3522
          %v3555 = vadd.f32 %v3519, %v3522
          %v3556 = vld [vmem:[#allocation15] sm:$0xff]
          %v3557 = vld [vmem:[#allocation15 + $0x8] sm:$0xff]
          %v3558 = vld [vmem:[#allocation15 + $0x10] sm:$0xff]
          %v3559 = vld [vmem:[#allocation15 + $0x18] sm:$0xff]
          %v3560 = vld [vmem:[#allocation15 + $0x20] sm:$0xff]
          %v3561 = vld [vmem:[#allocation15 + $0x28] sm:$0xff]
          %v3562 = vld [vmem:[#allocation15 + $0x30] sm:$0xff]
          %v3563 = vld [vmem:[#allocation15 + $0x38] sm:$0xff]
          %v3564 = vld [vmem:[#allocation15 + $0x40] sm:$0xff]
          %v3565 = vld [vmem:[#allocation15 + $0x48] sm:$0xff]
          %v3566 = vld [vmem:[#allocation15 + $0x50] sm:$0xff]
          %v3567 = vld [vmem:[#allocation15 + $0x58] sm:$0xff]
          %v3568 = vld [vmem:[#allocation15 + $0x60] sm:$0xff]
          %v3569 = vld [vmem:[#allocation15 + $0x68] sm:$0xff]
          %v3570 = vld [vmem:[#allocation15 + $0x70] sm:$0xff]
          %v3571 = vld [vmem:[#allocation15 + $0x78] sm:$0xff]
          %v3572 = vld [vmem:[#allocation15 + $0x80] sm:$0xff]
          %v3573 = vld [vmem:[#allocation15 + $0x88] sm:$0xff]
          %v3574 = vld [vmem:[#allocation15 + $0x90] sm:$0xff]
          %v3575 = vld [vmem:[#allocation15 + $0x98] sm:$0xff]
          %v3576 = vld [vmem:[#allocation15 + $0xa0] sm:$0xff]
          %v3577 = vld [vmem:[#allocation15 + $0xa8] sm:$0xff]
          %v3578 = vld [vmem:[#allocation15 + $0xb0] sm:$0xff]
          %v3579 = vld [vmem:[#allocation15 + $0xb8] sm:$0xff]
          %v3580 = vld [vmem:[#allocation15 + $0xc0] sm:$0xff]
          %v3581 = vld [vmem:[#allocation15 + $0xc8] sm:$0xff]
          %v3582 = vld [vmem:[#allocation15 + $0xd0] sm:$0xff]
          %v3583 = vld [vmem:[#allocation15 + $0xd8] sm:$0xff]
          %v3584 = vld [vmem:[#allocation15 + $0xe0] sm:$0xff]
          %v3585 = vld [vmem:[#allocation15 + $0xe8] sm:$0xff]
          %v3586 = vld [vmem:[#allocation15 + $0xf0] sm:$0xff]
          %v3587 = vld [vmem:[#allocation15 + $0xf8] sm:$0xff]
          %v3588 = vld [vmem:[%s7] sm:$0x3]
          %v3590 = vperm.slane %v3588, 0
          %v3591 = vperm.slane %v3588, 1
          %3594 = vmatpush.msra.mxu0 %v3586
          %3595 = vmatpush.msra.mxu0 %v3584
          %3596 = vmatpush.msra.mxu0 %v3582
          %3597 = vmatpush.msra.mxu0 %v3580
          %3598 = vmatpush.msra.mxu0 %v3578
          %3599 = vmatpush.msra.mxu0 %v3576
          %3600 = vmatpush.msra.mxu0 %v3574
          %3601 = vmatpush.msra.mxu0 %v3572
          %3602 = vmatpush.msra.mxu0 %v3570
          %3603 = vmatpush.msra.mxu0 %v3568
          %3604 = vmatpush.msra.mxu0 %v3566
          %3605 = vmatpush.msra.mxu0 %v3564
          %3606 = vmatpush.msra.mxu0 %v3562
          %3607 = vmatpush.msra.mxu0 %v3560
          %3608 = vmatpush.msra.mxu0 %v3558
          %3609 = vmatpush.msra.mxu0 %v3556
          %3610 = vmatmul.f32.gmra.mxu0 %v3524
          %v3611 = vpop.f32.mrf.mxu0
          %v3612 = vadd.f32 %v3590, %v3611
          %3613 = vmatmul.f32.gmra.mxu0 %v3525
          %v3614 = vpop.f32.mrf.mxu0
          %v3615 = vadd.f32 %v3590, %v3614
          %3616 = vmatmul.f32.gmra.mxu0 %v3526
          %v3617 = vpop.f32.mrf.mxu0
          %v3618 = vadd.f32 %v3590, %v3617
          %3619 = vmatmul.f32.gmra.mxu0 %v3527
          %v3620 = vpop.f32.mrf.mxu0
          %v3621 = vadd.f32 %v3590, %v3620
          %3622 = vmatmul.f32.gmra.mxu0 %v3528
          %v3623 = vpop.f32.mrf.mxu0
          %v3624 = vadd.f32 %v3590, %v3623
          %3625 = vmatmul.f32.gmra.mxu0 %v3529
          %v3626 = vpop.f32.mrf.mxu0
          %v3627 = vadd.f32 %v3590, %v3626
          %3628 = vmatmul.f32.gmra.mxu0 %v3530
          %v3629 = vpop.f32.mrf.mxu0
          %v3630 = vadd.f32 %v3590, %v3629
          %3631 = vmatmul.f32.gmra.mxu0 %v3531
          %v3632 = vpop.f32.mrf.mxu0
          %v3633 = vadd.f32 %v3590, %v3632
          %3634 = vmatmul.f32.gmra.mxu0 %v3532
          %v3635 = vpop.f32.mrf.mxu0
          %v3636 = vadd.f32 %v3590, %v3635
          %3637 = vmatmul.f32.gmra.mxu0 %v3533
          %v3638 = vpop.f32.mrf.mxu0
          %v3639 = vadd.f32 %v3590, %v3638
          %3640 = vmatmul.f32.gmra.mxu0 %v3534
          %v3641 = vpop.f32.mrf.mxu0
          %v3642 = vadd.f32 %v3590, %v3641
          %3643 = vmatmul.f32.gmra.mxu0 %v3535
          %v3644 = vpop.f32.mrf.mxu0
          %v3645 = vadd.f32 %v3590, %v3644
          %3646 = vmatmul.f32.gmra.mxu0 %v3536
          %v3647 = vpop.f32.mrf.mxu0
          %v3648 = vadd.f32 %v3590, %v3647
          %3649 = vmatmul.f32.gmra.mxu0 %v3537
          %v3650 = vpop.f32.mrf.mxu0
          %v3651 = vadd.f32 %v3590, %v3650
          %3652 = vmatmul.f32.gmra.mxu0 %v3538
          %v3653 = vpop.f32.mrf.mxu0
          %v3654 = vadd.f32 %v3590, %v3653
          %3655 = vmatmul.f32.gmra.mxu0 %v3539
          %v3656 = vpop.f32.mrf.mxu0
          %v3657 = vadd.f32 %v3590, %v3656
          %3658 = vmatmul.f32.gmra.mxu0 %v3540
          %v3659 = vpop.f32.mrf.mxu0
          %v3660 = vadd.f32 %v3590, %v3659
          %3661 = vmatmul.f32.gmra.mxu0 %v3541
          %v3662 = vpop.f32.mrf.mxu0
          %v3663 = vadd.f32 %v3590, %v3662
          %3664 = vmatmul.f32.gmra.mxu0 %v3542
          %v3665 = vpop.f32.mrf.mxu0
          %v3666 = vadd.f32 %v3590, %v3665
          %3667 = vmatmul.f32.gmra.mxu0 %v3543
          %v3668 = vpop.f32.mrf.mxu0
          %v3669 = vadd.f32 %v3590, %v3668
          %3670 = vmatmul.f32.gmra.mxu0 %v3544
          %v3671 = vpop.f32.mrf.mxu0
          %v3672 = vadd.f32 %v3590, %v3671
          %3673 = vmatmul.f32.gmra.mxu0 %v3545
          %v3674 = vpop.f32.mrf.mxu0
          %v3675 = vadd.f32 %v3590, %v3674
          %3676 = vmatmul.f32.gmra.mxu0 %v3546
          %v3677 = vpop.f32.mrf.mxu0
          %v3678 = vadd.f32 %v3590, %v3677
          %3679 = vmatmul.f32.gmra.mxu0 %v3547
          %v3680 = vpop.f32.mrf.mxu0
          %v3681 = vadd.f32 %v3590, %v3680
          %3682 = vmatmul.f32.gmra.mxu0 %v3548
          %v3683 = vpop.f32.mrf.mxu0
          %v3684 = vadd.f32 %v3590, %v3683
          %3685 = vmatmul.f32.gmra.mxu0 %v3549
          %v3686 = vpop.f32.mrf.mxu0
          %v3687 = vadd.f32 %v3590, %v3686
          %3688 = vmatmul.f32.gmra.mxu0 %v3550
          %v3689 = vpop.f32.mrf.mxu0
          %v3690 = vadd.f32 %v3590, %v3689
          %3691 = vmatmul.f32.gmra.mxu0 %v3551
          %v3692 = vpop.f32.mrf.mxu0
          %v3693 = vadd.f32 %v3590, %v3692
          %3694 = vmatmul.f32.gmra.mxu0 %v3552
          %v3695 = vpop.f32.mrf.mxu0
          %v3696 = vadd.f32 %v3590, %v3695
          %3697 = vmatmul.f32.gmra.mxu0 %v3553
          %v3698 = vpop.f32.mrf.mxu0
          %v3699 = vadd.f32 %v3590, %v3698
          %3700 = vmatmul.f32.gmra.mxu0 %v3554
          %v3701 = vpop.f32.mrf.mxu0
          %v3702 = vadd.f32 %v3590, %v3701
          %3703 = vmatmul.f32.gmra.mxu0 %v3555
          %v3704 = vpop.f32.mrf.mxu0
          %v3705 = vadd.f32 %v3590, %v3704
          %3706 = vdwg.mxu0
          %3707 = vmatpush.msra.mxu0 %v3587
          %3708 = vmatpush.msra.mxu0 %v3585
          %3709 = vmatpush.msra.mxu0 %v3583
          %3710 = vmatpush.msra.mxu0 %v3581
          %3711 = vmatpush.msra.mxu0 %v3579
          %3712 = vmatpush.msra.mxu0 %v3577
          %3713 = vmatpush.msra.mxu0 %v3575
          %3714 = vmatpush.msra.mxu0 %v3573
          %3715 = vmatpush.msra.mxu0 %v3571
          %3716 = vmatpush.msra.mxu0 %v3569
          %3717 = vmatpush.msra.mxu0 %v3567
          %3718 = vmatpush.msra.mxu0 %v3565
          %3719 = vmatpush.msra.mxu0 %v3563
          %3720 = vmatpush.msra.mxu0 %v3561
          %3721 = vmatpush.msra.mxu0 %v3559
          %3722 = vmatpush.msra.mxu0 %v3557
          %3723 = vmatmul.f32.gmra.mxu0 %v3524
          %v3724 = vpop.f32.mrf.mxu0
          %v3725 = vadd.f32 %v3591, %v3724
          %3726 = vmatmul.f32.gmra.mxu0 %v3525
          %v3727 = vpop.f32.mrf.mxu0
          %v3728 = vadd.f32 %v3591, %v3727
          %3729 = vmatmul.f32.gmra.mxu0 %v3526
          %v3730 = vpop.f32.mrf.mxu0
          %v3731 = vadd.f32 %v3591, %v3730
          %3732 = vmatmul.f32.gmra.mxu0 %v3527
          %v3733 = vpop.f32.mrf.mxu0
          %v3734 = vadd.f32 %v3591, %v3733
          %3735 = vmatmul.f32.gmra.mxu0 %v3528
          %v3736 = vpop.f32.mrf.mxu0
          %v3737 = vadd.f32 %v3591, %v3736
          %3738 = vmatmul.f32.gmra.mxu0 %v3529
          %v3739 = vpop.f32.mrf.mxu0
          %v3740 = vadd.f32 %v3591, %v3739
          %3741 = vmatmul.f32.gmra.mxu0 %v3530
          %v3742 = vpop.f32.mrf.mxu0
          %v3743 = vadd.f32 %v3591, %v3742
          %3744 = vmatmul.f32.gmra.mxu0 %v3531
          %v3745 = vpop.f32.mrf.mxu0
          %v3746 = vadd.f32 %v3591, %v3745
          %3747 = vmatmul.f32.gmra.mxu0 %v3532
          %v3748 = vpop.f32.mrf.mxu0
          %v3749 = vadd.f32 %v3591, %v3748
          %3750 = vmatmul.f32.gmra.mxu0 %v3533
          %v3751 = vpop.f32.mrf.mxu0
          %v3752 = vadd.f32 %v3591, %v3751
          %3753 = vmatmul.f32.gmra.mxu0 %v3534
          %v3754 = vpop.f32.mrf.mxu0
          %v3755 = vadd.f32 %v3591, %v3754
          %3756 = vmatmul.f32.gmra.mxu0 %v3535
          %v3757 = vpop.f32.mrf.mxu0
          %v3758 = vadd.f32 %v3591, %v3757
          %3759 = vmatmul.f32.gmra.mxu0 %v3536
          %v3760 = vpop.f32.mrf.mxu0
          %v3761 = vadd.f32 %v3591, %v3760
          %3762 = vmatmul.f32.gmra.mxu0 %v3537
          %v3763 = vpop.f32.mrf.mxu0
          %v3764 = vadd.f32 %v3591, %v3763
          %3765 = vmatmul.f32.gmra.mxu0 %v3538
          %v3766 = vpop.f32.mrf.mxu0
          %v3767 = vadd.f32 %v3591, %v3766
          %3768 = vmatmul.f32.gmra.mxu0 %v3539
          %v3769 = vpop.f32.mrf.mxu0
          %v3770 = vadd.f32 %v3591, %v3769
          %3771 = vmatmul.f32.gmra.mxu0 %v3540
          %v3772 = vpop.f32.mrf.mxu0
          %v3773 = vadd.f32 %v3591, %v3772
          %3774 = vmatmul.f32.gmra.mxu0 %v3541
          %v3775 = vpop.f32.mrf.mxu0
          %v3776 = vadd.f32 %v3591, %v3775
          %3777 = vmatmul.f32.gmra.mxu0 %v3542
          %v3778 = vpop.f32.mrf.mxu0
          %v3779 = vadd.f32 %v3591, %v3778
          %3780 = vmatmul.f32.gmra.mxu0 %v3543
          %v3781 = vpop.f32.mrf.mxu0
          %v3782 = vadd.f32 %v3591, %v3781
          %3783 = vmatmul.f32.gmra.mxu0 %v3544
          %v3784 = vpop.f32.mrf.mxu0
          %v3785 = vadd.f32 %v3591, %v3784
          %3786 = vmatmul.f32.gmra.mxu0 %v3545
          %v3787 = vpop.f32.mrf.mxu0
          %v3788 = vadd.f32 %v3591, %v3787
          %3789 = vmatmul.f32.gmra.mxu0 %v3546
          %v3790 = vpop.f32.mrf.mxu0
          %v3791 = vadd.f32 %v3591, %v3790
          %3792 = vmatmul.f32.gmra.mxu0 %v3547
          %v3793 = vpop.f32.mrf.mxu0
          %v3794 = vadd.f32 %v3591, %v3793
          %3795 = vmatmul.f32.gmra.mxu0 %v3548
          %v3796 = vpop.f32.mrf.mxu0
          %v3797 = vadd.f32 %v3591, %v3796
          %3798 = vmatmul.f32.gmra.mxu0 %v3549
          %v3799 = vpop.f32.mrf.mxu0
          %v3800 = vadd.f32 %v3591, %v3799
          %3801 = vmatmul.f32.gmra.mxu0 %v3550
          %v3802 = vpop.f32.mrf.mxu0
          %v3803 = vadd.f32 %v3591, %v3802
          %3804 = vmatmul.f32.gmra.mxu0 %v3551
          %v3805 = vpop.f32.mrf.mxu0
          %v3806 = vadd.f32 %v3591, %v3805
          %3807 = vmatmul.f32.gmra.mxu0 %v3552
          %v3808 = vpop.f32.mrf.mxu0
          %v3809 = vadd.f32 %v3591, %v3808
          %3810 = vmatmul.f32.gmra.mxu0 %v3553
          %v3811 = vpop.f32.mrf.mxu0
          %v3812 = vadd.f32 %v3591, %v3811
          %3813 = vmatmul.f32.gmra.mxu0 %v3554
          %v3814 = vpop.f32.mrf.mxu0
          %v3815 = vadd.f32 %v3591, %v3814
          %3816 = vmatmul.f32.gmra.mxu0 %v3555
          %v3817 = vpop.f32.mrf.mxu0
          %v3818 = vadd.f32 %v3591, %v3817
          %3819 = vdwg.mxu0
          %v3820 = vmax.f32 %v3612, 0.0
          %v3821 = vmax.f32 %v3725, 0.0
          %v3822 = vmax.f32 %v3615, 0.0
          %v3823 = vmax.f32 %v3728, 0.0
          %v3824 = vmax.f32 %v3618, 0.0
          %v3825 = vmax.f32 %v3731, 0.0
          %v3826 = vmax.f32 %v3621, 0.0
          %v3827 = vmax.f32 %v3734, 0.0
          %v3828 = vmax.f32 %v3624, 0.0
          %v3829 = vmax.f32 %v3737, 0.0
          %v3830 = vmax.f32 %v3627, 0.0
          %v3831 = vmax.f32 %v3740, 0.0
          %v3832 = vmax.f32 %v3630, 0.0
          %v3833 = vmax.f32 %v3743, 0.0
          %v3834 = vmax.f32 %v3633, 0.0
          %v3835 = vmax.f32 %v3746, 0.0
          %v3836 = vmax.f32 %v3636, 0.0
          %v3837 = vmax.f32 %v3749, 0.0
          %v3838 = vmax.f32 %v3639, 0.0
          %v3839 = vmax.f32 %v3752, 0.0
          %v3840 = vmax.f32 %v3642, 0.0
          %v3841 = vmax.f32 %v3755, 0.0
          %v3842 = vmax.f32 %v3645, 0.0
          %v3843 = vmax.f32 %v3758, 0.0
          %v3844 = vmax.f32 %v3648, 0.0
          %v3845 = vmax.f32 %v3761, 0.0
          %v3846 = vmax.f32 %v3651, 0.0
          %v3847 = vmax.f32 %v3764, 0.0
          %v3848 = vmax.f32 %v3654, 0.0
          %v3849 = vmax.f32 %v3767, 0.0
          %v3850 = vmax.f32 %v3657, 0.0
          %v3851 = vmax.f32 %v3770, 0.0
          %v3852 = vmax.f32 %v3660, 0.0
          %v3853 = vmax.f32 %v3773, 0.0
          %v3854 = vmax.f32 %v3663, 0.0
          %v3855 = vmax.f32 %v3776, 0.0
          %v3856 = vmax.f32 %v3666, 0.0
          %v3857 = vmax.f32 %v3779, 0.0
          %v3858 = vmax.f32 %v3669, 0.0
          %v3859 = vmax.f32 %v3782, 0.0
          %v3860 = vmax.f32 %v3672, 0.0
          %v3861 = vmax.f32 %v3785, 0.0
          %v3862 = vmax.f32 %v3675, 0.0
          %v3863 = vmax.f32 %v3788, 0.0
          %v3864 = vmax.f32 %v3678, 0.0
          %v3865 = vmax.f32 %v3791, 0.0
          %v3866 = vmax.f32 %v3681, 0.0
          %v3867 = vmax.f32 %v3794, 0.0
          %v3868 = vmax.f32 %v3684, 0.0
          %v3869 = vmax.f32 %v3797, 0.0
          %v3870 = vmax.f32 %v3687, 0.0
          %v3871 = vmax.f32 %v3800, 0.0
          %v3872 = vmax.f32 %v3690, 0.0
          %v3873 = vmax.f32 %v3803, 0.0
          %v3874 = vmax.f32 %v3693, 0.0
          %v3875 = vmax.f32 %v3806, 0.0
          %v3876 = vmax.f32 %v3696, 0.0
          %v3877 = vmax.f32 %v3809, 0.0
          %v3878 = vmax.f32 %v3699, 0.0
          %v3879 = vmax.f32 %v3812, 0.0
          %v3880 = vmax.f32 %v3702, 0.0
          %v3881 = vmax.f32 %v3815, 0.0
          %v3882 = vmax.f32 %v3705, 0.0
          %v3883 = vmax.f32 %v3818, 0.0
          %v3884 = vld [vmem:[#allocation16] sm:$0xff]
          %v3885 = vld [vmem:[#allocation16 + $0x8] sm:$0xff]
          %v3886 = vld [vmem:[#allocation16 + $0x10] sm:$0xff]
          %v3887 = vld [vmem:[#allocation16 + $0x18] sm:$0xff]
          %v3888 = vld [vmem:[#allocation16 + $0x20] sm:$0xff]
          %v3889 = vld [vmem:[#allocation16 + $0x28] sm:$0xff]
          %v3890 = vld [vmem:[#allocation16 + $0x30] sm:$0xff]
          %v3891 = vld [vmem:[#allocation16 + $0x38] sm:$0xff]
          %v3892 = vld [vmem:[#allocation16 + $0x40] sm:$0xff]
          %v3893 = vld [vmem:[#allocation16 + $0x48] sm:$0xff]
          %v3894 = vld [vmem:[#allocation16 + $0x50] sm:$0xff]
          %v3895 = vld [vmem:[#allocation16 + $0x58] sm:$0xff]
          %v3896 = vld [vmem:[#allocation16 + $0x60] sm:$0xff]
          %v3897 = vld [vmem:[#allocation16 + $0x68] sm:$0xff]
          %v3898 = vld [vmem:[#allocation16 + $0x70] sm:$0xff]
          %v3899 = vld [vmem:[#allocation16 + $0x78] sm:$0xff]
          %v3900 = vld [vmem:[#allocation16 + $0x80] sm:$0xff]
          %v3901 = vld [vmem:[#allocation16 + $0x88] sm:$0xff]
          %v3902 = vld [vmem:[#allocation16 + $0x90] sm:$0xff]
          %v3903 = vld [vmem:[#allocation16 + $0x98] sm:$0xff]
          %v3904 = vld [vmem:[#allocation16 + $0xa0] sm:$0xff]
          %v3905 = vld [vmem:[#allocation16 + $0xa8] sm:$0xff]
          %v3906 = vld [vmem:[#allocation16 + $0xb0] sm:$0xff]
          %v3907 = vld [vmem:[#allocation16 + $0xb8] sm:$0xff]
          %v3908 = vld [vmem:[#allocation16 + $0xc0] sm:$0xff]
          %v3909 = vld [vmem:[#allocation16 + $0xc8] sm:$0xff]
          %v3910 = vld [vmem:[#allocation16 + $0xd0] sm:$0xff]
          %v3911 = vld [vmem:[#allocation16 + $0xd8] sm:$0xff]
          %v3912 = vld [vmem:[#allocation16 + $0xe0] sm:$0xff]
          %v3913 = vld [vmem:[#allocation16 + $0xe8] sm:$0xff]
          %v3914 = vld [vmem:[#allocation16 + $0xf0] sm:$0xff]
          %v3915 = vld [vmem:[#allocation16 + $0xf8] sm:$0xff]
          %v3916 = vld [vmem:[%s9] sm:$0x1]
          %v3918 = vperm.slane %v3916, 0
          %3920 = vmatpush.msra.mxu0 %v3899
          %3921 = vmatpush.msra.mxu0 %v3898
          %3922 = vmatpush.msra.mxu0 %v3897
          %3923 = vmatpush.msra.mxu0 %v3896
          %3924 = vmatpush.msra.mxu0 %v3895
          %3925 = vmatpush.msra.mxu0 %v3894
          %3926 = vmatpush.msra.mxu0 %v3893
          %3927 = vmatpush.msra.mxu0 %v3892
          %3928 = vmatpush.msra.mxu0 %v3891
          %3929 = vmatpush.msra.mxu0 %v3890
          %3930 = vmatpush.msra.mxu0 %v3889
          %3931 = vmatpush.msra.mxu0 %v3888
          %3932 = vmatpush.msra.mxu0 %v3887
          %3933 = vmatpush.msra.mxu0 %v3886
          %3934 = vmatpush.msra.mxu0 %v3885
          %3935 = vmatpush.msra.mxu0 %v3884
          %3936 = vmatmul.f32.gmra.mxu0 %v3820
          %v3937 = vpop.f32.mrf.mxu0
          %v3938 = vadd.f32 %v3918, %v3937
          %3939 = vmatmul.f32.gmra.mxu0 %v3822
          %v3940 = vpop.f32.mrf.mxu0
          %v3941 = vadd.f32 %v3918, %v3940
          %3942 = vmatmul.f32.gmra.mxu0 %v3824
          %v3943 = vpop.f32.mrf.mxu0
          %v3944 = vadd.f32 %v3918, %v3943
          %3945 = vmatmul.f32.gmra.mxu0 %v3826
          %v3946 = vpop.f32.mrf.mxu0
          %v3947 = vadd.f32 %v3918, %v3946
          %3948 = vmatmul.f32.gmra.mxu0 %v3828
          %v3949 = vpop.f32.mrf.mxu0
          %v3950 = vadd.f32 %v3918, %v3949
          %3951 = vmatmul.f32.gmra.mxu0 %v3830
          %v3952 = vpop.f32.mrf.mxu0
          %v3953 = vadd.f32 %v3918, %v3952
          %3954 = vmatmul.f32.gmra.mxu0 %v3832
          %v3955 = vpop.f32.mrf.mxu0
          %v3956 = vadd.f32 %v3918, %v3955
          %3957 = vmatmul.f32.gmra.mxu0 %v3834
          %v3958 = vpop.f32.mrf.mxu0
          %v3959 = vadd.f32 %v3918, %v3958
          %3960 = vmatmul.f32.gmra.mxu0 %v3836
          %v3961 = vpop.f32.mrf.mxu0
          %v3962 = vadd.f32 %v3918, %v3961
          %3963 = vmatmul.f32.gmra.mxu0 %v3838
          %v3964 = vpop.f32.mrf.mxu0
          %v3965 = vadd.f32 %v3918, %v3964
          %3966 = vmatmul.f32.gmra.mxu0 %v3840
          %v3967 = vpop.f32.mrf.mxu0
          %v3968 = vadd.f32 %v3918, %v3967
          %3969 = vmatmul.f32.gmra.mxu0 %v3842
          %v3970 = vpop.f32.mrf.mxu0
          %v3971 = vadd.f32 %v3918, %v3970
          %3972 = vmatmul.f32.gmra.mxu0 %v3844
          %v3973 = vpop.f32.mrf.mxu0
          %v3974 = vadd.f32 %v3918, %v3973
          %3975 = vmatmul.f32.gmra.mxu0 %v3846
          %v3976 = vpop.f32.mrf.mxu0
          %v3977 = vadd.f32 %v3918, %v3976
          %3978 = vmatmul.f32.gmra.mxu0 %v3848
          %v3979 = vpop.f32.mrf.mxu0
          %v3980 = vadd.f32 %v3918, %v3979
          %3981 = vmatmul.f32.gmra.mxu0 %v3850
          %v3982 = vpop.f32.mrf.mxu0
          %v3983 = vadd.f32 %v3918, %v3982
          %3984 = vmatmul.f32.gmra.mxu0 %v3852
          %v3985 = vpop.f32.mrf.mxu0
          %v3986 = vadd.f32 %v3918, %v3985
          %3987 = vmatmul.f32.gmra.mxu0 %v3854
          %v3988 = vpop.f32.mrf.mxu0
          %v3989 = vadd.f32 %v3918, %v3988
          %3990 = vmatmul.f32.gmra.mxu0 %v3856
          %v3991 = vpop.f32.mrf.mxu0
          %v3992 = vadd.f32 %v3918, %v3991
          %3993 = vmatmul.f32.gmra.mxu0 %v3858
          %v3994 = vpop.f32.mrf.mxu0
          %v3995 = vadd.f32 %v3918, %v3994
          %3996 = vmatmul.f32.gmra.mxu0 %v3860
          %v3997 = vpop.f32.mrf.mxu0
          %v3998 = vadd.f32 %v3918, %v3997
          %3999 = vmatmul.f32.gmra.mxu0 %v3862
          %v4000 = vpop.f32.mrf.mxu0
          %v4001 = vadd.f32 %v3918, %v4000
          %4002 = vmatmul.f32.gmra.mxu0 %v3864
          %v4003 = vpop.f32.mrf.mxu0
          %v4004 = vadd.f32 %v3918, %v4003
          %4005 = vmatmul.f32.gmra.mxu0 %v3866
          %v4006 = vpop.f32.mrf.mxu0
          %v4007 = vadd.f32 %v3918, %v4006
          %4008 = vmatmul.f32.gmra.mxu0 %v3868
          %v4009 = vpop.f32.mrf.mxu0
          %v4010 = vadd.f32 %v3918, %v4009
          %4011 = vmatmul.f32.gmra.mxu0 %v3870
          %v4012 = vpop.f32.mrf.mxu0
          %v4013 = vadd.f32 %v3918, %v4012
          %4014 = vmatmul.f32.gmra.mxu0 %v3872
          %v4015 = vpop.f32.mrf.mxu0
          %v4016 = vadd.f32 %v3918, %v4015
          %4017 = vmatmul.f32.gmra.mxu0 %v3874
          %v4018 = vpop.f32.mrf.mxu0
          %v4019 = vadd.f32 %v3918, %v4018
          %4020 = vmatmul.f32.gmra.mxu0 %v3876
          %v4021 = vpop.f32.mrf.mxu0
          %v4022 = vadd.f32 %v3918, %v4021
          %4023 = vmatmul.f32.gmra.mxu0 %v3878
          %v4024 = vpop.f32.mrf.mxu0
          %v4025 = vadd.f32 %v3918, %v4024
          %4026 = vmatmul.f32.gmra.mxu0 %v3880
          %v4027 = vpop.f32.mrf.mxu0
          %v4028 = vadd.f32 %v3918, %v4027
          %4029 = vmatmul.f32.gmra.mxu0 %v3882
          %v4030 = vpop.f32.mrf.mxu0
          %v4031 = vadd.f32 %v3918, %v4030
          %4032 = vdwg.mxu0
          %4033 = vmatpush.msra.mxu0 %v3915
          %4034 = vmatpush.msra.mxu0 %v3914
          %4035 = vmatpush.msra.mxu0 %v3913
          %4036 = vmatpush.msra.mxu0 %v3912
          %4037 = vmatpush.msra.mxu0 %v3911
          %4038 = vmatpush.msra.mxu0 %v3910
          %4039 = vmatpush.msra.mxu0 %v3909
          %4040 = vmatpush.msra.mxu0 %v3908
          %4041 = vmatpush.msra.mxu0 %v3907
          %4042 = vmatpush.msra.mxu0 %v3906
          %4043 = vmatpush.msra.mxu0 %v3905
          %4044 = vmatpush.msra.mxu0 %v3904
          %4045 = vmatpush.msra.mxu0 %v3903
          %4046 = vmatpush.msra.mxu0 %v3902
          %4047 = vmatpush.msra.mxu0 %v3901
          %4048 = vmatpush.msra.mxu0 %v3900
          %4049 = vmatmul.f32.gmra.mxu0 %v3821
          %v4050 = vpop.f32.mrf.mxu0
          %v4051 = vadd.f32 %v3938, %v4050
          %4052 = vmatmul.f32.gmra.mxu0 %v3823
          %v4053 = vpop.f32.mrf.mxu0
          %v4054 = vadd.f32 %v3941, %v4053
          %4055 = vmatmul.f32.gmra.mxu0 %v3825
          %v4056 = vpop.f32.mrf.mxu0
          %v4057 = vadd.f32 %v3944, %v4056
          %4058 = vmatmul.f32.gmra.mxu0 %v3827
          %v4059 = vpop.f32.mrf.mxu0
          %v4060 = vadd.f32 %v3947, %v4059
          %4061 = vmatmul.f32.gmra.mxu0 %v3829
          %v4062 = vpop.f32.mrf.mxu0
          %v4063 = vadd.f32 %v3950, %v4062
          %4064 = vmatmul.f32.gmra.mxu0 %v3831
          %v4065 = vpop.f32.mrf.mxu0
          %v4066 = vadd.f32 %v3953, %v4065
          %4067 = vmatmul.f32.gmra.mxu0 %v3833
          %v4068 = vpop.f32.mrf.mxu0
          %v4069 = vadd.f32 %v3956, %v4068
          %4070 = vmatmul.f32.gmra.mxu0 %v3835
          %v4071 = vpop.f32.mrf.mxu0
          %v4072 = vadd.f32 %v3959, %v4071
          %4073 = vmatmul.f32.gmra.mxu0 %v3837
          %v4074 = vpop.f32.mrf.mxu0
          %v4075 = vadd.f32 %v3962, %v4074
          %4076 = vmatmul.f32.gmra.mxu0 %v3839
          %v4077 = vpop.f32.mrf.mxu0
          %v4078 = vadd.f32 %v3965, %v4077
          %4079 = vmatmul.f32.gmra.mxu0 %v3841
          %v4080 = vpop.f32.mrf.mxu0
          %v4081 = vadd.f32 %v3968, %v4080
          %4082 = vmatmul.f32.gmra.mxu0 %v3843
          %v4083 = vpop.f32.mrf.mxu0
          %v4084 = vadd.f32 %v3971, %v4083
          %4085 = vmatmul.f32.gmra.mxu0 %v3845
          %v4086 = vpop.f32.mrf.mxu0
          %v4087 = vadd.f32 %v3974, %v4086
          %4088 = vmatmul.f32.gmra.mxu0 %v3847
          %v4089 = vpop.f32.mrf.mxu0
          %v4090 = vadd.f32 %v3977, %v4089
          %4091 = vmatmul.f32.gmra.mxu0 %v3849
          %v4092 = vpop.f32.mrf.mxu0
          %v4093 = vadd.f32 %v3980, %v4092
          %4094 = vmatmul.f32.gmra.mxu0 %v3851
          %v4095 = vpop.f32.mrf.mxu0
          %v4096 = vadd.f32 %v3983, %v4095
          %4097 = vmatmul.f32.gmra.mxu0 %v3853
          %v4098 = vpop.f32.mrf.mxu0
          %v4099 = vadd.f32 %v3986, %v4098
          %4100 = vmatmul.f32.gmra.mxu0 %v3855
          %v4101 = vpop.f32.mrf.mxu0
          %v4102 = vadd.f32 %v3989, %v4101
          %4103 = vmatmul.f32.gmra.mxu0 %v3857
          %v4104 = vpop.f32.mrf.mxu0
          %v4105 = vadd.f32 %v3992, %v4104
          %4106 = vmatmul.f32.gmra.mxu0 %v3859
          %v4107 = vpop.f32.mrf.mxu0
          %v4108 = vadd.f32 %v3995, %v4107
          %4109 = vmatmul.f32.gmra.mxu0 %v3861
          %v4110 = vpop.f32.mrf.mxu0
          %v4111 = vadd.f32 %v3998, %v4110
          %4112 = vmatmul.f32.gmra.mxu0 %v3863
          %v4113 = vpop.f32.mrf.mxu0
          %v4114 = vadd.f32 %v4001, %v4113
          %4115 = vmatmul.f32.gmra.mxu0 %v3865
          %v4116 = vpop.f32.mrf.mxu0
          %v4117 = vadd.f32 %v4004, %v4116
          %4118 = vmatmul.f32.gmra.mxu0 %v3867
          %v4119 = vpop.f32.mrf.mxu0
          %v4120 = vadd.f32 %v4007, %v4119
          %4121 = vmatmul.f32.gmra.mxu0 %v3869
          %v4122 = vpop.f32.mrf.mxu0
          %v4123 = vadd.f32 %v4010, %v4122
          %4124 = vmatmul.f32.gmra.mxu0 %v3871
          %v4125 = vpop.f32.mrf.mxu0
          %v4126 = vadd.f32 %v4013, %v4125
          %4127 = vmatmul.f32.gmra.mxu0 %v3873
          %v4128 = vpop.f32.mrf.mxu0
          %v4129 = vadd.f32 %v4016, %v4128
          %4130 = vmatmul.f32.gmra.mxu0 %v3875
          %v4131 = vpop.f32.mrf.mxu0
          %v4132 = vadd.f32 %v4019, %v4131
          %4133 = vmatmul.f32.gmra.mxu0 %v3877
          %v4134 = vpop.f32.mrf.mxu0
          %v4135 = vadd.f32 %v4022, %v4134
          %4136 = vmatmul.f32.gmra.mxu0 %v3879
          %v4137 = vpop.f32.mrf.mxu0
          %v4138 = vadd.f32 %v4025, %v4137
          %4139 = vmatmul.f32.gmra.mxu0 %v3881
          %v4140 = vpop.f32.mrf.mxu0
          %v4141 = vadd.f32 %v4028, %v4140
          %4142 = vmatmul.f32.gmra.mxu0 %v3883
          %v4143 = vpop.f32.mrf.mxu0
          %v4144 = vadd.f32 %v4031, %v4143
          %4145 = vdwg.mxu0
          %v4146 = vadd.f32 %v3524, %v4051
          %v4147 = vadd.f32 %v3525, %v4054
          %v4148 = vadd.f32 %v3526, %v4057
          %v4149 = vadd.f32 %v3527, %v4060
          %v4150 = vadd.f32 %v3528, %v4063
          %v4151 = vadd.f32 %v3529, %v4066
          %v4152 = vadd.f32 %v3530, %v4069
          %v4153 = vadd.f32 %v3531, %v4072
          %v4154 = vadd.f32 %v3532, %v4075
          %v4155 = vadd.f32 %v3533, %v4078
          %v4156 = vadd.f32 %v3534, %v4081
          %v4157 = vadd.f32 %v3535, %v4084
          %v4158 = vadd.f32 %v3536, %v4087
          %v4159 = vadd.f32 %v3537, %v4090
          %v4160 = vadd.f32 %v3538, %v4093
          %v4161 = vadd.f32 %v3539, %v4096
          %v4162 = vadd.f32 %v3540, %v4099
          %v4163 = vadd.f32 %v3541, %v4102
          %v4164 = vadd.f32 %v3542, %v4105
          %v4165 = vadd.f32 %v3543, %v4108
          %v4166 = vadd.f32 %v3544, %v4111
          %v4167 = vadd.f32 %v3545, %v4114
          %v4168 = vadd.f32 %v3546, %v4117
          %v4169 = vadd.f32 %v3547, %v4120
          %v4170 = vadd.f32 %v3548, %v4123
          %v4171 = vadd.f32 %v3549, %v4126
          %v4172 = vadd.f32 %v3550, %v4129
          %v4173 = vadd.f32 %v3551, %v4132
          %v4174 = vadd.f32 %v3552, %v4135
          %v4175 = vadd.f32 %v3553, %v4138
          %v4176 = vadd.f32 %v3554, %v4141
          %v4177 = vadd.f32 %v3555, %v4144
          %4178 = vadd.xlane.f32.xlu0 %v4146
          %v4179 = vpop.xlane.xlu0 %4178
          %4180 = vadd.xlane.f32.xlu0 %v4147
          %v4181 = vpop.xlane.xlu0 %4180
          %4182 = vadd.xlane.f32.xlu0 %v4148
          %v4183 = vpop.xlane.xlu0 %4182
          %4184 = vadd.xlane.f32.xlu0 %v4149
          %v4185 = vpop.xlane.xlu0 %4184
          %4186 = vadd.xlane.f32.xlu0 %v4150
          %v4187 = vpop.xlane.xlu0 %4186
          %4188 = vadd.xlane.f32.xlu0 %v4151
          %v4189 = vpop.xlane.xlu0 %4188
          %4190 = vadd.xlane.f32.xlu0 %v4152
          %v4191 = vpop.xlane.xlu0 %4190
          %4192 = vadd.xlane.f32.xlu0 %v4153
          %v4193 = vpop.xlane.xlu0 %4192
          %4194 = vadd.xlane.f32.xlu0 %v4154
          %v4195 = vpop.xlane.xlu0 %4194
          %4196 = vadd.xlane.f32.xlu0 %v4155
          %v4197 = vpop.xlane.xlu0 %4196
          %4198 = vadd.xlane.f32.xlu0 %v4156
          %v4199 = vpop.xlane.xlu0 %4198
          %4200 = vadd.xlane.f32.xlu0 %v4157
          %v4201 = vpop.xlane.xlu0 %4200
          %4202 = vadd.xlane.f32.xlu0 %v4158
          %v4203 = vpop.xlane.xlu0 %4202
          %4204 = vadd.xlane.f32.xlu0 %v4159
          %v4205 = vpop.xlane.xlu0 %4204
          %4206 = vadd.xlane.f32.xlu0 %v4160
          %v4207 = vpop.xlane.xlu0 %4206
          %4208 = vadd.xlane.f32.xlu0 %v4161
          %v4209 = vpop.xlane.xlu0 %4208
          %4210 = vadd.xlane.f32.xlu0 %v4162
          %v4211 = vpop.xlane.xlu0 %4210
          %4212 = vadd.xlane.f32.xlu0 %v4163
          %v4213 = vpop.xlane.xlu0 %4212
          %4214 = vadd.xlane.f32.xlu0 %v4164
          %v4215 = vpop.xlane.xlu0 %4214
          %4216 = vadd.xlane.f32.xlu0 %v4165
          %v4217 = vpop.xlane.xlu0 %4216
          %4218 = vadd.xlane.f32.xlu0 %v4166
          %v4219 = vpop.xlane.xlu0 %4218
          %4220 = vadd.xlane.f32.xlu0 %v4167
          %v4221 = vpop.xlane.xlu0 %4220
          %4222 = vadd.xlane.f32.xlu0 %v4168
          %v4223 = vpop.xlane.xlu0 %4222
          %4224 = vadd.xlane.f32.xlu0 %v4169
          %v4225 = vpop.xlane.xlu0 %4224
          %4226 = vadd.xlane.f32.xlu0 %v4170
          %v4227 = vpop.xlane.xlu0 %4226
          %4228 = vadd.xlane.f32.xlu0 %v4171
          %v4229 = vpop.xlane.xlu0 %4228
          %4230 = vadd.xlane.f32.xlu0 %v4172
          %v4231 = vpop.xlane.xlu0 %4230
          %4232 = vadd.xlane.f32.xlu0 %v4173
          %v4233 = vpop.xlane.xlu0 %4232
          %4234 = vadd.xlane.f32.xlu0 %v4174
          %v4235 = vpop.xlane.xlu0 %4234
          %4236 = vadd.xlane.f32.xlu0 %v4175
          %v4237 = vpop.xlane.xlu0 %4236
          %4238 = vadd.xlane.f32.xlu0 %v4176
          %v4239 = vpop.xlane.xlu0 %4238
          %4240 = vadd.xlane.f32.xlu0 %v4177
          %v4241 = vpop.xlane.xlu0 %4240
          %v4242 = vmul.f32 %v4179, %v2907
          %v4243 = vmul.f32 %v4181, %v2907
          %v4244 = vmul.f32 %v4183, %v2907
          %v4245 = vmul.f32 %v4185, %v2907
          %v4246 = vmul.f32 %v4187, %v2907
          %v4247 = vmul.f32 %v4189, %v2907
          %v4248 = vmul.f32 %v4191, %v2907
          %v4249 = vmul.f32 %v4193, %v2907
          %v4250 = vmul.f32 %v4195, %v2907
          %v4251 = vmul.f32 %v4197, %v2907
          %v4252 = vmul.f32 %v4199, %v2907
          %v4253 = vmul.f32 %v4201, %v2907
          %v4254 = vmul.f32 %v4203, %v2907
          %v4255 = vmul.f32 %v4205, %v2907
          %v4256 = vmul.f32 %v4207, %v2907
          %v4257 = vmul.f32 %v4209, %v2907
          %v4258 = vmul.f32 %v4211, %v2907
          %v4259 = vmul.f32 %v4213, %v2907
          %v4260 = vmul.f32 %v4215, %v2907
          %v4261 = vmul.f32 %v4217, %v2907
          %v4262 = vmul.f32 %v4219, %v2907
          %v4263 = vmul.f32 %v4221, %v2907
          %v4264 = vmul.f32 %v4223, %v2907
          %v4265 = vmul.f32 %v4225, %v2907
          %v4266 = vmul.f32 %v4227, %v2907
          %v4267 = vmul.f32 %v4229, %v2907
          %v4268 = vmul.f32 %v4231, %v2907
          %v4269 = vmul.f32 %v4233, %v2907
          %v4270 = vmul.f32 %v4235, %v2907
          %v4271 = vmul.f32 %v4237, %v2907
          %v4272 = vmul.f32 %v4239, %v2907
          %v4273 = vmul.f32 %v4241, %v2907
          %v4274 = vsub.f32 %v4146, %v4242
          %v4275 = vsub.f32 %v4147, %v4243
          %v4276 = vsub.f32 %v4148, %v4244
          %v4277 = vsub.f32 %v4149, %v4245
          %v4278 = vsub.f32 %v4150, %v4246
          %v4279 = vsub.f32 %v4151, %v4247
          %v4280 = vsub.f32 %v4152, %v4248
          %v4281 = vsub.f32 %v4153, %v4249
          %v4282 = vsub.f32 %v4154, %v4250
          %v4283 = vsub.f32 %v4155, %v4251
          %v4284 = vsub.f32 %v4156, %v4252
          %v4285 = vsub.f32 %v4157, %v4253
          %v4286 = vsub.f32 %v4158, %v4254
          %v4287 = vsub.f32 %v4159, %v4255
          %v4288 = vsub.f32 %v4160, %v4256
          %v4289 = vsub.f32 %v4161, %v4257
          %v4290 = vsub.f32 %v4162, %v4258
          %v4291 = vsub.f32 %v4163, %v4259
          %v4292 = vsub.f32 %v4164, %v4260
          %v4293 = vsub.f32 %v4165, %v4261
          %v4294 = vsub.f32 %v4166, %v4262
          %v4295 = vsub.f32 %v4167, %v4263
          %v4296 = vsub.f32 %v4168, %v4264
          %v4297 = vsub.f32 %v4169, %v4265
          %v4298 = vsub.f32 %v4170, %v4266
          %v4299 = vsub.f32 %v4171, %v4267
          %v4300 = vsub.f32 %v4172, %v4268
          %v4301 = vsub.f32 %v4173, %v4269
          %v4302 = vsub.f32 %v4174, %v4270
          %v4303 = vsub.f32 %v4175, %v4271
          %v4304 = vsub.f32 %v4176, %v4272
          %v4305 = vsub.f32 %v4177, %v4273
          %v4306 = vmul.f32 %v4274, %v4274
          %v4307 = vmul.f32 %v4275, %v4275
          %v4308 = vmul.f32 %v4276, %v4276
          %v4309 = vmul.f32 %v4277, %v4277
          %v4310 = vmul.f32 %v4278, %v4278
          %v4311 = vmul.f32 %v4279, %v4279
          %v4312 = vmul.f32 %v4280, %v4280
          %v4313 = vmul.f32 %v4281, %v4281
          %v4314 = vmul.f32 %v4282, %v4282
          %v4315 = vmul.f32 %v4283, %v4283
          %v4316 = vmul.f32 %v4284, %v4284
          %v4317 = vmul.f32 %v4285, %v4285
          %v4318 = vmul.f32 %v4286, %v4286
          %v4319 = vmul.f32 %v4287, %v4287
          %v4320 = vmul.f32 %v4288, %v4288
          %v4321 = vmul.f32 %v4289, %v4289
          %v4322 = vmul.f32 %v4290, %v4290
          %v4323 = vmul.f32 %v4291, %v4291
          %v4324 = vmul.f32 %v4292, %v4292
          %v4325 = vmul.f32 %v4293, %v4293
          %v4326 = vmul.f32 %v4294, %v4294
          %v4327 = vmul.f32 %v4295, %v4295
          %v4328 = vmul.f32 %v4296, %v4296
          %v4329 = vmul.f32 %v4297, %v4297
          %v4330 = vmul.f32 %v4298, %v4298
          %v4331 = vmul.f32 %v4299, %v4299
          %v4332 = vmul.f32 %v4300, %v4300
          %v4333 = vmul.f32 %v4301, %v4301
          %v4334 = vmul.f32 %v4302, %v4302
          %v4335 = vmul.f32 %v4303, %v4303
          %v4336 = vmul.f32 %v4304, %v4304
          %v4337 = vmul.f32 %v4305, %v4305
          %4338 = vadd.xlane.f32.xlu0 %v4306
          %v4339 = vpop.xlane.xlu0 %4338
          %4340 = vadd.xlane.f32.xlu0 %v4307
          %v4341 = vpop.xlane.xlu0 %4340
          %4342 = vadd.xlane.f32.xlu0 %v4308
          %v4343 = vpop.xlane.xlu0 %4342
          %4344 = vadd.xlane.f32.xlu0 %v4309
          %v4345 = vpop.xlane.xlu0 %4344
          %4346 = vadd.xlane.f32.xlu0 %v4310
          %v4347 = vpop.xlane.xlu0 %4346
          %4348 = vadd.xlane.f32.xlu0 %v4311
          %v4349 = vpop.xlane.xlu0 %4348
          %4350 = vadd.xlane.f32.xlu0 %v4312
          %v4351 = vpop.xlane.xlu0 %4350
          %4352 = vadd.xlane.f32.xlu0 %v4313
          %v4353 = vpop.xlane.xlu0 %4352
          %4354 = vadd.xlane.f32.xlu0 %v4314
          %v4355 = vpop.xlane.xlu0 %4354
          %4356 = vadd.xlane.f32.xlu0 %v4315
          %v4357 = vpop.xlane.xlu0 %4356
          %4358 = vadd.xlane.f32.xlu0 %v4316
          %v4359 = vpop.xlane.xlu0 %4358
          %4360 = vadd.xlane.f32.xlu0 %v4317
          %v4361 = vpop.xlane.xlu0 %4360
          %4362 = vadd.xlane.f32.xlu0 %v4318
          %v4363 = vpop.xlane.xlu0 %4362
          %4364 = vadd.xlane.f32.xlu0 %v4319
          %v4365 = vpop.xlane.xlu0 %4364
          %4366 = vadd.xlane.f32.xlu0 %v4320
          %v4367 = vpop.xlane.xlu0 %4366
          %4368 = vadd.xlane.f32.xlu0 %v4321
          %v4369 = vpop.xlane.xlu0 %4368
          %4370 = vadd.xlane.f32.xlu0 %v4322
          %v4371 = vpop.xlane.xlu0 %4370
          %4372 = vadd.xlane.f32.xlu0 %v4323
          %v4373 = vpop.xlane.xlu0 %4372
          %4374 = vadd.xlane.f32.xlu0 %v4324
          %v4375 = vpop.xlane.xlu0 %4374
          %4376 = vadd.xlane.f32.xlu0 %v4325
          %v4377 = vpop.xlane.xlu0 %4376
          %4378 = vadd.xlane.f32.xlu0 %v4326
          %v4379 = vpop.xlane.xlu0 %4378
          %4380 = vadd.xlane.f32.xlu0 %v4327
          %v4381 = vpop.xlane.xlu0 %4380
          %4382 = vadd.xlane.f32.xlu0 %v4328
          %v4383 = vpop.xlane.xlu0 %4382
          %4384 = vadd.xlane.f32.xlu0 %v4329
          %v4385 = vpop.xlane.xlu0 %4384
          %4386 = vadd.xlane.f32.xlu0 %v4330
          %v4387 = vpop.xlane.xlu0 %4386
          %4388 = vadd.xlane.f32.xlu0 %v4331
          %v4389 = vpop.xlane.xlu0 %4388
          %4390 = vadd.xlane.f32.xlu0 %v4332
          %v4391 = vpop.xlane.xlu0 %4390
          %4392 = vadd.xlane.f32.xlu0 %v4333
          %v4393 = vpop.xlane.xlu0 %4392
          %4394 = vadd.xlane.f32.xlu0 %v4334
          %v4395 = vpop.xlane.xlu0 %4394
          %4396 = vadd.xlane.f32.xlu0 %v4335
          %v4397 = vpop.xlane.xlu0 %4396
          %4398 = vadd.xlane.f32.xlu0 %v4336
          %v4399 = vpop.xlane.xlu0 %4398
          %4400 = vadd.xlane.f32.xlu0 %v4337
          %v4401 = vpop.xlane.xlu0 %4400
          %v4402 = vmul.f32 %v4339, %v2907
          %v4403 = vmul.f32 %v4341, %v2907
          %v4404 = vmul.f32 %v4343, %v2907
          %v4405 = vmul.f32 %v4345, %v2907
          %v4406 = vmul.f32 %v4347, %v2907
          %v4407 = vmul.f32 %v4349, %v2907
          %v4408 = vmul.f32 %v4351, %v2907
          %v4409 = vmul.f32 %v4353, %v2907
          %v4410 = vmul.f32 %v4355, %v2907
          %v4411 = vmul.f32 %v4357, %v2907
          %v4412 = vmul.f32 %v4359, %v2907
          %v4413 = vmul.f32 %v4361, %v2907
          %v4414 = vmul.f32 %v4363, %v2907
          %v4415 = vmul.f32 %v4365, %v2907
          %v4416 = vmul.f32 %v4367, %v2907
          %v4417 = vmul.f32 %v4369, %v2907
          %v4418 = vmul.f32 %v4371, %v2907
          %v4419 = vmul.f32 %v4373, %v2907
          %v4420 = vmul.f32 %v4375, %v2907
          %v4421 = vmul.f32 %v4377, %v2907
          %v4422 = vmul.f32 %v4379, %v2907
          %v4423 = vmul.f32 %v4381, %v2907
          %v4424 = vmul.f32 %v4383, %v2907
          %v4425 = vmul.f32 %v4385, %v2907
          %v4426 = vmul.f32 %v4387, %v2907
          %v4427 = vmul.f32 %v4389, %v2907
          %v4428 = vmul.f32 %v4391, %v2907
          %v4429 = vmul.f32 %v4393, %v2907
          %v4430 = vmul.f32 %v4395, %v2907
          %v4431 = vmul.f32 %v4397, %v2907
          %v4432 = vmul.f32 %v4399, %v2907
          %v4433 = vmul.f32 %v4401, %v2907
          %v4434 = vadd.f32 %v4402, 1e-05
          %v4435 = vadd.f32 %v4403, 1e-05
          %v4436 = vadd.f32 %v4404, 1e-05
          %v4437 = vadd.f32 %v4405, 1e-05
          %v4438 = vadd.f32 %v4406, 1e-05
          %v4439 = vadd.f32 %v4407, 1e-05
          %v4440 = vadd.f32 %v4408, 1e-05
          %v4441 = vadd.f32 %v4409, 1e-05
          %v4442 = vadd.f32 %v4410, 1e-05
          %v4443 = vadd.f32 %v4411, 1e-05
          %v4444 = vadd.f32 %v4412, 1e-05
          %v4445 = vadd.f32 %v4413, 1e-05
          %v4446 = vadd.f32 %v4414, 1e-05
          %v4447 = vadd.f32 %v4415, 1e-05
          %v4448 = vadd.f32 %v4416, 1e-05
          %v4449 = vadd.f32 %v4417, 1e-05
          %v4450 = vadd.f32 %v4418, 1e-05
          %v4451 = vadd.f32 %v4419, 1e-05
          %v4452 = vadd.f32 %v4420, 1e-05
          %v4453 = vadd.f32 %v4421, 1e-05
          %v4454 = vadd.f32 %v4422, 1e-05
          %v4455 = vadd.f32 %v4423, 1e-05
          %v4456 = vadd.f32 %v4424, 1e-05
          %v4457 = vadd.f32 %v4425, 1e-05
          %v4458 = vadd.f32 %v4426, 1e-05
          %v4459 = vadd.f32 %v4427, 1e-05
          %v4460 = vadd.f32 %v4428, 1e-05
          %v4461 = vadd.f32 %v4429, 1e-05
          %v4462 = vadd.f32 %v4430, 1e-05
          %v4463 = vadd.f32 %v4431, 1e-05
          %v4464 = vadd.f32 %v4432, 1e-05
          %v4465 = vadd.f32 %v4433, 1e-05
          %v4466 = vrsqrt.pop %v4434
          %v4467 = vmul.f32 %v4466, %v4434
          %v4468 = vmul.f32 %v4467, %v4466
          %v4469 = vmul.f32 0.5, %v4468
          %v4470 = vsub.f32 1.5, %v4469
          %v4471 = vmul.f32 %v4466, %v4470
          %vm4472 = vweird.f32 %v4434
          %vm4473 = vweird.f32 %v4466
          %vm4474 = vmor %vm4472, %vm4473
          %v4475 = vsel %vm4474, %v4466, %v4471
          %v4476 = vrsqrt.pop %v4435
          %v4477 = vmul.f32 %v4476, %v4435
          %v4478 = vmul.f32 %v4477, %v4476
          %v4479 = vmul.f32 0.5, %v4478
          %v4480 = vsub.f32 1.5, %v4479
          %v4481 = vmul.f32 %v4476, %v4480
          %vm4482 = vweird.f32 %v4435
          %vm4483 = vweird.f32 %v4476
          %vm4484 = vmor %vm4482, %vm4483
          %v4485 = vsel %vm4484, %v4476, %v4481
          %v4486 = vrsqrt.pop %v4436
          %v4487 = vmul.f32 %v4486, %v4436
          %v4488 = vmul.f32 %v4487, %v4486
          %v4489 = vmul.f32 0.5, %v4488
          %v4490 = vsub.f32 1.5, %v4489
          %v4491 = vmul.f32 %v4486, %v4490
          %vm4492 = vweird.f32 %v4436
          %vm4493 = vweird.f32 %v4486
          %vm4494 = vmor %vm4492, %vm4493
          %v4495 = vsel %vm4494, %v4486, %v4491
          %v4496 = vrsqrt.pop %v4437
          %v4497 = vmul.f32 %v4496, %v4437
          %v4498 = vmul.f32 %v4497, %v4496
          %v4499 = vmul.f32 0.5, %v4498
          %v4500 = vsub.f32 1.5, %v4499
          %v4501 = vmul.f32 %v4496, %v4500
          %vm4502 = vweird.f32 %v4437
          %vm4503 = vweird.f32 %v4496
          %vm4504 = vmor %vm4502, %vm4503
          %v4505 = vsel %vm4504, %v4496, %v4501
          %v4506 = vrsqrt.pop %v4438
          %v4507 = vmul.f32 %v4506, %v4438
          %v4508 = vmul.f32 %v4507, %v4506
          %v4509 = vmul.f32 0.5, %v4508
          %v4510 = vsub.f32 1.5, %v4509
          %v4511 = vmul.f32 %v4506, %v4510
          %vm4512 = vweird.f32 %v4438
          %vm4513 = vweird.f32 %v4506
          %vm4514 = vmor %vm4512, %vm4513
          %v4515 = vsel %vm4514, %v4506, %v4511
          %v4516 = vrsqrt.pop %v4439
          %v4517 = vmul.f32 %v4516, %v4439
          %v4518 = vmul.f32 %v4517, %v4516
          %v4519 = vmul.f32 0.5, %v4518
          %v4520 = vsub.f32 1.5, %v4519
          %v4521 = vmul.f32 %v4516, %v4520
          %vm4522 = vweird.f32 %v4439
          %vm4523 = vweird.f32 %v4516
          %vm4524 = vmor %vm4522, %vm4523
          %v4525 = vsel %vm4524, %v4516, %v4521
          %v4526 = vrsqrt.pop %v4440
          %v4527 = vmul.f32 %v4526, %v4440
          %v4528 = vmul.f32 %v4527, %v4526
          %v4529 = vmul.f32 0.5, %v4528
          %v4530 = vsub.f32 1.5, %v4529
          %v4531 = vmul.f32 %v4526, %v4530
          %vm4532 = vweird.f32 %v4440
          %vm4533 = vweird.f32 %v4526
          %vm4534 = vmor %vm4532, %vm4533
          %v4535 = vsel %vm4534, %v4526, %v4531
          %v4536 = vrsqrt.pop %v4441
          %v4537 = vmul.f32 %v4536, %v4441
          %v4538 = vmul.f32 %v4537, %v4536
          %v4539 = vmul.f32 0.5, %v4538
          %v4540 = vsub.f32 1.5, %v4539
          %v4541 = vmul.f32 %v4536, %v4540
          %vm4542 = vweird.f32 %v4441
          %vm4543 = vweird.f32 %v4536
          %vm4544 = vmor %vm4542, %vm4543
          %v4545 = vsel %vm4544, %v4536, %v4541
          %v4546 = vrsqrt.pop %v4442
          %v4547 = vmul.f32 %v4546, %v4442
          %v4548 = vmul.f32 %v4547, %v4546
          %v4549 = vmul.f32 0.5, %v4548
          %v4550 = vsub.f32 1.5, %v4549
          %v4551 = vmul.f32 %v4546, %v4550
          %vm4552 = vweird.f32 %v4442
          %vm4553 = vweird.f32 %v4546
          %vm4554 = vmor %vm4552, %vm4553
          %v4555 = vsel %vm4554, %v4546, %v4551
          %v4556 = vrsqrt.pop %v4443
          %v4557 = vmul.f32 %v4556, %v4443
          %v4558 = vmul.f32 %v4557, %v4556
          %v4559 = vmul.f32 0.5, %v4558
          %v4560 = vsub.f32 1.5, %v4559
          %v4561 = vmul.f32 %v4556, %v4560
          %vm4562 = vweird.f32 %v4443
          %vm4563 = vweird.f32 %v4556
          %vm4564 = vmor %vm4562, %vm4563
          %v4565 = vsel %vm4564, %v4556, %v4561
          %v4566 = vrsqrt.pop %v4444
          %v4567 = vmul.f32 %v4566, %v4444
          %v4568 = vmul.f32 %v4567, %v4566
          %v4569 = vmul.f32 0.5, %v4568
          %v4570 = vsub.f32 1.5, %v4569
          %v4571 = vmul.f32 %v4566, %v4570
          %vm4572 = vweird.f32 %v4444
          %vm4573 = vweird.f32 %v4566
          %vm4574 = vmor %vm4572, %vm4573
          %v4575 = vsel %vm4574, %v4566, %v4571
          %v4576 = vrsqrt.pop %v4445
          %v4577 = vmul.f32 %v4576, %v4445
          %v4578 = vmul.f32 %v4577, %v4576
          %v4579 = vmul.f32 0.5, %v4578
          %v4580 = vsub.f32 1.5, %v4579
          %v4581 = vmul.f32 %v4576, %v4580
          %vm4582 = vweird.f32 %v4445
          %vm4583 = vweird.f32 %v4576
          %vm4584 = vmor %vm4582, %vm4583
          %v4585 = vsel %vm4584, %v4576, %v4581
          %v4586 = vrsqrt.pop %v4446
          %v4587 = vmul.f32 %v4586, %v4446
          %v4588 = vmul.f32 %v4587, %v4586
          %v4589 = vmul.f32 0.5, %v4588
          %v4590 = vsub.f32 1.5, %v4589
          %v4591 = vmul.f32 %v4586, %v4590
          %vm4592 = vweird.f32 %v4446
          %vm4593 = vweird.f32 %v4586
          %vm4594 = vmor %vm4592, %vm4593
          %v4595 = vsel %vm4594, %v4586, %v4591
          %v4596 = vrsqrt.pop %v4447
          %v4597 = vmul.f32 %v4596, %v4447
          %v4598 = vmul.f32 %v4597, %v4596
          %v4599 = vmul.f32 0.5, %v4598
          %v4600 = vsub.f32 1.5, %v4599
          %v4601 = vmul.f32 %v4596, %v4600
          %vm4602 = vweird.f32 %v4447
          %vm4603 = vweird.f32 %v4596
          %vm4604 = vmor %vm4602, %vm4603
          %v4605 = vsel %vm4604, %v4596, %v4601
          %v4606 = vrsqrt.pop %v4448
          %v4607 = vmul.f32 %v4606, %v4448
          %v4608 = vmul.f32 %v4607, %v4606
          %v4609 = vmul.f32 0.5, %v4608
          %v4610 = vsub.f32 1.5, %v4609
          %v4611 = vmul.f32 %v4606, %v4610
          %vm4612 = vweird.f32 %v4448
          %vm4613 = vweird.f32 %v4606
          %vm4614 = vmor %vm4612, %vm4613
          %v4615 = vsel %vm4614, %v4606, %v4611
          %v4616 = vrsqrt.pop %v4449
          %v4617 = vmul.f32 %v4616, %v4449
          %v4618 = vmul.f32 %v4617, %v4616
          %v4619 = vmul.f32 0.5, %v4618
          %v4620 = vsub.f32 1.5, %v4619
          %v4621 = vmul.f32 %v4616, %v4620
          %vm4622 = vweird.f32 %v4449
          %vm4623 = vweird.f32 %v4616
          %vm4624 = vmor %vm4622, %vm4623
          %v4625 = vsel %vm4624, %v4616, %v4621
          %v4626 = vrsqrt.pop %v4450
          %v4627 = vmul.f32 %v4626, %v4450
          %v4628 = vmul.f32 %v4627, %v4626
          %v4629 = vmul.f32 0.5, %v4628
          %v4630 = vsub.f32 1.5, %v4629
          %v4631 = vmul.f32 %v4626, %v4630
          %vm4632 = vweird.f32 %v4450
          %vm4633 = vweird.f32 %v4626
          %vm4634 = vmor %vm4632, %vm4633
          %v4635 = vsel %vm4634, %v4626, %v4631
          %v4636 = vrsqrt.pop %v4451
          %v4637 = vmul.f32 %v4636, %v4451
          %v4638 = vmul.f32 %v4637, %v4636
          %v4639 = vmul.f32 0.5, %v4638
          %v4640 = vsub.f32 1.5, %v4639
          %v4641 = vmul.f32 %v4636, %v4640
          %vm4642 = vweird.f32 %v4451
          %vm4643 = vweird.f32 %v4636
          %vm4644 = vmor %vm4642, %vm4643
          %v4645 = vsel %vm4644, %v4636, %v4641
          %v4646 = vrsqrt.pop %v4452
          %v4647 = vmul.f32 %v4646, %v4452
          %v4648 = vmul.f32 %v4647, %v4646
          %v4649 = vmul.f32 0.5, %v4648
          %v4650 = vsub.f32 1.5, %v4649
          %v4651 = vmul.f32 %v4646, %v4650
          %vm4652 = vweird.f32 %v4452
          %vm4653 = vweird.f32 %v4646
          %vm4654 = vmor %vm4652, %vm4653
          %v4655 = vsel %vm4654, %v4646, %v4651
          %v4656 = vrsqrt.pop %v4453
          %v4657 = vmul.f32 %v4656, %v4453
          %v4658 = vmul.f32 %v4657, %v4656
          %v4659 = vmul.f32 0.5, %v4658
          %v4660 = vsub.f32 1.5, %v4659
          %v4661 = vmul.f32 %v4656, %v4660
          %vm4662 = vweird.f32 %v4453
          %vm4663 = vweird.f32 %v4656
          %vm4664 = vmor %vm4662, %vm4663
          %v4665 = vsel %vm4664, %v4656, %v4661
          %v4666 = vrsqrt.pop %v4454
          %v4667 = vmul.f32 %v4666, %v4454
          %v4668 = vmul.f32 %v4667, %v4666
          %v4669 = vmul.f32 0.5, %v4668
          %v4670 = vsub.f32 1.5, %v4669
          %v4671 = vmul.f32 %v4666, %v4670
          %vm4672 = vweird.f32 %v4454
          %vm4673 = vweird.f32 %v4666
          %vm4674 = vmor %vm4672, %vm4673
          %v4675 = vsel %vm4674, %v4666, %v4671
          %v4676 = vrsqrt.pop %v4455
          %v4677 = vmul.f32 %v4676, %v4455
          %v4678 = vmul.f32 %v4677, %v4676
          %v4679 = vmul.f32 0.5, %v4678
          %v4680 = vsub.f32 1.5, %v4679
          %v4681 = vmul.f32 %v4676, %v4680
          %vm4682 = vweird.f32 %v4455
          %vm4683 = vweird.f32 %v4676
          %vm4684 = vmor %vm4682, %vm4683
          %v4685 = vsel %vm4684, %v4676, %v4681
          %v4686 = vrsqrt.pop %v4456
          %v4687 = vmul.f32 %v4686, %v4456
          %v4688 = vmul.f32 %v4687, %v4686
          %v4689 = vmul.f32 0.5, %v4688
          %v4690 = vsub.f32 1.5, %v4689
          %v4691 = vmul.f32 %v4686, %v4690
          %vm4692 = vweird.f32 %v4456
          %vm4693 = vweird.f32 %v4686
          %vm4694 = vmor %vm4692, %vm4693
          %v4695 = vsel %vm4694, %v4686, %v4691
          %v4696 = vrsqrt.pop %v4457
          %v4697 = vmul.f32 %v4696, %v4457
          %v4698 = vmul.f32 %v4697, %v4696
          %v4699 = vmul.f32 0.5, %v4698
          %v4700 = vsub.f32 1.5, %v4699
          %v4701 = vmul.f32 %v4696, %v4700
          %vm4702 = vweird.f32 %v4457
          %vm4703 = vweird.f32 %v4696
          %vm4704 = vmor %vm4702, %vm4703
          %v4705 = vsel %vm4704, %v4696, %v4701
          %v4706 = vrsqrt.pop %v4458
          %v4707 = vmul.f32 %v4706, %v4458
          %v4708 = vmul.f32 %v4707, %v4706
          %v4709 = vmul.f32 0.5, %v4708
          %v4710 = vsub.f32 1.5, %v4709
          %v4711 = vmul.f32 %v4706, %v4710
          %vm4712 = vweird.f32 %v4458
          %vm4713 = vweird.f32 %v4706
          %vm4714 = vmor %vm4712, %vm4713
          %v4715 = vsel %vm4714, %v4706, %v4711
          %v4716 = vrsqrt.pop %v4459
          %v4717 = vmul.f32 %v4716, %v4459
          %v4718 = vmul.f32 %v4717, %v4716
          %v4719 = vmul.f32 0.5, %v4718
          %v4720 = vsub.f32 1.5, %v4719
          %v4721 = vmul.f32 %v4716, %v4720
          %vm4722 = vweird.f32 %v4459
          %vm4723 = vweird.f32 %v4716
          %vm4724 = vmor %vm4722, %vm4723
          %v4725 = vsel %vm4724, %v4716, %v4721
          %v4726 = vrsqrt.pop %v4460
          %v4727 = vmul.f32 %v4726, %v4460
          %v4728 = vmul.f32 %v4727, %v4726
          %v4729 = vmul.f32 0.5, %v4728
          %v4730 = vsub.f32 1.5, %v4729
          %v4731 = vmul.f32 %v4726, %v4730
          %vm4732 = vweird.f32 %v4460
          %vm4733 = vweird.f32 %v4726
          %vm4734 = vmor %vm4732, %vm4733
          %v4735 = vsel %vm4734, %v4726, %v4731
          %v4736 = vrsqrt.pop %v4461
          %v4737 = vmul.f32 %v4736, %v4461
          %v4738 = vmul.f32 %v4737, %v4736
          %v4739 = vmul.f32 0.5, %v4738
          %v4740 = vsub.f32 1.5, %v4739
          %v4741 = vmul.f32 %v4736, %v4740
          %vm4742 = vweird.f32 %v4461
          %vm4743 = vweird.f32 %v4736
          %vm4744 = vmor %vm4742, %vm4743
          %v4745 = vsel %vm4744, %v4736, %v4741
          %v4746 = vrsqrt.pop %v4462
          %v4747 = vmul.f32 %v4746, %v4462
          %v4748 = vmul.f32 %v4747, %v4746
          %v4749 = vmul.f32 0.5, %v4748
          %v4750 = vsub.f32 1.5, %v4749
          %v4751 = vmul.f32 %v4746, %v4750
          %vm4752 = vweird.f32 %v4462
          %vm4753 = vweird.f32 %v4746
          %vm4754 = vmor %vm4752, %vm4753
          %v4755 = vsel %vm4754, %v4746, %v4751
          %v4756 = vrsqrt.pop %v4463
          %v4757 = vmul.f32 %v4756, %v4463
          %v4758 = vmul.f32 %v4757, %v4756
          %v4759 = vmul.f32 0.5, %v4758
          %v4760 = vsub.f32 1.5, %v4759
          %v4761 = vmul.f32 %v4756, %v4760
          %vm4762 = vweird.f32 %v4463
          %vm4763 = vweird.f32 %v4756
          %vm4764 = vmor %vm4762, %vm4763
          %v4765 = vsel %vm4764, %v4756, %v4761
          %v4766 = vrsqrt.pop %v4464
          %v4767 = vmul.f32 %v4766, %v4464
          %v4768 = vmul.f32 %v4767, %v4766
          %v4769 = vmul.f32 0.5, %v4768
          %v4770 = vsub.f32 1.5, %v4769
          %v4771 = vmul.f32 %v4766, %v4770
          %vm4772 = vweird.f32 %v4464
          %vm4773 = vweird.f32 %v4766
          %vm4774 = vmor %vm4772, %vm4773
          %v4775 = vsel %vm4774, %v4766, %v4771
          %v4776 = vrsqrt.pop %v4465
          %v4777 = vmul.f32 %v4776, %v4465
          %v4778 = vmul.f32 %v4777, %v4776
          %v4779 = vmul.f32 0.5, %v4778
          %v4780 = vsub.f32 1.5, %v4779
          %v4781 = vmul.f32 %v4776, %v4780
          %vm4782 = vweird.f32 %v4465
          %vm4783 = vweird.f32 %v4776
          %vm4784 = vmor %vm4782, %vm4783
          %v4785 = vsel %vm4784, %v4776, %v4781
          %v4786 = vmul.f32 %v4274, %v4475
          %v4787 = vmul.f32 %v4275, %v4485
          %v4788 = vmul.f32 %v4276, %v4495
          %v4789 = vmul.f32 %v4277, %v4505
          %v4790 = vmul.f32 %v4278, %v4515
          %v4791 = vmul.f32 %v4279, %v4525
          %v4792 = vmul.f32 %v4280, %v4535
          %v4793 = vmul.f32 %v4281, %v4545
          %v4794 = vmul.f32 %v4282, %v4555
          %v4795 = vmul.f32 %v4283, %v4565
          %v4796 = vmul.f32 %v4284, %v4575
          %v4797 = vmul.f32 %v4285, %v4585
          %v4798 = vmul.f32 %v4286, %v4595
          %v4799 = vmul.f32 %v4287, %v4605
          %v4800 = vmul.f32 %v4288, %v4615
          %v4801 = vmul.f32 %v4289, %v4625
          %v4802 = vmul.f32 %v4290, %v4635
          %v4803 = vmul.f32 %v4291, %v4645
          %v4804 = vmul.f32 %v4292, %v4655
          %v4805 = vmul.f32 %v4293, %v4665
          %v4806 = vmul.f32 %v4294, %v4675
          %v4807 = vmul.f32 %v4295, %v4685
          %v4808 = vmul.f32 %v4296, %v4695
          %v4809 = vmul.f32 %v4297, %v4705
          %v4810 = vmul.f32 %v4298, %v4715
          %v4811 = vmul.f32 %v4299, %v4725
          %v4812 = vmul.f32 %v4300, %v4735
          %v4813 = vmul.f32 %v4301, %v4745
          %v4814 = vmul.f32 %v4302, %v4755
          %v4815 = vmul.f32 %v4303, %v4765
          %v4816 = vmul.f32 %v4304, %v4775
          %v4817 = vmul.f32 %v4305, %v4785
          %v4818 = vld [vmem:[%s12] sm:$0x1]
          %v4820 = vperm.slane %v4818, 0
          %v4822 = vmul.f32 %v4786, %v4820
          %v4823 = vmul.f32 %v4787, %v4820
          %v4824 = vmul.f32 %v4788, %v4820
          %v4825 = vmul.f32 %v4789, %v4820
          %v4826 = vmul.f32 %v4790, %v4820
          %v4827 = vmul.f32 %v4791, %v4820
          %v4828 = vmul.f32 %v4792, %v4820
          %v4829 = vmul.f32 %v4793, %v4820
          %v4830 = vmul.f32 %v4794, %v4820
          %v4831 = vmul.f32 %v4795, %v4820
          %v4832 = vmul.f32 %v4796, %v4820
          %v4833 = vmul.f32 %v4797, %v4820
          %v4834 = vmul.f32 %v4798, %v4820
          %v4835 = vmul.f32 %v4799, %v4820
          %v4836 = vmul.f32 %v4800, %v4820
          %v4837 = vmul.f32 %v4801, %v4820
          %v4838 = vmul.f32 %v4802, %v4820
          %v4839 = vmul.f32 %v4803, %v4820
          %v4840 = vmul.f32 %v4804, %v4820
          %v4841 = vmul.f32 %v4805, %v4820
          %v4842 = vmul.f32 %v4806, %v4820
          %v4843 = vmul.f32 %v4807, %v4820
          %v4844 = vmul.f32 %v4808, %v4820
          %v4845 = vmul.f32 %v4809, %v4820
          %v4846 = vmul.f32 %v4810, %v4820
          %v4847 = vmul.f32 %v4811, %v4820
          %v4848 = vmul.f32 %v4812, %v4820
          %v4849 = vmul.f32 %v4813, %v4820
          %v4850 = vmul.f32 %v4814, %v4820
          %v4851 = vmul.f32 %v4815, %v4820
          %v4852 = vmul.f32 %v4816, %v4820
          %v4853 = vmul.f32 %v4817, %v4820
          %v4854 = vld [vmem:[%s13] sm:$0x1]
          %v4856 = vperm.slane %v4854, 0
          %v4858 = vadd.f32 %v4822, %v4856
          %v4859 = vadd.f32 %v4823, %v4856
          %v4860 = vadd.f32 %v4824, %v4856
          %v4861 = vadd.f32 %v4825, %v4856
          %v4862 = vadd.f32 %v4826, %v4856
          %v4863 = vadd.f32 %v4827, %v4856
          %v4864 = vadd.f32 %v4828, %v4856
          %v4865 = vadd.f32 %v4829, %v4856
          %v4866 = vadd.f32 %v4830, %v4856
          %v4867 = vadd.f32 %v4831, %v4856
          %v4868 = vadd.f32 %v4832, %v4856
          %v4869 = vadd.f32 %v4833, %v4856
          %v4870 = vadd.f32 %v4834, %v4856
          %v4871 = vadd.f32 %v4835, %v4856
          %v4872 = vadd.f32 %v4836, %v4856
          %v4873 = vadd.f32 %v4837, %v4856
          %v4874 = vadd.f32 %v4838, %v4856
          %v4875 = vadd.f32 %v4839, %v4856
          %v4876 = vadd.f32 %v4840, %v4856
          %v4877 = vadd.f32 %v4841, %v4856
          %v4878 = vadd.f32 %v4842, %v4856
          %v4879 = vadd.f32 %v4843, %v4856
          %v4880 = vadd.f32 %v4844, %v4856
          %v4881 = vadd.f32 %v4845, %v4856
          %v4882 = vadd.f32 %v4846, %v4856
          %v4883 = vadd.f32 %v4847, %v4856
          %v4884 = vadd.f32 %v4848, %v4856
          %v4885 = vadd.f32 %v4849, %v4856
          %v4886 = vadd.f32 %v4850, %v4856
          %v4887 = vadd.f32 %v4851, %v4856
          %v4888 = vadd.f32 %v4852, %v4856
          %v4889 = vadd.f32 %v4853, %v4856
          %4890 = vst [vmem:[%s629] sm:$0xff] %v4858
          %4891 = vst [vmem:[%s629 + $0x8] sm:$0xff] %v4859
          %4892 = vst [vmem:[%s629 + $0x10] sm:$0xff] %v4860
          %4893 = vst [vmem:[%s629 + $0x18] sm:$0xff] %v4861
          %4894 = vst [vmem:[%s629 + $0x20] sm:$0xff] %v4862
          %4895 = vst [vmem:[%s629 + $0x28] sm:$0xff] %v4863
          %4896 = vst [vmem:[%s629 + $0x30] sm:$0xff] %v4864
          %4897 = vst [vmem:[%s629 + $0x38] sm:$0xff] %v4865
          %4898 = vst [vmem:[%s629 + $0x40] sm:$0xff] %v4866
          %4899 = vst [vmem:[%s629 + $0x48] sm:$0xff] %v4867
          %4900 = vst [vmem:[%s629 + $0x50] sm:$0xff] %v4868
          %4901 = vst [vmem:[%s629 + $0x58] sm:$0xff] %v4869
          %4902 = vst [vmem:[%s629 + $0x60] sm:$0xff] %v4870
          %4903 = vst [vmem:[%s629 + $0x68] sm:$0xff] %v4871
          %4904 = vst [vmem:[%s629 + $0x70] sm:$0xff] %v4872
          %4905 = vst [vmem:[%s629 + $0x78] sm:$0xff] %v4873
          %4906 = vst [vmem:[%s629 + $0x80] sm:$0xff] %v4874
          %4907 = vst [vmem:[%s629 + $0x88] sm:$0xff] %v4875
          %4908 = vst [vmem:[%s629 + $0x90] sm:$0xff] %v4876
          %4909 = vst [vmem:[%s629 + $0x98] sm:$0xff] %v4877
          %4910 = vst [vmem:[%s629 + $0xa0] sm:$0xff] %v4878
          %4911 = vst [vmem:[%s629 + $0xa8] sm:$0xff] %v4879
          %4912 = vst [vmem:[%s629 + $0xb0] sm:$0xff] %v4880
          %4913 = vst [vmem:[%s629 + $0xb8] sm:$0xff] %v4881
          %4914 = vst [vmem:[%s629 + $0xc0] sm:$0xff] %v4882
          %4915 = vst [vmem:[%s629 + $0xc8] sm:$0xff] %v4883
          %4916 = vst [vmem:[%s629 + $0xd0] sm:$0xff] %v4884
          %4917 = vst [vmem:[%s629 + $0xd8] sm:$0xff] %v4885
          %4918 = vst [vmem:[%s629 + $0xe0] sm:$0xff] %v4886
          %4919 = vst [vmem:[%s629 + $0xe8] sm:$0xff] %v4887
          %4920 = vst [vmem:[%s629 + $0xf0] sm:$0xff] %v4888
          %4921 = vst [vmem:[%s629 + $0xf8] sm:$0xff] %v4889
        $region108: #{tpu_custom_call.1} parent=75 // pred_fallthru
          _
        %s4922 = sand.u32 %s367, 1
        %s4923 = scalar_lea.sflag [#allocation9], %s4922
        %s4924 = sand.u32 %s367, 1
        %s4925 = smul.addr %s4924, 256
        %s4926 = scalar_lea.vmem [#allocation18], %s4925
        // Predicated region
        $region109: #{tpu_custom_call.1} parent=75 // pred_check
          %p4927 = pneg %p377
        $region110: #{tpu_custom_call.1} parent=75 // pred_check_branch
          %4929 = sbr.rel (%p4927) target = $region112
        $region111: #{tpu_custom_call.1} parent=75 // pred_region
          %s4930 = smul.u32 32, %s42
          %4932 = vsyncadd %s4923, 0
          %s4933 = smul.addr %s4930, 8
          %s4934 = scalar_lea.hbm %s14, %s4933
          %s4935 = sshll.u32 %s4926, 4
          %s4936 = int_to_ptr.vmem [resolvable:$true] %s4935
          %s4937 = sshll.u32 %s4934, 4
          %s4938 = int_to_ptr.hbm [resolvable:$true] %s4937
          %4943 = dma.vmem_to_hbm [thread:$0]  %s4936, 4096, %s4938, %s4923, 128, 128, 8
        $region112: #{tpu_custom_call.1} parent=75 // pred_fallthru
          _
      $region76: #{tpu_custom_call.1} parent=5 // pred_fallthru
        _
      %p4944 = scmp.le.s32.totalorder 2, %s33
      // Predicated region
      $region113: #{tpu_custom_call.1} parent=5 // pred_check
        %p4945 = pneg %p4944
      $region114: #{tpu_custom_call.1} parent=5 // pred_check_branch
        %4947 = sbr.rel (%p4945) target = $region116
      $region115: #{tpu_custom_call.1} parent=5 // pred_region
        %s4948 = ssub.s32 %s33, 2
        // Predicated region
        $region117: #{tpu_custom_call.1} parent=115 // pred_check
          %p4949 = pneg %p383
        $region118: #{tpu_custom_call.1} parent=115 // pred_check_branch
          %4951 = sbr.rel (%p4949) target = $region120
        $region119: #{tpu_custom_call.1} parent=115 // pred_region
          %s4952 = sand.u32 %s368, 1
          %s4953 = scalar_lea.sflag [#allocation9], %s4952
          %s4954 = sand.u32 %s368, 1
          %s4955 = smul.addr %s4954, 256
          %s4956 = scalar_lea.vmem [#allocation18], %s4955
          %4958 = dma.done %s4953, 4096
        $region120: #{tpu_custom_call.1} parent=115 // pred_fallthru
          _
      $region116: #{tpu_custom_call.1} parent=5 // pred_fallthru
        _
    $region6: #{tpu_custom_call.1} parent=1 // loop_footer
      %s37 = sadd.s32 1, %s33
    $region7: #{tpu_custom_call.1} parent=1 // loop_footer_branch
      %32 = sbr.rel target = $region3
    $region8: #{tpu_custom_call.1} parent=1 // loop_exit
      _
    %4959 = vsyncpa [#allocation8], 1
    %s4960 = scalar_lea.sflag [#allocation8], 1
    %4961 = vsyncpa %s4960, 1
    %4962 = vsyncpa [#allocation11], 1
    %s4963 = scalar_lea.sflag [#allocation11], 1
    %4964 = vsyncpa %s4963, 1
    %4965 = vsyncpa [#allocation14], 1
    %4966 = vsyncpa [#allocation17], 1
    %4967 = vsyncpa [#allocation9], 1
    %s4968 = scalar_lea.sflag [#allocation9], 1
    %4969 = vsyncpa %s4968, 1

</llo_original>
